<compile_context>
chip_gen: v5e
topology: v5e:2x2
jax: 0.10.0
libtpu: 0.0.40
codegen_flags: <defaults>
</compile_context>

<pallas_src>
import jax
import jax.numpy as jnp
from jax.experimental import pallas as pl
from jax.experimental.pallas import tpu as pltpu


def _round_up(x, m):
    return -(-x // m) * m


# ----------------------------------------------------------------------------
# Kernel
# ----------------------------------------------------------------------------
def make_pointnet_kernel(b_tile, n_tile, c_pad, feat, widths):
    """widths: per-layer output widths (for slicing the packed shift tile)."""
    m = b_tile * n_tile

    def kernel(x_ref,                       # (b_tile, n_tile, c_pad) bf16, NWC layout
               w1, w2, w3, w4, w5,          # backbone weights, bf16, BN-scale folded
               wh1, wh2, wh3,               # head weights, bf16 (wh1/wh2 BN folded)
               t_ref,                       # (8, W) f32: 7 BN shifts + final bias
               out_ref,                     # (b_tile, n_out_pad) f32
               gmax_ref):                   # (b_tile, feat) f32 running max scratch

        k = pl.program_id(1)

        @pl.when(k == 0)
        def _():
            gmax_ref[...] = jnp.full(gmax_ref.shape, -jnp.inf, gmax_ref.dtype)

        def shift(i):
            # static row/lane slice of the packed shift tile -> (1, width_i)
            return t_ref[i:i + 1, :widths[i]]

        def dense_relu(h_bf16, w_ref, idx):
            # MXU matmul with f32 accumulation; f32 add/ReLU epilogue (v5e-safe).
            y = jnp.dot(h_bf16, w_ref[...], preferred_element_type=jnp.float32)
            return jnp.maximum(y + shift(idx), 0.0)

        # ---- backbone: one big-M matmul per layer; bf16 activations between layers
        h = x_ref[...].reshape(m, c_pad)                     # bf16, (M, c_pad)
        h = dense_relu(h, w1, 0).astype(jnp.bfloat16)        # (M, 64)
        h = dense_relu(h, w2, 1).astype(jnp.bfloat16)        # (M, 64)
        h = dense_relu(h, w3, 2).astype(jnp.bfloat16)        # (M, 64)
        h = dense_relu(h, w4, 3).astype(jnp.bfloat16)        # (M, 128)
        y = dense_relu(h, w5, 4)                             # (M, F) f32

        # ---- online global max pool over this N tile (torch.max(x, 2).values)
        tile_max = jnp.max(y.reshape(b_tile, n_tile, feat), axis=1)   # (b_tile, F)
        gmax_ref[...] = jnp.maximum(gmax_ref[...], tile_max)

        # ---- head only on the last N tile
        @pl.when(k == pl.num_programs(1) - 1)
        def _():
            g = gmax_ref[...].astype(jnp.bfloat16)                    # (b_tile, F)
            g = dense_relu(g, wh1, 5).astype(jnp.bfloat16)            # (b_tile, H1)
            g = dense_relu(g, wh2, 6).astype(jnp.bfloat16)            # (b_tile, H2)
            out = jnp.dot(g, wh3[...],
                          preferred_element_type=jnp.float32) + shift(7)
            out_ref[...] = out.astype(out_ref.dtype)                  # (b_tile, n_out_pad)

    return kernel


# ----------------------------------------------------------------------------
# Wrapper
# ----------------------------------------------------------------------------
def pointnet_forward(x_bcn, params, *, b_tile=8, n_tile=None):
    """x_bcn: (B, C, N) float32 (PyTorch layout). Returns (B, n_out) float32."""
    B, C, N = x_bcn.shape
    (w1, s1, t1, w2, s2, t2, w3, s3, t3,
     w4, s4, t4, w5, s5, t5,
     wh1, sh1, th1, wh2, sh2, th2, wh3, bh3) = params
    n_out = wh3.shape[1]
    feat = w5.shape[1]

    if n_tile is None:
        n_tile = N
    assert B % b_tile == 0, "batch must be divisible by b_tile"
    assert b_tile % 8 == 0 or b_tile == B, "b_tile must be a multiple of 8"
    assert N % n_tile == 0 and n_tile % 8 == 0, "point tile must divide N and be a multiple of 8"

    # ---- one-time layout change in the wrapper: (B, C, N) -> (B, N, C), pad C
    # up to a multiple of 8, stream as bf16 (halves input DMA bytes).
    c_pad = max(8, _round_up(C, 8))
    x_nwc = jnp.transpose(x_bcn, (0, 2, 1))
    x_nwc = jnp.pad(x_nwc, ((0, 0), (0, 0), (0, c_pad - C))).astype(jnp.bfloat16)

    # ---- fold BN scale into the weights (trace-time), cast to bf16.
    def fold(w, s):
        return (w * s).astype(jnp.bfloat16)

    w1f = jnp.pad(fold(w1, s1), ((0, c_pad - C), (0, 0)))   # zero rows for padded channels
    ws = [w1f, fold(w2, s2), fold(w3, s3), fold(w4, s4), fold(w5, s5),
          fold(wh1, sh1), fold(wh2, sh2)]

    # ---- lane-dense output: pad n_out up to 128, slice real columns off below.
    n_out_pad = max(128, _round_up(n_out, 128))
    wh3p = jnp.pad(wh3, ((0, 0), (0, n_out_pad - n_out))).astype(jnp.bfloat16)
    bh3p = jnp.pad(bh3.reshape(-1), (0, n_out_pad - n_out))
    ws.append(wh3p)

    # ---- pack the 7 per-channel shifts + final (padded) bias into one (8, W) tile.
    shifts = [t1.reshape(-1), t2.reshape(-1), t3.reshape(-1), t4.reshape(-1),
              t5.reshape(-1), th1.reshape(-1), th2.reshape(-1), bh3p]
    widths = tuple(int(t.shape[-1]) for t in shifts)
    W = max(128, _round_up(max(widths), 128))
    t_pack = jnp.stack(
        [jnp.pad(t, (0, W - t.shape[-1])) for t in shifts], axis=0
    ).astype(jnp.float32)                                    # (8, W)

    kernel = make_pointnet_kernel(b_tile, n_tile, c_pad, feat, widths)

    # grid-invariant weights / shift tile: whole-array resident in VMEM (single buffer)
    vmem_const = pl.BlockSpec(memory_space=pltpu.MemorySpace.VMEM)
    in_specs = [pl.BlockSpec((b_tile, n_tile, c_pad), lambda b, k: (b, k, 0))]
    in_specs += [vmem_const] * (len(ws) + 1)

    out = pl.pallas_call(
        kernel,
        out_shape=jax.ShapeDtypeStruct((B, n_out_pad), jnp.float32),
        grid_spec=pltpu.PrefetchScalarGridSpec(
            num_scalar_prefetch=0,
            grid=(B // b_tile, N // n_tile),
            in_specs=in_specs,
            out_specs=pl.BlockSpec((b_tile, n_out_pad), lambda b, k: (b, 0)),
            scratch_shapes=[pltpu.VMEM((b_tile, feat), jnp.float32)],
        ),
        compiler_params=pltpu.CompilerParams(
            dimension_semantics=("parallel", "arbitrary"),
            # headroom below v7x's 64 MiB physical VMEM; above v5e/v6e defaults
            vmem_limit_bytes=48 * 1024 * 1024,
        ),
    )(x_nwc, *ws, t_pack)

    return out[:, :n_out]


# ----------------------------------------------------------------------------
# Deterministic parameter construction (synthetic; mirrors module shapes)
# ----------------------------------------------------------------------------
def _fold_bn(key, c_out, eps=1e-5, linear_bias=None):
    """Return (scale, shift) of shape (1, c_out) folding eval-mode BatchNorm1d
    (and an optional preceding Linear bias) into a per-channel affine."""
    kg, kb, km, kv = jax.random.split(key, 4)
    gamma = jax.random.uniform(kg, (c_out,), jnp.float32, 0.5, 1.5)
    beta = 0.1 * jax.random.normal(kb, (c_out,), jnp.float32)
    mean = 0.1 * jax.random.normal(km, (c_out,), jnp.float32)
    var = jax.random.uniform(kv, (c_out,), jnp.float32, 0.5, 1.5)
    scale = gamma / jnp.sqrt(var + eps)
    bias = jnp.zeros((c_out,), jnp.float32) if linear_bias is None else linear_bias
    shift = (bias - mean) * scale + beta
    return scale.reshape(1, c_out), shift.reshape(1, c_out)


def make_params(key, c_in, n_global_feats, h1, h2, n_out):
    dims = [
        (c_in, 64), (64, 64),                         # shared_mlp_1
        (64, 64), (64, 128), (128, n_global_feats),   # shared_mlp_2
    ]
    params = []
    for (ci, co) in dims:
        key, kw, kbn = jax.random.split(key, 3)
        w = 0.2 * jax.random.normal(kw, (ci, co), jnp.float32)   # conv1d k=1, no bias
        s, t = _fold_bn(kbn, co)
        params += [w, s, t]

    # head dense block 1: Linear(F, h1, bias=True) + BN + ReLU
    key, kw, kb, kbn = jax.random.split(key, 4)
    wh1 = 0.2 * jax.random.normal(kw, (n_global_feats, h1), jnp.float32)
    bh1 = 0.1 * jax.random.normal(kb, (h1,), jnp.float32)
    sh1, th1 = _fold_bn(kbn, h1, linear_bias=bh1)
    params += [wh1, sh1, th1]

    # head dense block 2: Linear(h1, h2, bias=True) + BN + ReLU
    key, kw, kb, kbn = jax.random.split(key, 4)
    wh2 = 0.2 * jax.random.normal(kw, (h1, h2), jnp.float32)
    bh2 = 0.1 * jax.random.normal(kb, (h2,), jnp.float32)
    sh2, th2 = _fold_bn(kbn, h2, linear_bias=bh2)
    params += [wh2, sh2, th2]

    # final Linear(h2, n_out, bias=True)
    key, kw, kb = jax.random.split(key, 3)
    wh3 = 0.2 * jax.random.normal(kw, (h2, n_out), jnp.float32)
    bh3 = 0.1 * jax.random.normal(kb, (1, n_out), jnp.float32)
    params += [wh3, bh3]
    return params


# ----------------------------------------------------------------------------
# Pure-JAX reference (same folded/bf16 math as the kernel) for a sanity check
# ----------------------------------------------------------------------------
def ref_forward(x_bcn, p):
    (w1, s1, t1, w2, s2, t2, w3, s3, t3,
     w4, s4, t4, w5, s5, t5,
     wh1, sh1, th1, wh2, sh2, th2, wh3, bh3) = p
    x = jnp.transpose(x_bcn, (0, 2, 1))                        # (B, N, C)

    def cbr(h, w, s, t):
        wf = (w * s).astype(jnp.bfloat16)
        y = jnp.dot(h.astype(jnp.bfloat16), wf, preferred_element_type=jnp.float32)
        return jnp.maximum(y + t, 0.0)

    h = cbr(x, w1, s1, t1)
    h = cbr(h, w2, s2, t2)
    h = cbr(h, w3, s3, t3)
    h = cbr(h, w4, s4, t4)
    h = cbr(h, w5, s5, t5)
    g = jnp.max(h, axis=1)                                     # (B, F)
    g = cbr(g, wh1, sh1, th1)
    g = cbr(g, wh2, sh2, th2)
    return jnp.dot(g.astype(jnp.bfloat16), wh3.astype(jnp.bfloat16),
                   preferred_element_type=jnp.float32) + bh3


# ----------------------------------------------------------------------------
if __name__ == "__main__":
    B, C, N = 32, 4, 64         # batch, input channels (xyz+feat), points
    F = 128                     # n_global_feats (small for the example)
    H1, H2, N_OUT = 64, 32, 8   # head widths and n_outputs
    B_TILE = 16                 # 2 batch steps -> both v7x TensorCores get work
    N_TILE = 32                 # 2 point tiles -> exercises the online-max path

    key = jax.random.PRNGKey(0)
    kx, kp = jax.random.split(key)
    x = jax.random.normal(kx, (B, C, N), jnp.float32)          # PyTorch (B, C, N)
    params = make_params(kp, C, F, H1, H2, N_OUT)

    out = pointnet_forward(x, params, b_tile=B_TILE, n_tile=N_TILE)
    out = jax.block_until_ready(out)

    ref = ref_forward(x, params)
    assert out.shape == (B, N_OUT)
    assert jnp.allclose(out, ref, atol=1e-2, rtol=1e-2), "mismatch vs JAX reference"

    print("KERNEL_OK")
</pallas_src>

<mosaic_0001>
module attributes {stable_mosaic.version = 11 : i64} {
  func.func @kernel(%arg0: i32, %arg1: i32, %arg2: memref<16x32x8xbf16, #tpu.memory_space<vmem>>, %arg3: memref<8x64xbf16, #tpu.memory_space<vmem>>, %arg4: memref<64x64xbf16, #tpu.memory_space<vmem>>, %arg5: memref<64x64xbf16, #tpu.memory_space<vmem>>, %arg6: memref<64x128xbf16, #tpu.memory_space<vmem>>, %arg7: memref<128x128xbf16, #tpu.memory_space<vmem>>, %arg8: memref<128x64xbf16, #tpu.memory_space<vmem>>, %arg9: memref<64x32xbf16, #tpu.memory_space<vmem>>, %arg10: memref<32x128xbf16, #tpu.memory_space<vmem>>, %arg11: memref<8x128xf32, #tpu.memory_space<vmem>>, %arg12: memref<16x128xf32, #tpu.memory_space<vmem>>, %arg13: memref<16x128xf32, #tpu.memory_space<vmem>>) attributes {dimension_semantics = [#tpu.dimension_semantics<parallel>, #tpu.dimension_semantics<arbitrary>], iteration_bounds = array<i64: 2, 2>, scalar_prefetch = 0 : i64, scratch_operands = 1 : i64, tpu.core_type = #tpu.core_type<tc>, window_params = [{transform_indices = @transform_0, window_bounds = array<i64: 16, 32, 8>}, {pipeline_mode = #tpu.pipeline_mode<synchronous>, transform_indices = @transform_1, window_bounds = array<i64: 8, 64>}, {pipeline_mode = #tpu.pipeline_mode<synchronous>, transform_indices = @transform_2, window_bounds = array<i64: 64, 64>}, {pipeline_mode = #tpu.pipeline_mode<synchronous>, transform_indices = @transform_3, window_bounds = array<i64: 64, 64>}, {pipeline_mode = #tpu.pipeline_mode<synchronous>, transform_indices = @transform_4, window_bounds = array<i64: 64, 128>}, {pipeline_mode = #tpu.pipeline_mode<synchronous>, transform_indices = @transform_5, window_bounds = array<i64: 128, 128>}, {pipeline_mode = #tpu.pipeline_mode<synchronous>, transform_indices = @transform_6, window_bounds = array<i64: 128, 64>}, {pipeline_mode = #tpu.pipeline_mode<synchronous>, transform_indices = @transform_7, window_bounds = array<i64: 64, 32>}, {pipeline_mode = #tpu.pipeline_mode<synchronous>, transform_indices = @transform_8, window_bounds = array<i64: 32, 128>}, {pipeline_mode = #tpu.pipeline_mode<synchronous>, transform_indices = @transform_9, window_bounds = array<i64: 8, 128>}, {transform_indices = @transform_10, window_bounds = array<i64: 16, 128>}]} {
    %c0_i32 = arith.constant 0 : i32
    %0 = arith.cmpi eq, %arg1, %c0_i32 : i32
    %1 = arith.extui %0 : i1 to i32
    %c0_i32_0 = arith.constant 0 : i32
    %2 = arith.cmpi ne, %1, %c0_i32_0 : i32
    scf.if %2 {
      %cst_34 = arith.constant 0xFF800000 : f32
      %52 = vector.broadcast %cst_34 : f32 to vector<16x128xf32>
      %c0_35 = arith.constant 0 : index
      %c0_36 = arith.constant 0 : index
      %53 = vector.load %arg13[%c0_35, %c0_36] : memref<16x128xf32, #tpu.memory_space<vmem>>, vector<16x128xf32>
      tpu.vector_store %arg13[%c0_35, %c0_36], %52 {strides = array<i32>} : memref<16x128xf32, #tpu.memory_space<vmem>>, vector<16x128xf32>,
    } else {
    }
    %c0 = arith.constant 0 : index
    %c0_1 = arith.constant 0 : index
    %c0_2 = arith.constant 0 : index
    %3 = vector.load %arg2[%c0, %c0_1, %c0_2] : memref<16x32x8xbf16, #tpu.memory_space<vmem>>, vector<16x32x8xbf16>
    %4 = vector.shape_cast %3 : vector<16x32x8xbf16> to vector<512x8xbf16>
    %c0_3 = arith.constant 0 : index
    %c0_4 = arith.constant 0 : index
    %5 = vector.load %arg3[%c0_3, %c0_4] : memref<8x64xbf16, #tpu.memory_space<vmem>>, vector<8x64xbf16>
    %cst = arith.constant dense<0.000000e+00> : vector<512x64xf32>
    %6 = tpu.matmul %4, %5, %cst {dimension_numbers = #tpu.dot_dimension_numbers<[1], [0], [0], [1], [0, 0, 1, 1], [], []>} : vector<512x8xbf16>, vector<8x64xbf16>, vector<512x64xf32> -> vector<512x64xf32>
    %c0_5 = arith.constant 0 : index
    %c0_6 = arith.constant 0 : index
    %7 = vector.load %arg11[%c0_5, %c0_6] : memref<8x128xf32, #tpu.memory_space<vmem>>, vector<1x64xf32>
    %8 = vector.broadcast %7 : vector<1x64xf32> to vector<512x64xf32>
    %9 = arith.addf %6, %8 : vector<512x64xf32>
    %cst_7 = arith.constant 0.000000e+00 : f32
    %10 = vector.broadcast %cst_7 : f32 to vector<512x64xf32>
    %11 = arith.maximumf %9, %10 : vector<512x64xf32>
    %12 = arith.truncf %11 : vector<512x64xf32> to vector<512x64xbf16>
    %c0_8 = arith.constant 0 : index
    %c0_9 = arith.constant 0 : index
    %13 = vector.load %arg4[%c0_8, %c0_9] : memref<64x64xbf16, #tpu.memory_space<vmem>>, vector<64x64xbf16>
    %cst_10 = arith.constant dense<0.000000e+00> : vector<512x64xf32>
    %14 = tpu.matmul %12, %13, %cst_10 {dimension_numbers = #tpu.dot_dimension_numbers<[1], [0], [0], [1], [0, 0, 1, 1], [], []>} : vector<512x64xbf16>, vector<64x64xbf16>, vector<512x64xf32> -> vector<512x64xf32>
    %c1 = arith.constant 1 : index
    %c0_11 = arith.constant 0 : index
    %15 = vector.load %arg11[%c1, %c0_11] : memref<8x128xf32, #tpu.memory_space<vmem>>, vector<1x64xf32>
    %16 = vector.broadcast %15 : vector<1x64xf32> to vector<512x64xf32>
    %17 = arith.addf %14, %16 : vector<512x64xf32>
    %cst_12 = arith.constant 0.000000e+00 : f32
    %18 = vector.broadcast %cst_12 : f32 to vector<512x64xf32>
    %19 = arith.maximumf %17, %18 : vector<512x64xf32>
    %20 = arith.truncf %19 : vector<512x64xf32> to vector<512x64xbf16>
    %c0_13 = arith.constant 0 : index
    %c0_14 = arith.constant 0 : index
    %21 = vector.load %arg5[%c0_13, %c0_14] : memref<64x64xbf16, #tpu.memory_space<vmem>>, vector<64x64xbf16>
    %cst_15 = arith.constant dense<0.000000e+00> : vector<512x64xf32>
    %22 = tpu.matmul %20, %21, %cst_15 {dimension_numbers = #tpu.dot_dimension_numbers<[1], [0], [0], [1], [0, 0, 1, 1], [], []>} : vector<512x64xbf16>, vector<64x64xbf16>, vector<512x64xf32> -> vector<512x64xf32>
    %c2 = arith.constant 2 : index
    %c0_16 = arith.constant 0 : index
    %23 = vector.load %arg11[%c2, %c0_16] : memref<8x128xf32, #tpu.memory_space<vmem>>, vector<1x64xf32>
    %24 = vector.broadcast %23 : vector<1x64xf32> to vector<512x64xf32>
    %25 = arith.addf %22, %24 : vector<512x64xf32>
    %cst_17 = arith.constant 0.000000e+00 : f32
    %26 = vector.broadcast %cst_17 : f32 to vector<512x64xf32>
    %27 = arith.maximumf %25, %26 : vector<512x64xf32>
    %28 = arith.truncf %27 : vector<512x64xf32> to vector<512x64xbf16>
    %c0_18 = arith.constant 0 : index
    %c0_19 = arith.constant 0 : index
    %29 = vector.load %arg6[%c0_18, %c0_19] : memref<64x128xbf16, #tpu.memory_space<vmem>>, vector<64x128xbf16>
    %cst_20 = arith.constant dense<0.000000e+00> : vector<512x128xf32>
    %30 = tpu.matmul %28, %29, %cst_20 {dimension_numbers = #tpu.dot_dimension_numbers<[1], [0], [0], [1], [0, 0, 1, 1], [], []>} : vector<512x64xbf16>, vector<64x128xbf16>, vector<512x128xf32> -> vector<512x128xf32>
    %c3 = arith.constant 3 : index
    %c0_21 = arith.constant 0 : index
    %31 = vector.load %arg11[%c3, %c0_21] : memref<8x128xf32, #tpu.memory_space<vmem>>, vector<1x128xf32>
    %32 = vector.broadcast %31 : vector<1x128xf32> to vector<512x128xf32>
    %33 = arith.addf %30, %32 : vector<512x128xf32>
    %cst_22 = arith.constant 0.000000e+00 : f32
    %34 = vector.broadcast %cst_22 : f32 to vector<512x128xf32>
    %35 = arith.maximumf %33, %34 : vector<512x128xf32>
    %36 = arith.truncf %35 : vector<512x128xf32> to vector<512x128xbf16>
    %c0_23 = arith.constant 0 : index
    %c0_24 = arith.constant 0 : index
    %37 = vector.load %arg7[%c0_23, %c0_24] : memref<128x128xbf16, #tpu.memory_space<vmem>>, vector<128x128xbf16>
    %cst_25 = arith.constant dense<0.000000e+00> : vector<512x128xf32>
    %38 = tpu.matmul %36, %37, %cst_25 {dimension_numbers = #tpu.dot_dimension_numbers<[1], [0], [0], [1], [0, 0, 1, 1], [], []>} : vector<512x128xbf16>, vector<128x128xbf16>, vector<512x128xf32> -> vector<512x128xf32>
    %c4 = arith.constant 4 : index
    %c0_26 = arith.constant 0 : index
    %39 = vector.load %arg11[%c4, %c0_26] : memref<8x128xf32, #tpu.memory_space<vmem>>, vector<1x128xf32>
    %40 = vector.broadcast %39 : vector<1x128xf32> to vector<512x128xf32>
    %41 = arith.addf %38, %40 : vector<512x128xf32>
    %cst_27 = arith.constant 0.000000e+00 : f32
    %42 = vector.broadcast %cst_27 : f32 to vector<512x128xf32>
    %43 = arith.maximumf %41, %42 : vector<512x128xf32>
    %44 = vector.shape_cast %43 : vector<512x128xf32> to vector<16x32x128xf32>
    %cst_28 = arith.constant dense<0xFF800000> : vector<16x128xf32>
    %45 = vector.multi_reduction <maximumf>, %44, %cst_28 [1] : vector<16x32x128xf32> to vector<16x128xf32>
    %c0_29 = arith.constant 0 : index
    %c0_30 = arith.constant 0 : index
    %46 = vector.load %arg13[%c0_29, %c0_30] : memref<16x128xf32, #tpu.memory_space<vmem>>, vector<16x128xf32>
    %47 = arith.maximumf %46, %45 : vector<16x128xf32>
    %c0_31 = arith.constant 0 : index
    %c0_32 = arith.constant 0 : index
    %48 = vector.load %arg13[%c0_31, %c0_32] : memref<16x128xf32, #tpu.memory_space<vmem>>, vector<16x128xf32>
    tpu.vector_store %arg13[%c0_31, %c0_32], %47 {strides = array<i32>} : memref<16x128xf32, #tpu.memory_space<vmem>>, vector<16x128xf32>,
    %c1_i32 = arith.constant 1 : i32
    %49 = arith.cmpi eq, %arg1, %c1_i32 : i32
    %50 = arith.extui %49 : i1 to i32
    %c0_i32_33 = arith.constant 0 : i32
    %51 = arith.cmpi ne, %50, %c0_i32_33 : i32
    scf.if %51 {
      %c0_34 = arith.constant 0 : index
      %c0_35 = arith.constant 0 : index
      %52 = vector.load %arg13[%c0_34, %c0_35] : memref<16x128xf32, #tpu.memory_space<vmem>>, vector<16x128xf32>
      %53 = arith.truncf %52 : vector<16x128xf32> to vector<16x128xbf16>
      %c0_36 = arith.constant 0 : index
      %c0_37 = arith.constant 0 : index
      %54 = vector.load %arg8[%c0_36, %c0_37] : memref<128x64xbf16, #tpu.memory_space<vmem>>, vector<128x64xbf16>
      %cst_38 = arith.constant dense<0.000000e+00> : vector<16x64xf32>
      %55 = tpu.matmul %53, %54, %cst_38 {dimension_numbers = #tpu.dot_dimension_numbers<[1], [0], [0], [1], [0, 0, 1, 1], [], []>} : vector<16x128xbf16>, vector<128x64xbf16>, vector<16x64xf32> -> vector<16x64xf32>
      %c5 = arith.constant 5 : index
      %c0_39 = arith.constant 0 : index
      %56 = vector.load %arg11[%c5, %c0_39] : memref<8x128xf32, #tpu.memory_space<vmem>>, vector<1x64xf32>
      %57 = vector.broadcast %56 : vector<1x64xf32> to vector<16x64xf32>
      %58 = arith.addf %55, %57 : vector<16x64xf32>
      %cst_40 = arith.constant 0.000000e+00 : f32
      %59 = vector.broadcast %cst_40 : f32 to vector<16x64xf32>
      %60 = arith.maximumf %58, %59 : vector<16x64xf32>
      %61 = arith.truncf %60 : vector<16x64xf32> to vector<16x64xbf16>
      %c0_41 = arith.constant 0 : index
      %c0_42 = arith.constant 0 : index
      %62 = vector.load %arg9[%c0_41, %c0_42] : memref<64x32xbf16, #tpu.memory_space<vmem>>, vector<64x32xbf16>
      %cst_43 = arith.constant dense<0.000000e+00> : vector<16x32xf32>
      %63 = tpu.matmul %61, %62, %cst_43 {dimension_numbers = #tpu.dot_dimension_numbers<[1], [0], [0], [1], [0, 0, 1, 1], [], []>} : vector<16x64xbf16>, vector<64x32xbf16>, vector<16x32xf32> -> vector<16x32xf32>
      %c6 = arith.constant 6 : index
      %c0_44 = arith.constant 0 : index
      %64 = vector.load %arg11[%c6, %c0_44] : memref<8x128xf32, #tpu.memory_space<vmem>>, vector<1x32xf32>
      %65 = vector.broadcast %64 : vector<1x32xf32> to vector<16x32xf32>
      %66 = arith.addf %63, %65 : vector<16x32xf32>
      %cst_45 = arith.constant 0.000000e+00 : f32
      %67 = vector.broadcast %cst_45 : f32 to vector<16x32xf32>
      %68 = arith.maximumf %66, %67 : vector<16x32xf32>
      %69 = arith.truncf %68 : vector<16x32xf32> to vector<16x32xbf16>
      %c0_46 = arith.constant 0 : index
      %c0_47 = arith.constant 0 : index
      %70 = vector.load %arg10[%c0_46, %c0_47] : memref<32x128xbf16, #tpu.memory_space<vmem>>, vector<32x128xbf16>
      %cst_48 = arith.constant dense<0.000000e+00> : vector<16x128xf32>
      %71 = tpu.matmul %69, %70, %cst_48 {dimension_numbers = #tpu.dot_dimension_numbers<[1], [0], [0], [1], [0, 0, 1, 1], [], []>} : vector<16x32xbf16>, vector<32x128xbf16>, vector<16x128xf32> -> vector<16x128xf32>
      %c7 = arith.constant 7 : index
      %c0_49 = arith.constant 0 : index
      %72 = vector.load %arg11[%c7, %c0_49] : memref<8x128xf32, #tpu.memory_space<vmem>>, vector<1x128xf32>
      %73 = vector.broadcast %72 : vector<1x128xf32> to vector<16x128xf32>
      %74 = arith.addf %71, %73 : vector<16x128xf32>
      %c0_50 = arith.constant 0 : index
      %c0_51 = arith.constant 0 : index
      %75 = vector.load %arg12[%c0_50, %c0_51] : memref<16x128xf32, #tpu.memory_space<vmem>>, vector<16x128xf32>
      tpu.vector_store %arg12[%c0_50, %c0_51], %74 {strides = array<i32>} : memref<16x128xf32, #tpu.memory_space<vmem>>, vector<16x128xf32>,
    } else {
    }
    return
  }
  func.func @transform_0(%arg0: i32, %arg1: i32) -> (i32, i32, i32) {
    %c0_i32 = arith.constant 0 : i32
    %c0_i32_0 = arith.constant 0 : i32
    return %arg0, %arg1, %c0_i32 : i32, i32, i32
  }
  func.func @transform_1(%arg0: i32, %arg1: i32) -> (i32, i32) {
    %c0_i32 = arith.constant 0 : i32
    %c0_i32_0 = arith.constant 0 : i32
    %c0_i32_1 = arith.constant 0 : i32
    return %c0_i32, %c0_i32_0 : i32, i32
  }
  func.func @transform_2(%arg0: i32, %arg1: i32) -> (i32, i32) {
    %c0_i32 = arith.constant 0 : i32
    %c0_i32_0 = arith.constant 0 : i32
    %c0_i32_1 = arith.constant 0 : i32
    return %c0_i32, %c0_i32_0 : i32, i32
  }
  func.func @transform_3(%arg0: i32, %arg1: i32) -> (i32, i32) {
    %c0_i32 = arith.constant 0 : i32
    %c0_i32_0 = arith.constant 0 : i32
    %c0_i32_1 = arith.constant 0 : i32
    return %c0_i32, %c0_i32_0 : i32, i32
  }
  func.func @transform_4(%arg0: i32, %arg1: i32) -> (i32, i32) {
    %c0_i32 = arith.constant 0 : i32
    %c0_i32_0 = arith.constant 0 : i32
    %c0_i32_1 = arith.constant 0 : i32
    return %c0_i32, %c0_i32_0 : i32, i32
  }
  func.func @transform_5(%arg0: i32, %arg1: i32) -> (i32, i32) {
    %c0_i32 = arith.constant 0 : i32
    %c0_i32_0 = arith.constant 0 : i32
    %c0_i32_1 = arith.constant 0 : i32
    return %c0_i32, %c0_i32_0 : i32, i32
  }
  func.func @transform_6(%arg0: i32, %arg1: i32) -> (i32, i32) {
    %c0_i32 = arith.constant 0 : i32
    %c0_i32_0 = arith.constant 0 : i32
    %c0_i32_1 = arith.constant 0 : i32
    return %c0_i32, %c0_i32_0 : i32, i32
  }
  func.func @transform_7(%arg0: i32, %arg1: i32) -> (i32, i32) {
    %c0_i32 = arith.constant 0 : i32
    %c0_i32_0 = arith.constant 0 : i32
    %c0_i32_1 = arith.constant 0 : i32
    return %c0_i32, %c0_i32_0 : i32, i32
  }
  func.func @transform_8(%arg0: i32, %arg1: i32) -> (i32, i32) {
    %c0_i32 = arith.constant 0 : i32
    %c0_i32_0 = arith.constant 0 : i32
    %c0_i32_1 = arith.constant 0 : i32
    return %c0_i32, %c0_i32_0 : i32, i32
  }
  func.func @transform_9(%arg0: i32, %arg1: i32) -> (i32, i32) {
    %c0_i32 = arith.constant 0 : i32
    %c0_i32_0 = arith.constant 0 : i32
    %c0_i32_1 = arith.constant 0 : i32
    return %c0_i32, %c0_i32_0 : i32, i32
  }
  func.func @transform_10(%arg0: i32, %arg1: i32) -> (i32, i32) {
    %c0_i32 = arith.constant 0 : i32
    %c0_i32_0 = arith.constant 0 : i32
    return %arg0, %c0_i32 : i32, i32
  }
}

</mosaic_0001>

<llo_original>
// kernel: tpu_custom_call.1
$region0: #{tpu_custom_call.1}
  #allocation0 [shape = 'u32[]', space=smem, size = 0x4, offset = 0x4, fixed_abs, tag = 'smem constant byte address 0x4 - core index']
  #allocation1 [shape = 'u32[72,128]{1,0:T(1,128)}', space=vmem, size = 0x9000, scoped, tag = 'internal scratch']
  #allocation2 [shape = 'f32[16,128]{1,0:T(8,128)}', space=vmem, size = 0x2000, scoped, tag = 'scratch operand']
  %s0 = inlined_call_operand.vmem [shape: bf16[32,64,8], index: 0, kind: input, shape index: {}]
  %s1 = inlined_call_operand.vmem [shape: bf16[8,64], index: 1, kind: input, shape index: {}]
  %s2 = inlined_call_operand.vmem [shape: bf16[64,64], index: 2, kind: input, shape index: {}]
  %s3 = inlined_call_operand.vmem [shape: bf16[64,64], index: 3, kind: input, shape index: {}]
  %s4 = inlined_call_operand.vmem [shape: bf16[64,128], index: 4, kind: input, shape index: {}]
  %s5 = inlined_call_operand.vmem [shape: bf16[128,128], index: 5, kind: input, shape index: {}]
  %s6 = inlined_call_operand.vmem [shape: bf16[128,64], index: 6, kind: input, shape index: {}]
  %s7 = inlined_call_operand.vmem [shape: bf16[64,32], index: 7, kind: input, shape index: {}]
  %s8 = inlined_call_operand.vmem [shape: bf16[32,128], index: 8, kind: input, shape index: {}]
  %s9 = inlined_call_operand.vmem [shape: f32[8,128], index: 9, kind: input, shape index: {}]
  %s10 = inlined_call_operand.hbm [shape: f32[32,128], index: 10, kind: output, shape index: {}]
  %s11 = sld [smem:[#allocation0]]
  $region122: #{tpu_custom_call.1} parent=0
    _
  %s13 = ssub.s32 1, %s11
  %s14 = scalar_select 0, %s13, %s11
  $region1: #{tpu_custom_call.1} parent=0
    #allocation3 [shape = 'u8[262144]{0}', space=vmem, size = 0x40000, scoped, tag = 'input window, operand 0']
    #allocation4 [shape = 'u8[16384]{0}', space=vmem, size = 0x4000, scoped, tag = 'output window, operand 0']
    #allocation5 [shape = 's32[2]{0}', space=sflag, size = 0x8, scoped, tag = 'scoped memory for tpu_custom_call.1']
    %15 = vsyncpa [#allocation5], 0
    %s16 = scalar_lea.sflag [#allocation5], 1
    %17 = vsyncpa %s16, 0
    loop: start=0, step=1, limit=6
    $region2: #{tpu_custom_call.1} parent=1 // loop_pre_header
      _
    $region3: #{tpu_custom_call.1} parent=1 // loop_header
      %s19 = sphi 0, %s23
      %p20 = scmp.ge.s32.totalorder %s19, 6
      %s26 = sphi 0, %s38
      %s27 = sphi 0, %s34
      %s28 = sphi 0, %s26
      %s29 = sphi 0, %s27
      %s30 = sphi 0, %s28
      %s31 = sphi 0, %s29
      %s43 = sphi 0, %s45
      %s46 = sphi 0, %s43
      %s47 = sphi 0, %s46
      %s63 = sphi 0, %s47
      %s67 = sphi 0, %s67
      %s69 = sphi 0, %s67
      %s70 = sphi 0, %s69
      %s84 = sphi 0, %s70
      %s88 = sphi 0, %s88
      %s90 = sphi 0, %s88
      %s91 = sphi 0, %s90
      %s105 = sphi 0, %s91
      %s109 = sphi 0, %s109
      %s111 = sphi 0, %s109
      %s112 = sphi 0, %s111
      %s126 = sphi 0, %s112
      %s130 = sphi 0, %s130
      %s132 = sphi 0, %s130
      %s133 = sphi 0, %s132
      %s147 = sphi 0, %s133
      %s151 = sphi 0, %s151
      %s153 = sphi 0, %s151
      %s154 = sphi 0, %s153
      %s168 = sphi 0, %s154
      %s172 = sphi 0, %s172
      %s174 = sphi 0, %s172
      %s175 = sphi 0, %s174
      %s189 = sphi 0, %s175
      %s193 = sphi 0, %s193
      %s195 = sphi 0, %s193
      %s196 = sphi 0, %s195
      %s210 = sphi 0, %s196
      %s214 = sphi 0, %s214
      %s216 = sphi 0, %s214
      %s217 = sphi 0, %s216
      %s231 = sphi 0, %s217
      %s235 = sphi 0, %s235
      %s237 = sphi 0, %s235
      %s238 = sphi 0, %s237
      %s252 = sphi 0, %s238
      %s258 = sphi 0, %s260
      %s261 = sphi 0, %s258
      %s262 = sphi 0, %s261
      %s278 = sphi 0, %s262
    $region4: #{tpu_custom_call.1} parent=1 // loop_header_branch
      %22 = sbr.rel (%p20) target = $region8
    $region5: #{tpu_custom_call.1} parent=1 // loop_body
      %s24 = ssub.s32 %s19, 1
      %s25 = ssub.s32 %s19, 2
      %s32 = sadd.s32 1, %s27
      %p33 = scmp.ge.s32.totalorder %s32, 2
      %s34 = scalar_select %p33, 0, %s32
      %s35 = sadd.s32 1, %s26
      %s36 = scalar_select %p33, %s35, %s26
      %p37 = scmp.ge.s32.totalorder %s36, 2
      %s38 = scalar_select %p37, 0, %s36
      %s39 = ssub.s32 %s26, %s38
      %s40 = ssub.s32 %s27, %s34
      %s41 = sor.u32 %s39, %s40
      %p42 = scmp.eq.s32.totalorder %s41, 0
      %s44 = sadd.s32 %s43, 1
      %s45 = scalar_select %p42, %s43, %s44
      %p48 = pneg %p42
      %p49 = scmp.eq.s32.totalorder %s19, 3
      %p50 = por %p48, %p49
      %p51 = scmp.ne.s32.totalorder %s43, %s46
      %p52 = scmp.eq.s32.totalorder %s19, 0
      %p53 = por %p51, %p52
      %p54 = scmp.ne.s32.totalorder %s43, %s46
      %p55 = scmp.eq.s32.totalorder %s24, 3
      %p56 = por %p54, %p55
      %p57 = scmp.ne.s32.totalorder %s46, %s47
      %p58 = scmp.eq.s32.totalorder %s24, 0
      %p59 = por %p57, %p58
      %p60 = scmp.ne.s32.totalorder %s46, %s47
      %p61 = scmp.eq.s32.totalorder %s25, 3
      %p62 = por %p60, %p61
      %p64 = scmp.ne.s32.totalorder %s47, %s63
      %p65 = scmp.eq.s32.totalorder %s25, 0
      %p66 = por %p64, %p65
      %s68 = sadd.s32 %s67, 1
      %p71 = scmp.eq.s32.totalorder %s19, 3
      %p72 = scmp.ne.s32.totalorder %s67, %s69
      %p73 = scmp.eq.s32.totalorder %s19, 0
      %p74 = por %p72, %p73
      %p75 = scmp.ne.s32.totalorder %s67, %s69
      %p76 = scmp.eq.s32.totalorder %s24, 3
      %p77 = por %p75, %p76
      %p78 = scmp.ne.s32.totalorder %s69, %s70
      %p79 = scmp.eq.s32.totalorder %s24, 0
      %p80 = por %p78, %p79
      %p81 = scmp.ne.s32.totalorder %s69, %s70
      %p82 = scmp.eq.s32.totalorder %s25, 3
      %p83 = por %p81, %p82
      %p85 = scmp.ne.s32.totalorder %s70, %s84
      %p86 = scmp.eq.s32.totalorder %s25, 0
      %p87 = por %p85, %p86
      %s89 = sadd.s32 %s88, 1
      %p92 = scmp.eq.s32.totalorder %s19, 3
      %p93 = scmp.ne.s32.totalorder %s88, %s90
      %p94 = scmp.eq.s32.totalorder %s19, 0
      %p95 = por %p93, %p94
      %p96 = scmp.ne.s32.totalorder %s88, %s90
      %p97 = scmp.eq.s32.totalorder %s24, 3
      %p98 = por %p96, %p97
      %p99 = scmp.ne.s32.totalorder %s90, %s91
      %p100 = scmp.eq.s32.totalorder %s24, 0
      %p101 = por %p99, %p100
      %p102 = scmp.ne.s32.totalorder %s90, %s91
      %p103 = scmp.eq.s32.totalorder %s25, 3
      %p104 = por %p102, %p103
      %p106 = scmp.ne.s32.totalorder %s91, %s105
      %p107 = scmp.eq.s32.totalorder %s25, 0
      %p108 = por %p106, %p107
      %s110 = sadd.s32 %s109, 1
      %p113 = scmp.eq.s32.totalorder %s19, 3
      %p114 = scmp.ne.s32.totalorder %s109, %s111
      %p115 = scmp.eq.s32.totalorder %s19, 0
      %p116 = por %p114, %p115
      %p117 = scmp.ne.s32.totalorder %s109, %s111
      %p118 = scmp.eq.s32.totalorder %s24, 3
      %p119 = por %p117, %p118
      %p120 = scmp.ne.s32.totalorder %s111, %s112
      %p121 = scmp.eq.s32.totalorder %s24, 0
      %p122 = por %p120, %p121
      %p123 = scmp.ne.s32.totalorder %s111, %s112
      %p124 = scmp.eq.s32.totalorder %s25, 3
      %p125 = por %p123, %p124
      %p127 = scmp.ne.s32.totalorder %s112, %s126
      %p128 = scmp.eq.s32.totalorder %s25, 0
      %p129 = por %p127, %p128
      %s131 = sadd.s32 %s130, 1
      %p134 = scmp.eq.s32.totalorder %s19, 3
      %p135 = scmp.ne.s32.totalorder %s130, %s132
      %p136 = scmp.eq.s32.totalorder %s19, 0
      %p137 = por %p135, %p136
      %p138 = scmp.ne.s32.totalorder %s130, %s132
      %p139 = scmp.eq.s32.totalorder %s24, 3
      %p140 = por %p138, %p139
      %p141 = scmp.ne.s32.totalorder %s132, %s133
      %p142 = scmp.eq.s32.totalorder %s24, 0
      %p143 = por %p141, %p142
      %p144 = scmp.ne.s32.totalorder %s132, %s133
      %p145 = scmp.eq.s32.totalorder %s25, 3
      %p146 = por %p144, %p145
      %p148 = scmp.ne.s32.totalorder %s133, %s147
      %p149 = scmp.eq.s32.totalorder %s25, 0
      %p150 = por %p148, %p149
      %s152 = sadd.s32 %s151, 1
      %p155 = scmp.eq.s32.totalorder %s19, 3
      %p156 = scmp.ne.s32.totalorder %s151, %s153
      %p157 = scmp.eq.s32.totalorder %s19, 0
      %p158 = por %p156, %p157
      %p159 = scmp.ne.s32.totalorder %s151, %s153
      %p160 = scmp.eq.s32.totalorder %s24, 3
      %p161 = por %p159, %p160
      %p162 = scmp.ne.s32.totalorder %s153, %s154
      %p163 = scmp.eq.s32.totalorder %s24, 0
      %p164 = por %p162, %p163
      %p165 = scmp.ne.s32.totalorder %s153, %s154
      %p166 = scmp.eq.s32.totalorder %s25, 3
      %p167 = por %p165, %p166
      %p169 = scmp.ne.s32.totalorder %s154, %s168
      %p170 = scmp.eq.s32.totalorder %s25, 0
      %p171 = por %p169, %p170
      %s173 = sadd.s32 %s172, 1
      %p176 = scmp.eq.s32.totalorder %s19, 3
      %p177 = scmp.ne.s32.totalorder %s172, %s174
      %p178 = scmp.eq.s32.totalorder %s19, 0
      %p179 = por %p177, %p178
      %p180 = scmp.ne.s32.totalorder %s172, %s174
      %p181 = scmp.eq.s32.totalorder %s24, 3
      %p182 = por %p180, %p181
      %p183 = scmp.ne.s32.totalorder %s174, %s175
      %p184 = scmp.eq.s32.totalorder %s24, 0
      %p185 = por %p183, %p184
      %p186 = scmp.ne.s32.totalorder %s174, %s175
      %p187 = scmp.eq.s32.totalorder %s25, 3
      %p188 = por %p186, %p187
      %p190 = scmp.ne.s32.totalorder %s175, %s189
      %p191 = scmp.eq.s32.totalorder %s25, 0
      %p192 = por %p190, %p191
      %s194 = sadd.s32 %s193, 1
      %p197 = scmp.eq.s32.totalorder %s19, 3
      %p198 = scmp.ne.s32.totalorder %s193, %s195
      %p199 = scmp.eq.s32.totalorder %s19, 0
      %p200 = por %p198, %p199
      %p201 = scmp.ne.s32.totalorder %s193, %s195
      %p202 = scmp.eq.s32.totalorder %s24, 3
      %p203 = por %p201, %p202
      %p204 = scmp.ne.s32.totalorder %s195, %s196
      %p205 = scmp.eq.s32.totalorder %s24, 0
      %p206 = por %p204, %p205
      %p207 = scmp.ne.s32.totalorder %s195, %s196
      %p208 = scmp.eq.s32.totalorder %s25, 3
      %p209 = por %p207, %p208
      %p211 = scmp.ne.s32.totalorder %s196, %s210
      %p212 = scmp.eq.s32.totalorder %s25, 0
      %p213 = por %p211, %p212
      %s215 = sadd.s32 %s214, 1
      %p218 = scmp.eq.s32.totalorder %s19, 3
      %p219 = scmp.ne.s32.totalorder %s214, %s216
      %p220 = scmp.eq.s32.totalorder %s19, 0
      %p221 = por %p219, %p220
      %p222 = scmp.ne.s32.totalorder %s214, %s216
      %p223 = scmp.eq.s32.totalorder %s24, 3
      %p224 = por %p222, %p223
      %p225 = scmp.ne.s32.totalorder %s216, %s217
      %p226 = scmp.eq.s32.totalorder %s24, 0
      %p227 = por %p225, %p226
      %p228 = scmp.ne.s32.totalorder %s216, %s217
      %p229 = scmp.eq.s32.totalorder %s25, 3
      %p230 = por %p228, %p229
      %p232 = scmp.ne.s32.totalorder %s217, %s231
      %p233 = scmp.eq.s32.totalorder %s25, 0
      %p234 = por %p232, %p233
      %s236 = sadd.s32 %s235, 1
      %p239 = scmp.eq.s32.totalorder %s19, 3
      %p240 = scmp.ne.s32.totalorder %s235, %s237
      %p241 = scmp.eq.s32.totalorder %s19, 0
      %p242 = por %p240, %p241
      %p243 = scmp.ne.s32.totalorder %s235, %s237
      %p244 = scmp.eq.s32.totalorder %s24, 3
      %p245 = por %p243, %p244
      %p246 = scmp.ne.s32.totalorder %s237, %s238
      %p247 = scmp.eq.s32.totalorder %s24, 0
      %p248 = por %p246, %p247
      %p249 = scmp.ne.s32.totalorder %s237, %s238
      %p250 = scmp.eq.s32.totalorder %s25, 3
      %p251 = por %p249, %p250
      %p253 = scmp.ne.s32.totalorder %s238, %s252
      %p254 = scmp.eq.s32.totalorder %s25, 0
      %p255 = por %p253, %p254
      %s256 = ssub.s32 %s26, %s38
      %p257 = scmp.eq.s32.totalorder %s256, 0
      %s259 = sadd.s32 %s258, 1
      %s260 = scalar_select %p257, %s258, %s259
      %p263 = pneg %p257
      %p264 = scmp.eq.s32.totalorder %s19, 3
      %p265 = por %p263, %p264
      %p266 = scmp.ne.s32.totalorder %s258, %s261
      %p267 = scmp.eq.s32.totalorder %s19, 0
      %p268 = por %p266, %p267
      %p269 = scmp.ne.s32.totalorder %s258, %s261
      %p270 = scmp.eq.s32.totalorder %s24, 3
      %p271 = por %p269, %p270
      %p272 = scmp.ne.s32.totalorder %s261, %s262
      %p273 = scmp.eq.s32.totalorder %s24, 0
      %p274 = por %p272, %p273
      %p275 = scmp.ne.s32.totalorder %s261, %s262
      %p276 = scmp.eq.s32.totalorder %s25, 3
      %p277 = por %p275, %p276
      %p279 = scmp.ne.s32.totalorder %s262, %s278
      %p280 = scmp.eq.s32.totalorder %s25, 0
      %p281 = por %p279, %p280
      %p282 = scmp.le.s32.totalorder 1, %s19
      %p283 = scmp.lt.s32.totalorder %s19, 5
      %p284 = pnand %p282, %p283
      %p285 = pneg %p284
      // Predicated region
      $region9: #{tpu_custom_call.1} parent=5 // pred_check
        _
      $region10: #{tpu_custom_call.1} parent=5 // pred_check_branch
        %287 = sbr.rel (%p284) target = $region12
      $region11: #{tpu_custom_call.1} parent=5 // pred_region
        %s288 = ssub.s32 %s19, 1
        // Predicated region
        $region13: #{tpu_custom_call.1} parent=11 // pred_check
          %p289 = pneg %p80
        $region14: #{tpu_custom_call.1} parent=11 // pred_check_branch
          %291 = sbr.rel (%p289) target = $region16
        $region15: #{tpu_custom_call.1} parent=11 // pred_region
          _
        $region16: #{tpu_custom_call.1} parent=11 // pred_fallthru
          _
        // Predicated region
        $region17: #{tpu_custom_call.1} parent=11 // pred_check
          %p292 = pneg %p101
        $region18: #{tpu_custom_call.1} parent=11 // pred_check_branch
          %294 = sbr.rel (%p292) target = $region20
        $region19: #{tpu_custom_call.1} parent=11 // pred_region
          _
        $region20: #{tpu_custom_call.1} parent=11 // pred_fallthru
          _
        // Predicated region
        $region21: #{tpu_custom_call.1} parent=11 // pred_check
          %p295 = pneg %p122
        $region22: #{tpu_custom_call.1} parent=11 // pred_check_branch
          %297 = sbr.rel (%p295) target = $region24
        $region23: #{tpu_custom_call.1} parent=11 // pred_region
          _
        $region24: #{tpu_custom_call.1} parent=11 // pred_fallthru
          _
        // Predicated region
        $region25: #{tpu_custom_call.1} parent=11 // pred_check
          %p298 = pneg %p143
        $region26: #{tpu_custom_call.1} parent=11 // pred_check_branch
          %300 = sbr.rel (%p298) target = $region28
        $region27: #{tpu_custom_call.1} parent=11 // pred_region
          _
        $region28: #{tpu_custom_call.1} parent=11 // pred_fallthru
          _
        // Predicated region
        $region29: #{tpu_custom_call.1} parent=11 // pred_check
          %p301 = pneg %p164
        $region30: #{tpu_custom_call.1} parent=11 // pred_check_branch
          %303 = sbr.rel (%p301) target = $region32
        $region31: #{tpu_custom_call.1} parent=11 // pred_region
          _
        $region32: #{tpu_custom_call.1} parent=11 // pred_fallthru
          _
        // Predicated region
        $region33: #{tpu_custom_call.1} parent=11 // pred_check
          %p304 = pneg %p185
        $region34: #{tpu_custom_call.1} parent=11 // pred_check_branch
          %306 = sbr.rel (%p304) target = $region36
        $region35: #{tpu_custom_call.1} parent=11 // pred_region
          _
        $region36: #{tpu_custom_call.1} parent=11 // pred_fallthru
          _
        // Predicated region
        $region37: #{tpu_custom_call.1} parent=11 // pred_check
          %p307 = pneg %p206
        $region38: #{tpu_custom_call.1} parent=11 // pred_check_branch
          %309 = sbr.rel (%p307) target = $region40
        $region39: #{tpu_custom_call.1} parent=11 // pred_region
          _
        $region40: #{tpu_custom_call.1} parent=11 // pred_fallthru
          _
        // Predicated region
        $region41: #{tpu_custom_call.1} parent=11 // pred_check
          %p310 = pneg %p227
        $region42: #{tpu_custom_call.1} parent=11 // pred_check_branch
          %312 = sbr.rel (%p310) target = $region44
        $region43: #{tpu_custom_call.1} parent=11 // pred_region
          _
        $region44: #{tpu_custom_call.1} parent=11 // pred_fallthru
          _
        // Predicated region
        $region45: #{tpu_custom_call.1} parent=11 // pred_check
          %p313 = pneg %p248
        $region46: #{tpu_custom_call.1} parent=11 // pred_check_branch
          %315 = sbr.rel (%p313) target = $region48
        $region47: #{tpu_custom_call.1} parent=11 // pred_region
          _
        $region48: #{tpu_custom_call.1} parent=11 // pred_fallthru
          _
      $region12: #{tpu_custom_call.1} parent=5 // pred_fallthru
        _
      %p316 = scmp.lt.s32.totalorder %s19, 4
      // Predicated region
      $region49: #{tpu_custom_call.1} parent=5 // pred_check
        %p317 = pneg %p316
      $region50: #{tpu_custom_call.1} parent=5 // pred_check_branch
        %319 = sbr.rel (%p317) target = $region52
      $region51: #{tpu_custom_call.1} parent=5 // pred_region
        // Predicated region
        $region53: #{tpu_custom_call.1} parent=51 // pred_check
          %p320 = pneg %p53
        $region54: #{tpu_custom_call.1} parent=51 // pred_check_branch
          %322 = sbr.rel (%p320) target = $region56
        $region55: #{tpu_custom_call.1} parent=51 // pred_region
          %s323 = sand.u32 %s43, 1
          %s324 = sand.u32 %s43, 1
          %s325 = smul.addr %s324, 256
          %s326 = scalar_lea.vmem [#allocation3], %s325
          %s327 = smul.u32 16, %s26
          %s328 = smul.u32 4, %s27
          %s329 = smul.addr %s327, 8
          %s330 = sadd.s32 %s328, %s329
          %s331 = smul.addr %s330, 4
          %s332 = scalar_lea.vmem %s0, %s331
          // Predicated region
          $region57: #{tpu_custom_call.1} parent=55 // pred_check
            _
          $region58: #{tpu_custom_call.1} parent=55 // pred_check_branch
            %334 = sbr.rel (0) target = $region60
          $region59: #{tpu_custom_call.1} parent=55 // pred_region
            // Predicated region
            $region61: #{tpu_custom_call.1} parent=59 // pred_check
              _
            $region62: #{tpu_custom_call.1} parent=59 // pred_check_branch
              %336 = sbr.rel target = $region64
            $region63: #{tpu_custom_call.1} parent=59 // pred_region
              // Predicated region
              $region76: #{tpu_custom_call.1} parent=63 // pred_check
                _
              $region77: #{tpu_custom_call.1} parent=63 // pred_check_branch
                %478 = sbr.rel (0) target = $region79
              $region78: #{tpu_custom_call.1} parent=63 // pred_region
                loop: start=0, step=1, limit=1
                $region80: #{tpu_custom_call.1} parent=78 // loop_pre_header
                  _
                $region81: #{tpu_custom_call.1} parent=78 // loop_header
                  %s480 = sphi 0, %s484
                  %p481 = scmp.ge.s32.totalorder %s480, 1
                  %s485 = sphi %s332, %s332
                  %s486 = sphi %s326, %s326
                $region82: #{tpu_custom_call.1} parent=78 // loop_header_branch
                  %483 = sbr.rel (%p481) target = $region86
                $region83: #{tpu_custom_call.1} parent=78 // loop_body
                  _
                $region84: #{tpu_custom_call.1} parent=78 // loop_footer
                  %s484 = sadd.s32 1, %s480
                $region85: #{tpu_custom_call.1} parent=78 // loop_footer_branch
                  %479 = sbr.rel target = $region81
                $region86: #{tpu_custom_call.1} parent=78 // loop_exit
                  _
                %s488 = ssub.s32 16, 1
                loop: start=0, step=1, limit=1
                $region87: #{tpu_custom_call.1} parent=78 // loop_pre_header
                  _
                $region88: #{tpu_custom_call.1} parent=78 // loop_header
                  %s490 = sphi 0, %s494
                  %p491 = scmp.ge.s32.totalorder %s490, 1
                  %s495 = sphi %s332, %s332
                  %s496 = sphi %s326, %s326
                $region89: #{tpu_custom_call.1} parent=78 // loop_header_branch
                  %493 = sbr.rel (%p491) target = $region93
                $region90: #{tpu_custom_call.1} parent=78 // loop_body
                  %v497 = vld [vmem:[%s495] sm:%s488]
                  %498 = vst [vmem:[%s496] sm:%s488] %v497
                  %v499 = vld [vmem:[%s495 + $0x4] sm:%s488]
                  %500 = vst [vmem:[%s496 + $0x4] sm:%s488] %v499
                  %v501 = vld [vmem:[%s495 + $0x8] sm:%s488]
                  %502 = vst [vmem:[%s496 + $0x8] sm:%s488] %v501
                  %v503 = vld [vmem:[%s495 + $0xc] sm:%s488]
                  %504 = vst [vmem:[%s496 + $0xc] sm:%s488] %v503
                  %v505 = vld [vmem:[%s495 + $0x20] sm:%s488]
                  %506 = vst [vmem:[%s496 + $0x10] sm:%s488] %v505
                  %v507 = vld [vmem:[%s495 + $0x24] sm:%s488]
                  %508 = vst [vmem:[%s496 + $0x14] sm:%s488] %v507
                  %v509 = vld [vmem:[%s495 + $0x28] sm:%s488]
                  %510 = vst [vmem:[%s496 + $0x18] sm:%s488] %v509
                  %v511 = vld [vmem:[%s495 + $0x2c] sm:%s488]
                  %512 = vst [vmem:[%s496 + $0x1c] sm:%s488] %v511
                  %v513 = vld [vmem:[%s495 + $0x40] sm:%s488]
                  %514 = vst [vmem:[%s496 + $0x20] sm:%s488] %v513
                  %v515 = vld [vmem:[%s495 + $0x44] sm:%s488]
                  %516 = vst [vmem:[%s496 + $0x24] sm:%s488] %v515
                  %v517 = vld [vmem:[%s495 + $0x48] sm:%s488]
                  %518 = vst [vmem:[%s496 + $0x28] sm:%s488] %v517
                  %v519 = vld [vmem:[%s495 + $0x4c] sm:%s488]
                  %520 = vst [vmem:[%s496 + $0x2c] sm:%s488] %v519
                  %v521 = vld [vmem:[%s495 + $0x60] sm:%s488]
                  %522 = vst [vmem:[%s496 + $0x30] sm:%s488] %v521
                  %v523 = vld [vmem:[%s495 + $0x64] sm:%s488]
                  %524 = vst [vmem:[%s496 + $0x34] sm:%s488] %v523
                  %v525 = vld [vmem:[%s495 + $0x68] sm:%s488]
                  %526 = vst [vmem:[%s496 + $0x38] sm:%s488] %v525
                  %v527 = vld [vmem:[%s495 + $0x6c] sm:%s488]
                  %528 = vst [vmem:[%s496 + $0x3c] sm:%s488] %v527
                  %v529 = vld [vmem:[%s495 + $0x80] sm:%s488]
                  %530 = vst [vmem:[%s496 + $0x40] sm:%s488] %v529
                  %v531 = vld [vmem:[%s495 + $0x84] sm:%s488]
                  %532 = vst [vmem:[%s496 + $0x44] sm:%s488] %v531
                  %v533 = vld [vmem:[%s495 + $0x88] sm:%s488]
                  %534 = vst [vmem:[%s496 + $0x48] sm:%s488] %v533
                  %v535 = vld [vmem:[%s495 + $0x8c] sm:%s488]
                  %536 = vst [vmem:[%s496 + $0x4c] sm:%s488] %v535
                  %v537 = vld [vmem:[%s495 + $0xa0] sm:%s488]
                  %538 = vst [vmem:[%s496 + $0x50] sm:%s488] %v537
                  %v539 = vld [vmem:[%s495 + $0xa4] sm:%s488]
                  %540 = vst [vmem:[%s496 + $0x54] sm:%s488] %v539
                  %v541 = vld [vmem:[%s495 + $0xa8] sm:%s488]
                  %542 = vst [vmem:[%s496 + $0x58] sm:%s488] %v541
                  %v543 = vld [vmem:[%s495 + $0xac] sm:%s488]
                  %544 = vst [vmem:[%s496 + $0x5c] sm:%s488] %v543
                  %v545 = vld [vmem:[%s495 + $0xc0] sm:%s488]
                  %546 = vst [vmem:[%s496 + $0x60] sm:%s488] %v545
                  %v547 = vld [vmem:[%s495 + $0xc4] sm:%s488]
                  %548 = vst [vmem:[%s496 + $0x64] sm:%s488] %v547
                  %v549 = vld [vmem:[%s495 + $0xc8] sm:%s488]
                  %550 = vst [vmem:[%s496 + $0x68] sm:%s488] %v549
                  %v551 = vld [vmem:[%s495 + $0xcc] sm:%s488]
                  %552 = vst [vmem:[%s496 + $0x6c] sm:%s488] %v551
                  %v553 = vld [vmem:[%s495 + $0xe0] sm:%s488]
                  %554 = vst [vmem:[%s496 + $0x70] sm:%s488] %v553
                  %v555 = vld [vmem:[%s495 + $0xe4] sm:%s488]
                  %556 = vst [vmem:[%s496 + $0x74] sm:%s488] %v555
                  %v557 = vld [vmem:[%s495 + $0xe8] sm:%s488]
                  %558 = vst [vmem:[%s496 + $0x78] sm:%s488] %v557
                  %v559 = vld [vmem:[%s495 + $0xec] sm:%s488]
                  %560 = vst [vmem:[%s496 + $0x7c] sm:%s488] %v559
                  %v561 = vld [vmem:[%s495 + $0x100] sm:%s488]
                  %562 = vst [vmem:[%s496 + $0x80] sm:%s488] %v561
                  %v563 = vld [vmem:[%s495 + $0x104] sm:%s488]
                  %564 = vst [vmem:[%s496 + $0x84] sm:%s488] %v563
                  %v565 = vld [vmem:[%s495 + $0x108] sm:%s488]
                  %566 = vst [vmem:[%s496 + $0x88] sm:%s488] %v565
                  %v567 = vld [vmem:[%s495 + $0x10c] sm:%s488]
                  %568 = vst [vmem:[%s496 + $0x8c] sm:%s488] %v567
                  %v569 = vld [vmem:[%s495 + $0x120] sm:%s488]
                  %570 = vst [vmem:[%s496 + $0x90] sm:%s488] %v569
                  %v571 = vld [vmem:[%s495 + $0x124] sm:%s488]
                  %572 = vst [vmem:[%s496 + $0x94] sm:%s488] %v571
                  %v573 = vld [vmem:[%s495 + $0x128] sm:%s488]
                  %574 = vst [vmem:[%s496 + $0x98] sm:%s488] %v573
                  %v575 = vld [vmem:[%s495 + $0x12c] sm:%s488]
                  %576 = vst [vmem:[%s496 + $0x9c] sm:%s488] %v575
                  %v577 = vld [vmem:[%s495 + $0x140] sm:%s488]
                  %578 = vst [vmem:[%s496 + $0xa0] sm:%s488] %v577
                  %v579 = vld [vmem:[%s495 + $0x144] sm:%s488]
                  %580 = vst [vmem:[%s496 + $0xa4] sm:%s488] %v579
                  %v581 = vld [vmem:[%s495 + $0x148] sm:%s488]
                  %582 = vst [vmem:[%s496 + $0xa8] sm:%s488] %v581
                  %v583 = vld [vmem:[%s495 + $0x14c] sm:%s488]
                  %584 = vst [vmem:[%s496 + $0xac] sm:%s488] %v583
                  %v585 = vld [vmem:[%s495 + $0x160] sm:%s488]
                  %586 = vst [vmem:[%s496 + $0xb0] sm:%s488] %v585
                  %v587 = vld [vmem:[%s495 + $0x164] sm:%s488]
                  %588 = vst [vmem:[%s496 + $0xb4] sm:%s488] %v587
                  %v589 = vld [vmem:[%s495 + $0x168] sm:%s488]
                  %590 = vst [vmem:[%s496 + $0xb8] sm:%s488] %v589
                  %v591 = vld [vmem:[%s495 + $0x16c] sm:%s488]
                  %592 = vst [vmem:[%s496 + $0xbc] sm:%s488] %v591
                  %v593 = vld [vmem:[%s495 + $0x180] sm:%s488]
                  %594 = vst [vmem:[%s496 + $0xc0] sm:%s488] %v593
                  %v595 = vld [vmem:[%s495 + $0x184] sm:%s488]
                  %596 = vst [vmem:[%s496 + $0xc4] sm:%s488] %v595
                  %v597 = vld [vmem:[%s495 + $0x188] sm:%s488]
                  %598 = vst [vmem:[%s496 + $0xc8] sm:%s488] %v597
                  %v599 = vld [vmem:[%s495 + $0x18c] sm:%s488]
                  %600 = vst [vmem:[%s496 + $0xcc] sm:%s488] %v599
                  %v601 = vld [vmem:[%s495 + $0x1a0] sm:%s488]
                  %602 = vst [vmem:[%s496 + $0xd0] sm:%s488] %v601
                  %v603 = vld [vmem:[%s495 + $0x1a4] sm:%s488]
                  %604 = vst [vmem:[%s496 + $0xd4] sm:%s488] %v603
                  %v605 = vld [vmem:[%s495 + $0x1a8] sm:%s488]
                  %606 = vst [vmem:[%s496 + $0xd8] sm:%s488] %v605
                  %v607 = vld [vmem:[%s495 + $0x1ac] sm:%s488]
                  %608 = vst [vmem:[%s496 + $0xdc] sm:%s488] %v607
                  %v609 = vld [vmem:[%s495 + $0x1c0] sm:%s488]
                  %610 = vst [vmem:[%s496 + $0xe0] sm:%s488] %v609
                  %v611 = vld [vmem:[%s495 + $0x1c4] sm:%s488]
                  %612 = vst [vmem:[%s496 + $0xe4] sm:%s488] %v611
                  %v613 = vld [vmem:[%s495 + $0x1c8] sm:%s488]
                  %614 = vst [vmem:[%s496 + $0xe8] sm:%s488] %v613
                  %v615 = vld [vmem:[%s495 + $0x1cc] sm:%s488]
                  %616 = vst [vmem:[%s496 + $0xec] sm:%s488] %v615
                  %v617 = vld [vmem:[%s495 + $0x1e0] sm:%s488]
                  %618 = vst [vmem:[%s496 + $0xf0] sm:%s488] %v617
                  %v619 = vld [vmem:[%s495 + $0x1e4] sm:%s488]
                  %620 = vst [vmem:[%s496 + $0xf4] sm:%s488] %v619
                  %v621 = vld [vmem:[%s495 + $0x1e8] sm:%s488]
                  %622 = vst [vmem:[%s496 + $0xf8] sm:%s488] %v621
                  %v623 = vld [vmem:[%s495 + $0x1ec] sm:%s488]
                  %624 = vst [vmem:[%s496 + $0xfc] sm:%s488] %v623
                $region91: #{tpu_custom_call.1} parent=78 // loop_footer
                  %s494 = sadd.s32 1, %s490
                $region92: #{tpu_custom_call.1} parent=78 // loop_footer_branch
                  %489 = sbr.rel target = $region88
                $region93: #{tpu_custom_call.1} parent=78 // loop_exit
                  _
              $region79: #{tpu_custom_call.1} parent=63 // pred_fallthru
                _
            $region64: #{tpu_custom_call.1} parent=59 // pred_fallthru
              _
            // Predicated region
            $region65: #{tpu_custom_call.1} parent=59 // pred_check
              _
            $region66: #{tpu_custom_call.1} parent=59 // pred_check_branch
              %338 = sbr.rel (0) target = $region68
            $region67: #{tpu_custom_call.1} parent=59 // pred_region
              %s340 = ssub.s32 16, 1
              loop: start=0, step=1, limit=1
              $region69: #{tpu_custom_call.1} parent=67 // loop_pre_header
                _
              $region70: #{tpu_custom_call.1} parent=67 // loop_header
                %s342 = sphi 0, %s346
                %p343 = scmp.ge.s32.totalorder %s342, 1
                %s347 = sphi %s332, %s332
                %s348 = sphi %s326, %s326
              $region71: #{tpu_custom_call.1} parent=67 // loop_header_branch
                %345 = sbr.rel (%p343) target = $region75
              $region72: #{tpu_custom_call.1} parent=67 // loop_body
                %v349 = vld [vmem:[%s347] sm:%s340]
                %350 = vst [vmem:[%s348] sm:%s340] %v349
                %v351 = vld [vmem:[%s347 + $0x4] sm:%s340]
                %352 = vst [vmem:[%s348 + $0x4] sm:%s340] %v351
                %v353 = vld [vmem:[%s347 + $0x8] sm:%s340]
                %354 = vst [vmem:[%s348 + $0x8] sm:%s340] %v353
                %v355 = vld [vmem:[%s347 + $0xc] sm:%s340]
                %356 = vst [vmem:[%s348 + $0xc] sm:%s340] %v355
                %v357 = vld [vmem:[%s347 + $0x20] sm:%s340]
                %358 = vst [vmem:[%s348 + $0x10] sm:%s340] %v357
                %v359 = vld [vmem:[%s347 + $0x24] sm:%s340]
                %360 = vst [vmem:[%s348 + $0x14] sm:%s340] %v359
                %v361 = vld [vmem:[%s347 + $0x28] sm:%s340]
                %362 = vst [vmem:[%s348 + $0x18] sm:%s340] %v361
                %v363 = vld [vmem:[%s347 + $0x2c] sm:%s340]
                %364 = vst [vmem:[%s348 + $0x1c] sm:%s340] %v363
                %v365 = vld [vmem:[%s347 + $0x40] sm:%s340]
                %366 = vst [vmem:[%s348 + $0x20] sm:%s340] %v365
                %v367 = vld [vmem:[%s347 + $0x44] sm:%s340]
                %368 = vst [vmem:[%s348 + $0x24] sm:%s340] %v367
                %v369 = vld [vmem:[%s347 + $0x48] sm:%s340]
                %370 = vst [vmem:[%s348 + $0x28] sm:%s340] %v369
                %v371 = vld [vmem:[%s347 + $0x4c] sm:%s340]
                %372 = vst [vmem:[%s348 + $0x2c] sm:%s340] %v371
                %v373 = vld [vmem:[%s347 + $0x60] sm:%s340]
                %374 = vst [vmem:[%s348 + $0x30] sm:%s340] %v373
                %v375 = vld [vmem:[%s347 + $0x64] sm:%s340]
                %376 = vst [vmem:[%s348 + $0x34] sm:%s340] %v375
                %v377 = vld [vmem:[%s347 + $0x68] sm:%s340]
                %378 = vst [vmem:[%s348 + $0x38] sm:%s340] %v377
                %v379 = vld [vmem:[%s347 + $0x6c] sm:%s340]
                %380 = vst [vmem:[%s348 + $0x3c] sm:%s340] %v379
                %v381 = vld [vmem:[%s347 + $0x80] sm:%s340]
                %382 = vst [vmem:[%s348 + $0x40] sm:%s340] %v381
                %v383 = vld [vmem:[%s347 + $0x84] sm:%s340]
                %384 = vst [vmem:[%s348 + $0x44] sm:%s340] %v383
                %v385 = vld [vmem:[%s347 + $0x88] sm:%s340]
                %386 = vst [vmem:[%s348 + $0x48] sm:%s340] %v385
                %v387 = vld [vmem:[%s347 + $0x8c] sm:%s340]
                %388 = vst [vmem:[%s348 + $0x4c] sm:%s340] %v387
                %v389 = vld [vmem:[%s347 + $0xa0] sm:%s340]
                %390 = vst [vmem:[%s348 + $0x50] sm:%s340] %v389
                %v391 = vld [vmem:[%s347 + $0xa4] sm:%s340]
                %392 = vst [vmem:[%s348 + $0x54] sm:%s340] %v391
                %v393 = vld [vmem:[%s347 + $0xa8] sm:%s340]
                %394 = vst [vmem:[%s348 + $0x58] sm:%s340] %v393
                %v395 = vld [vmem:[%s347 + $0xac] sm:%s340]
                %396 = vst [vmem:[%s348 + $0x5c] sm:%s340] %v395
                %v397 = vld [vmem:[%s347 + $0xc0] sm:%s340]
                %398 = vst [vmem:[%s348 + $0x60] sm:%s340] %v397
                %v399 = vld [vmem:[%s347 + $0xc4] sm:%s340]
                %400 = vst [vmem:[%s348 + $0x64] sm:%s340] %v399
                %v401 = vld [vmem:[%s347 + $0xc8] sm:%s340]
                %402 = vst [vmem:[%s348 + $0x68] sm:%s340] %v401
                %v403 = vld [vmem:[%s347 + $0xcc] sm:%s340]
                %404 = vst [vmem:[%s348 + $0x6c] sm:%s340] %v403
                %v405 = vld [vmem:[%s347 + $0xe0] sm:%s340]
                %406 = vst [vmem:[%s348 + $0x70] sm:%s340] %v405
                %v407 = vld [vmem:[%s347 + $0xe4] sm:%s340]
                %408 = vst [vmem:[%s348 + $0x74] sm:%s340] %v407
                %v409 = vld [vmem:[%s347 + $0xe8] sm:%s340]
                %410 = vst [vmem:[%s348 + $0x78] sm:%s340] %v409
                %v411 = vld [vmem:[%s347 + $0xec] sm:%s340]
                %412 = vst [vmem:[%s348 + $0x7c] sm:%s340] %v411
                %v413 = vld [vmem:[%s347 + $0x100] sm:%s340]
                %414 = vst [vmem:[%s348 + $0x80] sm:%s340] %v413
                %v415 = vld [vmem:[%s347 + $0x104] sm:%s340]
                %416 = vst [vmem:[%s348 + $0x84] sm:%s340] %v415
                %v417 = vld [vmem:[%s347 + $0x108] sm:%s340]
                %418 = vst [vmem:[%s348 + $0x88] sm:%s340] %v417
                %v419 = vld [vmem:[%s347 + $0x10c] sm:%s340]
                %420 = vst [vmem:[%s348 + $0x8c] sm:%s340] %v419
                %v421 = vld [vmem:[%s347 + $0x120] sm:%s340]
                %422 = vst [vmem:[%s348 + $0x90] sm:%s340] %v421
                %v423 = vld [vmem:[%s347 + $0x124] sm:%s340]
                %424 = vst [vmem:[%s348 + $0x94] sm:%s340] %v423
                %v425 = vld [vmem:[%s347 + $0x128] sm:%s340]
                %426 = vst [vmem:[%s348 + $0x98] sm:%s340] %v425
                %v427 = vld [vmem:[%s347 + $0x12c] sm:%s340]
                %428 = vst [vmem:[%s348 + $0x9c] sm:%s340] %v427
                %v429 = vld [vmem:[%s347 + $0x140] sm:%s340]
                %430 = vst [vmem:[%s348 + $0xa0] sm:%s340] %v429
                %v431 = vld [vmem:[%s347 + $0x144] sm:%s340]
                %432 = vst [vmem:[%s348 + $0xa4] sm:%s340] %v431
                %v433 = vld [vmem:[%s347 + $0x148] sm:%s340]
                %434 = vst [vmem:[%s348 + $0xa8] sm:%s340] %v433
                %v435 = vld [vmem:[%s347 + $0x14c] sm:%s340]
                %436 = vst [vmem:[%s348 + $0xac] sm:%s340] %v435
                %v437 = vld [vmem:[%s347 + $0x160] sm:%s340]
                %438 = vst [vmem:[%s348 + $0xb0] sm:%s340] %v437
                %v439 = vld [vmem:[%s347 + $0x164] sm:%s340]
                %440 = vst [vmem:[%s348 + $0xb4] sm:%s340] %v439
                %v441 = vld [vmem:[%s347 + $0x168] sm:%s340]
                %442 = vst [vmem:[%s348 + $0xb8] sm:%s340] %v441
                %v443 = vld [vmem:[%s347 + $0x16c] sm:%s340]
                %444 = vst [vmem:[%s348 + $0xbc] sm:%s340] %v443
                %v445 = vld [vmem:[%s347 + $0x180] sm:%s340]
                %446 = vst [vmem:[%s348 + $0xc0] sm:%s340] %v445
                %v447 = vld [vmem:[%s347 + $0x184] sm:%s340]
                %448 = vst [vmem:[%s348 + $0xc4] sm:%s340] %v447
                %v449 = vld [vmem:[%s347 + $0x188] sm:%s340]
                %450 = vst [vmem:[%s348 + $0xc8] sm:%s340] %v449
                %v451 = vld [vmem:[%s347 + $0x18c] sm:%s340]
                %452 = vst [vmem:[%s348 + $0xcc] sm:%s340] %v451
                %v453 = vld [vmem:[%s347 + $0x1a0] sm:%s340]
                %454 = vst [vmem:[%s348 + $0xd0] sm:%s340] %v453
                %v455 = vld [vmem:[%s347 + $0x1a4] sm:%s340]
                %456 = vst [vmem:[%s348 + $0xd4] sm:%s340] %v455
                %v457 = vld [vmem:[%s347 + $0x1a8] sm:%s340]
                %458 = vst [vmem:[%s348 + $0xd8] sm:%s340] %v457
                %v459 = vld [vmem:[%s347 + $0x1ac] sm:%s340]
                %460 = vst [vmem:[%s348 + $0xdc] sm:%s340] %v459
                %v461 = vld [vmem:[%s347 + $0x1c0] sm:%s340]
                %462 = vst [vmem:[%s348 + $0xe0] sm:%s340] %v461
                %v463 = vld [vmem:[%s347 + $0x1c4] sm:%s340]
                %464 = vst [vmem:[%s348 + $0xe4] sm:%s340] %v463
                %v465 = vld [vmem:[%s347 + $0x1c8] sm:%s340]
                %466 = vst [vmem:[%s348 + $0xe8] sm:%s340] %v465
                %v467 = vld [vmem:[%s347 + $0x1cc] sm:%s340]
                %468 = vst [vmem:[%s348 + $0xec] sm:%s340] %v467
                %v469 = vld [vmem:[%s347 + $0x1e0] sm:%s340]
                %470 = vst [vmem:[%s348 + $0xf0] sm:%s340] %v469
                %v471 = vld [vmem:[%s347 + $0x1e4] sm:%s340]
                %472 = vst [vmem:[%s348 + $0xf4] sm:%s340] %v471
                %v473 = vld [vmem:[%s347 + $0x1e8] sm:%s340]
                %474 = vst [vmem:[%s348 + $0xf8] sm:%s340] %v473
                %v475 = vld [vmem:[%s347 + $0x1ec] sm:%s340]
                %476 = vst [vmem:[%s348 + $0xfc] sm:%s340] %v475
              $region73: #{tpu_custom_call.1} parent=67 // loop_footer
                %s346 = sadd.s32 1, %s342
              $region74: #{tpu_custom_call.1} parent=67 // loop_footer_branch
                %341 = sbr.rel target = $region70
              $region75: #{tpu_custom_call.1} parent=67 // loop_exit
                _
            $region68: #{tpu_custom_call.1} parent=59 // pred_fallthru
              _
          $region60: #{tpu_custom_call.1} parent=55 // pred_fallthru
            _
          %625 = vnop
        $region56: #{tpu_custom_call.1} parent=51 // pred_fallthru
          _
      $region52: #{tpu_custom_call.1} parent=5 // pred_fallthru
        _
      %p626 = scmp.le.s32.totalorder 1, %s19
      %p627 = scmp.lt.s32.totalorder %s19, 5
      %p628 = pnand %p626, %p627
      %p629 = pneg %p628
      // Predicated region
      $region94: #{tpu_custom_call.1} parent=5 // pred_check
        _
      $region95: #{tpu_custom_call.1} parent=5 // pred_check_branch
        %631 = sbr.rel (%p628) target = $region97
      $region96: #{tpu_custom_call.1} parent=5 // pred_region
        %s632 = ssub.s32 %s19, 1
        %s633 = sand.u32 %s46, 1
        %s634 = sand.u32 %s46, 1
        %s635 = smul.addr %s634, 256
        %s636 = scalar_lea.vmem [#allocation3], %s635
        // Predicated region
        $region98: #{tpu_custom_call.1} parent=96 // pred_check
          %p637 = pneg %p59
        $region99: #{tpu_custom_call.1} parent=96 // pred_check_branch
          %639 = sbr.rel (%p637) target = $region101
        $region100: #{tpu_custom_call.1} parent=96 // pred_region
          _
        $region101: #{tpu_custom_call.1} parent=96 // pred_fallthru
          _
        %s640 = sand.u32 %s46, 1
        %s641 = sand.u32 %s46, 1
        %s642 = smul.addr %s641, 256
        %s643 = scalar_lea.vmem [#allocation3], %s642
        %p644 = pneg %p59
        %p645 = pneg %p56
        %p646 = pneg %p80
        %p647 = pneg %p77
        %p648 = pneg %p101
        %p649 = pneg %p98
        %p650 = pneg %p122
        %p651 = pneg %p119
        %p652 = pneg %p143
        %p653 = pneg %p140
        %p654 = pneg %p164
        %p655 = pneg %p161
        %p656 = pneg %p185
        %p657 = pneg %p182
        %p658 = pneg %p206
        %p659 = pneg %p203
        %p660 = pneg %p227
        %p661 = pneg %p224
        %p662 = pneg %p248
        %p663 = pneg %p245
        %p664 = pneg %p274
        %p665 = pneg %p271
        %s666 = sand.u32 %s261, 1
        %s667 = scalar_lea.sflag [#allocation5], %s666
        %s668 = sand.u32 %s261, 1
        %s669 = smul.addr %s668, 16
        %s670 = scalar_lea.vmem [#allocation4], %s669
        %s671 = smul.u32 16, %s28
        %s672 = smul.u32 4, %s29
        %s673 = smul.u32 2, %s28
        %p675 = scmp.eq.s32.totalorder %s29, 0
        // Predicated region
        $region102: #{tpu_custom_call.1} parent=96 // pred_check
          %p676 = pneg %p675
        $region103: #{tpu_custom_call.1} parent=96 // pred_check_branch
          %678 = sbr.rel (%p676) target = $region105
        $region104: #{tpu_custom_call.1} parent=96 // pred_region
          %679 = vst [vmem:[#allocation2] sm:$0xff] -inf
          %680 = vst [vmem:[#allocation2 + $0x8] sm:$0xff] -inf
        $region105: #{tpu_custom_call.1} parent=96 // pred_fallthru
          _
        %v681 = vld [vmem:[%s636] sm:$0xf]
        %v682 = vld [vmem:[%s636 + $0x4] sm:$0xf]
        %v683 = vld [vmem:[%s636 + $0x8] sm:$0xf]
        %v684 = vld [vmem:[%s636 + $0xc] sm:$0xf]
        %v685 = vld [vmem:[%s636 + $0x10] sm:$0xf]
        %v686 = vld [vmem:[%s636 + $0x14] sm:$0xf]
        %v687 = vld [vmem:[%s636 + $0x18] sm:$0xf]
        %v688 = vld [vmem:[%s636 + $0x1c] sm:$0xf]
        %v689 = vld [vmem:[%s636 + $0x20] sm:$0xf]
        %v690 = vld [vmem:[%s636 + $0x24] sm:$0xf]
        %v691 = vld [vmem:[%s636 + $0x28] sm:$0xf]
        %v692 = vld [vmem:[%s636 + $0x2c] sm:$0xf]
        %v693 = vld [vmem:[%s636 + $0x30] sm:$0xf]
        %v694 = vld [vmem:[%s636 + $0x34] sm:$0xf]
        %v695 = vld [vmem:[%s636 + $0x38] sm:$0xf]
        %v696 = vld [vmem:[%s636 + $0x3c] sm:$0xf]
        %v697 = vld [vmem:[%s636 + $0x40] sm:$0xf]
        %v698 = vld [vmem:[%s636 + $0x44] sm:$0xf]
        %v699 = vld [vmem:[%s636 + $0x48] sm:$0xf]
        %v700 = vld [vmem:[%s636 + $0x4c] sm:$0xf]
        %v701 = vld [vmem:[%s636 + $0x50] sm:$0xf]
        %v702 = vld [vmem:[%s636 + $0x54] sm:$0xf]
        %v703 = vld [vmem:[%s636 + $0x58] sm:$0xf]
        %v704 = vld [vmem:[%s636 + $0x5c] sm:$0xf]
        %v705 = vld [vmem:[%s636 + $0x60] sm:$0xf]
        %v706 = vld [vmem:[%s636 + $0x64] sm:$0xf]
        %v707 = vld [vmem:[%s636 + $0x68] sm:$0xf]
        %v708 = vld [vmem:[%s636 + $0x6c] sm:$0xf]
        %v709 = vld [vmem:[%s636 + $0x70] sm:$0xf]
        %v710 = vld [vmem:[%s636 + $0x74] sm:$0xf]
        %v711 = vld [vmem:[%s636 + $0x78] sm:$0xf]
        %v712 = vld [vmem:[%s636 + $0x7c] sm:$0xf]
        %v713 = vld [vmem:[%s636 + $0x80] sm:$0xf]
        %v714 = vld [vmem:[%s636 + $0x84] sm:$0xf]
        %v715 = vld [vmem:[%s636 + $0x88] sm:$0xf]
        %v716 = vld [vmem:[%s636 + $0x8c] sm:$0xf]
        %v717 = vld [vmem:[%s636 + $0x90] sm:$0xf]
        %v718 = vld [vmem:[%s636 + $0x94] sm:$0xf]
        %v719 = vld [vmem:[%s636 + $0x98] sm:$0xf]
        %v720 = vld [vmem:[%s636 + $0x9c] sm:$0xf]
        %v721 = vld [vmem:[%s636 + $0xa0] sm:$0xf]
        %v722 = vld [vmem:[%s636 + $0xa4] sm:$0xf]
        %v723 = vld [vmem:[%s636 + $0xa8] sm:$0xf]
        %v724 = vld [vmem:[%s636 + $0xac] sm:$0xf]
        %v725 = vld [vmem:[%s636 + $0xb0] sm:$0xf]
        %v726 = vld [vmem:[%s636 + $0xb4] sm:$0xf]
        %v727 = vld [vmem:[%s636 + $0xb8] sm:$0xf]
        %v728 = vld [vmem:[%s636 + $0xbc] sm:$0xf]
        %v729 = vld [vmem:[%s636 + $0xc0] sm:$0xf]
        %v730 = vld [vmem:[%s636 + $0xc4] sm:$0xf]
        %v731 = vld [vmem:[%s636 + $0xc8] sm:$0xf]
        %v732 = vld [vmem:[%s636 + $0xcc] sm:$0xf]
        %v733 = vld [vmem:[%s636 + $0xd0] sm:$0xf]
        %v734 = vld [vmem:[%s636 + $0xd4] sm:$0xf]
        %v735 = vld [vmem:[%s636 + $0xd8] sm:$0xf]
        %v736 = vld [vmem:[%s636 + $0xdc] sm:$0xf]
        %v737 = vld [vmem:[%s636 + $0xe0] sm:$0xf]
        %v738 = vld [vmem:[%s636 + $0xe4] sm:$0xf]
        %v739 = vld [vmem:[%s636 + $0xe8] sm:$0xf]
        %v740 = vld [vmem:[%s636 + $0xec] sm:$0xf]
        %v741 = vld [vmem:[%s636 + $0xf0] sm:$0xf]
        %v742 = vld [vmem:[%s636 + $0xf4] sm:$0xf]
        %v743 = vld [vmem:[%s636 + $0xf8] sm:$0xf]
        %v744 = vld [vmem:[%s636 + $0xfc] sm:$0xf]
        %v745 = vld [vmem:[%s1] sm:$0xf]
        %v746 = vld [vmem:[%s9] sm:$0x1]
        %v747 = vperm.slane %v746, 0
        %v812 = vunpack.c.l.b16 %v681
        %v813 = vunpack.c.l.b16 %v682
        %v814 = vunpack.c.l.b16 %v683
        %v815 = vunpack.c.l.b16 %v684
        %v816 = vunpack.c.l.b16 %v685
        %v817 = vunpack.c.l.b16 %v686
        %v818 = vunpack.c.l.b16 %v687
        %v819 = vunpack.c.l.b16 %v688
        %v820 = vunpack.c.l.b16 %v689
        %v821 = vunpack.c.l.b16 %v690
        %v822 = vunpack.c.l.b16 %v691
        %v823 = vunpack.c.l.b16 %v692
        %v824 = vunpack.c.l.b16 %v693
        %v825 = vunpack.c.l.b16 %v694
        %v826 = vunpack.c.l.b16 %v695
        %v827 = vunpack.c.l.b16 %v696
        %v828 = vunpack.c.l.b16 %v697
        %v829 = vunpack.c.l.b16 %v698
        %v830 = vunpack.c.l.b16 %v699
        %v831 = vunpack.c.l.b16 %v700
        %v832 = vunpack.c.l.b16 %v701
        %v833 = vunpack.c.l.b16 %v702
        %v834 = vunpack.c.l.b16 %v703
        %v835 = vunpack.c.l.b16 %v704
        %v836 = vunpack.c.l.b16 %v705
        %v837 = vunpack.c.l.b16 %v706
        %v838 = vunpack.c.l.b16 %v707
        %v839 = vunpack.c.l.b16 %v708
        %v840 = vunpack.c.l.b16 %v709
        %v841 = vunpack.c.l.b16 %v710
        %v842 = vunpack.c.l.b16 %v711
        %v843 = vunpack.c.l.b16 %v712
        %v844 = vunpack.c.l.b16 %v713
        %v845 = vunpack.c.l.b16 %v714
        %v846 = vunpack.c.l.b16 %v715
        %v847 = vunpack.c.l.b16 %v716
        %v848 = vunpack.c.l.b16 %v717
        %v849 = vunpack.c.l.b16 %v718
        %v850 = vunpack.c.l.b16 %v719
        %v851 = vunpack.c.l.b16 %v720
        %v852 = vunpack.c.l.b16 %v721
        %v853 = vunpack.c.l.b16 %v722
        %v854 = vunpack.c.l.b16 %v723
        %v855 = vunpack.c.l.b16 %v724
        %v856 = vunpack.c.l.b16 %v725
        %v857 = vunpack.c.l.b16 %v726
        %v858 = vunpack.c.l.b16 %v727
        %v859 = vunpack.c.l.b16 %v728
        %v860 = vunpack.c.l.b16 %v729
        %v861 = vunpack.c.l.b16 %v730
        %v862 = vunpack.c.l.b16 %v731
        %v863 = vunpack.c.l.b16 %v732
        %v864 = vunpack.c.l.b16 %v733
        %v865 = vunpack.c.l.b16 %v734
        %v866 = vunpack.c.l.b16 %v735
        %v867 = vunpack.c.l.b16 %v736
        %v868 = vunpack.c.l.b16 %v737
        %v869 = vunpack.c.l.b16 %v738
        %v870 = vunpack.c.l.b16 %v739
        %v871 = vunpack.c.l.b16 %v740
        %v872 = vunpack.c.l.b16 %v741
        %v873 = vunpack.c.l.b16 %v742
        %v874 = vunpack.c.l.b16 %v743
        %v875 = vunpack.c.l.b16 %v744
        %v876 = vpack.c.b16 %v813, %v812
        %v877 = vpack.c.b16 %v815, %v814
        %v878 = vpack.c.b16 %v817, %v816
        %v879 = vpack.c.b16 %v819, %v818
        %v880 = vpack.c.b16 %v821, %v820
        %v881 = vpack.c.b16 %v823, %v822
        %v882 = vpack.c.b16 %v825, %v824
        %v883 = vpack.c.b16 %v827, %v826
        %v884 = vpack.c.b16 %v829, %v828
        %v885 = vpack.c.b16 %v831, %v830
        %v886 = vpack.c.b16 %v833, %v832
        %v887 = vpack.c.b16 %v835, %v834
        %v888 = vpack.c.b16 %v837, %v836
        %v889 = vpack.c.b16 %v839, %v838
        %v890 = vpack.c.b16 %v841, %v840
        %v891 = vpack.c.b16 %v843, %v842
        %v892 = vpack.c.b16 %v845, %v844
        %v893 = vpack.c.b16 %v847, %v846
        %v894 = vpack.c.b16 %v849, %v848
        %v895 = vpack.c.b16 %v851, %v850
        %v896 = vpack.c.b16 %v853, %v852
        %v897 = vpack.c.b16 %v855, %v854
        %v898 = vpack.c.b16 %v857, %v856
        %v899 = vpack.c.b16 %v859, %v858
        %v900 = vpack.c.b16 %v861, %v860
        %v901 = vpack.c.b16 %v863, %v862
        %v902 = vpack.c.b16 %v865, %v864
        %v903 = vpack.c.b16 %v867, %v866
        %v904 = vpack.c.b16 %v869, %v868
        %v905 = vpack.c.b16 %v871, %v870
        %v906 = vpack.c.b16 %v873, %v872
        %v907 = vpack.c.b16 %v875, %v874
        %vm908 = vcmask 64512
        %v910 = vsel %vm908, %v876, 0
        %v913 = vsel %vm908, %v877, 0
        %v916 = vsel %vm908, %v878, 0
        %v919 = vsel %vm908, %v879, 0
        %v922 = vsel %vm908, %v880, 0
        %v925 = vsel %vm908, %v881, 0
        %v928 = vsel %vm908, %v882, 0
        %v931 = vsel %vm908, %v883, 0
        %v934 = vsel %vm908, %v884, 0
        %v937 = vsel %vm908, %v885, 0
        %v940 = vsel %vm908, %v886, 0
        %v943 = vsel %vm908, %v887, 0
        %v946 = vsel %vm908, %v888, 0
        %v949 = vsel %vm908, %v889, 0
        %v952 = vsel %vm908, %v890, 0
        %v955 = vsel %vm908, %v891, 0
        %v958 = vsel %vm908, %v892, 0
        %v961 = vsel %vm908, %v893, 0
        %v964 = vsel %vm908, %v894, 0
        %v967 = vsel %vm908, %v895, 0
        %v970 = vsel %vm908, %v896, 0
        %v973 = vsel %vm908, %v897, 0
        %v976 = vsel %vm908, %v898, 0
        %v979 = vsel %vm908, %v899, 0
        %v982 = vsel %vm908, %v900, 0
        %v985 = vsel %vm908, %v901, 0
        %v988 = vsel %vm908, %v902, 0
        %v991 = vsel %vm908, %v903, 0
        %v994 = vsel %vm908, %v904, 0
        %v997 = vsel %vm908, %v905, 0
        %v1000 = vsel %vm908, %v906, 0
        %v1003 = vsel %vm908, %v907, 0
        %vm1005 = vcmask 1043456
        %v1007 = vsel %vm1005, %v745, 0
        %1009 = vmatpush.bf16.msra.mxu0 0
        %1010 = vmatpush.bf16.msra.mxu0 0
        %1011 = vmatpush.bf16.msra.mxu0 0
        %1012 = vmatpush.bf16.msra.mxu0 0
        %1013 = vmatpush.bf16.msra.mxu0 0
        %1014 = vmatpush.bf16.msra.mxu0 0
        %1015 = vmatpush.bf16.msra.mxu0 0
        %1016 = vmatpush.bf16.msra.mxu0 %v1007
        %1017 = vmatmul.bf16.gmra.mxu0 %v910
        %v1018 = vpop.f32.mrf.mxu0
        %v1019 = vadd.f32 %v747, %v1018
        %v1020 = vpop.f32.mrf.mxu0
        %v1021 = vadd.f32 %v747, %v1020
        %1022 = vmatmul.bf16.gmra.mxu0 %v913
        %v1023 = vpop.f32.mrf.mxu0
        %v1024 = vadd.f32 %v747, %v1023
        %v1025 = vpop.f32.mrf.mxu0
        %v1026 = vadd.f32 %v747, %v1025
        %1027 = vmatmul.bf16.gmra.mxu0 %v916
        %v1028 = vpop.f32.mrf.mxu0
        %v1029 = vadd.f32 %v747, %v1028
        %v1030 = vpop.f32.mrf.mxu0
        %v1031 = vadd.f32 %v747, %v1030
        %1032 = vmatmul.bf16.gmra.mxu0 %v919
        %v1033 = vpop.f32.mrf.mxu0
        %v1034 = vadd.f32 %v747, %v1033
        %v1035 = vpop.f32.mrf.mxu0
        %v1036 = vadd.f32 %v747, %v1035
        %1037 = vmatmul.bf16.gmra.mxu0 %v922
        %v1038 = vpop.f32.mrf.mxu0
        %v1039 = vadd.f32 %v747, %v1038
        %v1040 = vpop.f32.mrf.mxu0
        %v1041 = vadd.f32 %v747, %v1040
        %1042 = vmatmul.bf16.gmra.mxu0 %v925
        %v1043 = vpop.f32.mrf.mxu0
        %v1044 = vadd.f32 %v747, %v1043
        %v1045 = vpop.f32.mrf.mxu0
        %v1046 = vadd.f32 %v747, %v1045
        %1047 = vmatmul.bf16.gmra.mxu0 %v928
        %v1048 = vpop.f32.mrf.mxu0
        %v1049 = vadd.f32 %v747, %v1048
        %v1050 = vpop.f32.mrf.mxu0
        %v1051 = vadd.f32 %v747, %v1050
        %1052 = vmatmul.bf16.gmra.mxu0 %v931
        %v1053 = vpop.f32.mrf.mxu0
        %v1054 = vadd.f32 %v747, %v1053
        %v1055 = vpop.f32.mrf.mxu0
        %v1056 = vadd.f32 %v747, %v1055
        %1057 = vmatmul.bf16.gmra.mxu0 %v934
        %v1058 = vpop.f32.mrf.mxu0
        %v1059 = vadd.f32 %v747, %v1058
        %v1060 = vpop.f32.mrf.mxu0
        %v1061 = vadd.f32 %v747, %v1060
        %1062 = vmatmul.bf16.gmra.mxu0 %v937
        %v1063 = vpop.f32.mrf.mxu0
        %v1064 = vadd.f32 %v747, %v1063
        %v1065 = vpop.f32.mrf.mxu0
        %v1066 = vadd.f32 %v747, %v1065
        %1067 = vmatmul.bf16.gmra.mxu0 %v940
        %v1068 = vpop.f32.mrf.mxu0
        %v1069 = vadd.f32 %v747, %v1068
        %v1070 = vpop.f32.mrf.mxu0
        %v1071 = vadd.f32 %v747, %v1070
        %1072 = vmatmul.bf16.gmra.mxu0 %v943
        %v1073 = vpop.f32.mrf.mxu0
        %v1074 = vadd.f32 %v747, %v1073
        %v1075 = vpop.f32.mrf.mxu0
        %v1076 = vadd.f32 %v747, %v1075
        %1077 = vmatmul.bf16.gmra.mxu0 %v946
        %v1078 = vpop.f32.mrf.mxu0
        %v1079 = vadd.f32 %v747, %v1078
        %v1080 = vpop.f32.mrf.mxu0
        %v1081 = vadd.f32 %v747, %v1080
        %1082 = vmatmul.bf16.gmra.mxu0 %v949
        %v1083 = vpop.f32.mrf.mxu0
        %v1084 = vadd.f32 %v747, %v1083
        %v1085 = vpop.f32.mrf.mxu0
        %v1086 = vadd.f32 %v747, %v1085
        %1087 = vmatmul.bf16.gmra.mxu0 %v952
        %v1088 = vpop.f32.mrf.mxu0
        %v1089 = vadd.f32 %v747, %v1088
        %v1090 = vpop.f32.mrf.mxu0
        %v1091 = vadd.f32 %v747, %v1090
        %1092 = vmatmul.bf16.gmra.mxu0 %v955
        %v1093 = vpop.f32.mrf.mxu0
        %v1094 = vadd.f32 %v747, %v1093
        %v1095 = vpop.f32.mrf.mxu0
        %v1096 = vadd.f32 %v747, %v1095
        %1097 = vmatmul.bf16.gmra.mxu0 %v958
        %v1098 = vpop.f32.mrf.mxu0
        %v1099 = vadd.f32 %v747, %v1098
        %v1100 = vpop.f32.mrf.mxu0
        %v1101 = vadd.f32 %v747, %v1100
        %1102 = vmatmul.bf16.gmra.mxu0 %v961
        %v1103 = vpop.f32.mrf.mxu0
        %v1104 = vadd.f32 %v747, %v1103
        %v1105 = vpop.f32.mrf.mxu0
        %v1106 = vadd.f32 %v747, %v1105
        %1107 = vmatmul.bf16.gmra.mxu0 %v964
        %v1108 = vpop.f32.mrf.mxu0
        %v1109 = vadd.f32 %v747, %v1108
        %v1110 = vpop.f32.mrf.mxu0
        %v1111 = vadd.f32 %v747, %v1110
        %1112 = vmatmul.bf16.gmra.mxu0 %v967
        %v1113 = vpop.f32.mrf.mxu0
        %v1114 = vadd.f32 %v747, %v1113
        %v1115 = vpop.f32.mrf.mxu0
        %v1116 = vadd.f32 %v747, %v1115
        %1117 = vmatmul.bf16.gmra.mxu0 %v970
        %v1118 = vpop.f32.mrf.mxu0
        %v1119 = vadd.f32 %v747, %v1118
        %v1120 = vpop.f32.mrf.mxu0
        %v1121 = vadd.f32 %v747, %v1120
        %1122 = vmatmul.bf16.gmra.mxu0 %v973
        %v1123 = vpop.f32.mrf.mxu0
        %v1124 = vadd.f32 %v747, %v1123
        %v1125 = vpop.f32.mrf.mxu0
        %v1126 = vadd.f32 %v747, %v1125
        %1127 = vmatmul.bf16.gmra.mxu0 %v976
        %v1128 = vpop.f32.mrf.mxu0
        %v1129 = vadd.f32 %v747, %v1128
        %v1130 = vpop.f32.mrf.mxu0
        %v1131 = vadd.f32 %v747, %v1130
        %1132 = vmatmul.bf16.gmra.mxu0 %v979
        %v1133 = vpop.f32.mrf.mxu0
        %v1134 = vadd.f32 %v747, %v1133
        %v1135 = vpop.f32.mrf.mxu0
        %v1136 = vadd.f32 %v747, %v1135
        %1137 = vmatmul.bf16.gmra.mxu0 %v982
        %v1138 = vpop.f32.mrf.mxu0
        %v1139 = vadd.f32 %v747, %v1138
        %v1140 = vpop.f32.mrf.mxu0
        %v1141 = vadd.f32 %v747, %v1140
        %1142 = vmatmul.bf16.gmra.mxu0 %v985
        %v1143 = vpop.f32.mrf.mxu0
        %v1144 = vadd.f32 %v747, %v1143
        %v1145 = vpop.f32.mrf.mxu0
        %v1146 = vadd.f32 %v747, %v1145
        %1147 = vmatmul.bf16.gmra.mxu0 %v988
        %v1148 = vpop.f32.mrf.mxu0
        %v1149 = vadd.f32 %v747, %v1148
        %v1150 = vpop.f32.mrf.mxu0
        %v1151 = vadd.f32 %v747, %v1150
        %1152 = vmatmul.bf16.gmra.mxu0 %v991
        %v1153 = vpop.f32.mrf.mxu0
        %v1154 = vadd.f32 %v747, %v1153
        %v1155 = vpop.f32.mrf.mxu0
        %v1156 = vadd.f32 %v747, %v1155
        %1157 = vmatmul.bf16.gmra.mxu0 %v994
        %v1158 = vpop.f32.mrf.mxu0
        %v1159 = vadd.f32 %v747, %v1158
        %v1160 = vpop.f32.mrf.mxu0
        %v1161 = vadd.f32 %v747, %v1160
        %1162 = vmatmul.bf16.gmra.mxu0 %v997
        %v1163 = vpop.f32.mrf.mxu0
        %v1164 = vadd.f32 %v747, %v1163
        %v1165 = vpop.f32.mrf.mxu0
        %v1166 = vadd.f32 %v747, %v1165
        %1167 = vmatmul.bf16.gmra.mxu0 %v1000
        %v1168 = vpop.f32.mrf.mxu0
        %v1169 = vadd.f32 %v747, %v1168
        %v1170 = vpop.f32.mrf.mxu0
        %v1171 = vadd.f32 %v747, %v1170
        %1172 = vmatmul.bf16.gmra.mxu0 %v1003
        %v1173 = vpop.f32.mrf.mxu0
        %v1174 = vadd.f32 %v747, %v1173
        %v1175 = vpop.f32.mrf.mxu0
        %v1176 = vadd.f32 %v747, %v1175
        %1177 = vdwg.mxu0
        %v1178 = vmax.f32 %v1019, 0.0
        %v1179 = vmax.f32 %v1021, 0.0
        %v1180 = vmax.f32 %v1024, 0.0
        %v1181 = vmax.f32 %v1026, 0.0
        %v1182 = vmax.f32 %v1029, 0.0
        %v1183 = vmax.f32 %v1031, 0.0
        %v1184 = vmax.f32 %v1034, 0.0
        %v1185 = vmax.f32 %v1036, 0.0
        %v1186 = vmax.f32 %v1039, 0.0
        %v1187 = vmax.f32 %v1041, 0.0
        %v1188 = vmax.f32 %v1044, 0.0
        %v1189 = vmax.f32 %v1046, 0.0
        %v1190 = vmax.f32 %v1049, 0.0
        %v1191 = vmax.f32 %v1051, 0.0
        %v1192 = vmax.f32 %v1054, 0.0
        %v1193 = vmax.f32 %v1056, 0.0
        %v1194 = vmax.f32 %v1059, 0.0
        %v1195 = vmax.f32 %v1061, 0.0
        %v1196 = vmax.f32 %v1064, 0.0
        %v1197 = vmax.f32 %v1066, 0.0
        %v1198 = vmax.f32 %v1069, 0.0
        %v1199 = vmax.f32 %v1071, 0.0
        %v1200 = vmax.f32 %v1074, 0.0
        %v1201 = vmax.f32 %v1076, 0.0
        %v1202 = vmax.f32 %v1079, 0.0
        %v1203 = vmax.f32 %v1081, 0.0
        %v1204 = vmax.f32 %v1084, 0.0
        %v1205 = vmax.f32 %v1086, 0.0
        %v1206 = vmax.f32 %v1089, 0.0
        %v1207 = vmax.f32 %v1091, 0.0
        %v1208 = vmax.f32 %v1094, 0.0
        %v1209 = vmax.f32 %v1096, 0.0
        %v1210 = vmax.f32 %v1099, 0.0
        %v1211 = vmax.f32 %v1101, 0.0
        %v1212 = vmax.f32 %v1104, 0.0
        %v1213 = vmax.f32 %v1106, 0.0
        %v1214 = vmax.f32 %v1109, 0.0
        %v1215 = vmax.f32 %v1111, 0.0
        %v1216 = vmax.f32 %v1114, 0.0
        %v1217 = vmax.f32 %v1116, 0.0
        %v1218 = vmax.f32 %v1119, 0.0
        %v1219 = vmax.f32 %v1121, 0.0
        %v1220 = vmax.f32 %v1124, 0.0
        %v1221 = vmax.f32 %v1126, 0.0
        %v1222 = vmax.f32 %v1129, 0.0
        %v1223 = vmax.f32 %v1131, 0.0
        %v1224 = vmax.f32 %v1134, 0.0
        %v1225 = vmax.f32 %v1136, 0.0
        %v1226 = vmax.f32 %v1139, 0.0
        %v1227 = vmax.f32 %v1141, 0.0
        %v1228 = vmax.f32 %v1144, 0.0
        %v1229 = vmax.f32 %v1146, 0.0
        %v1230 = vmax.f32 %v1149, 0.0
        %v1231 = vmax.f32 %v1151, 0.0
        %v1232 = vmax.f32 %v1154, 0.0
        %v1233 = vmax.f32 %v1156, 0.0
        %v1234 = vmax.f32 %v1159, 0.0
        %v1235 = vmax.f32 %v1161, 0.0
        %v1236 = vmax.f32 %v1164, 0.0
        %v1237 = vmax.f32 %v1166, 0.0
        %v1238 = vmax.f32 %v1169, 0.0
        %v1239 = vmax.f32 %v1171, 0.0
        %v1240 = vmax.f32 %v1174, 0.0
        %v1241 = vmax.f32 %v1176, 0.0
        %v1242 = vpack.c.bf16 %v1179, %v1178
        %v1243 = vpack.c.bf16 %v1181, %v1180
        %v1244 = vpack.c.bf16 %v1183, %v1182
        %v1245 = vpack.c.bf16 %v1185, %v1184
        %v1246 = vpack.c.bf16 %v1187, %v1186
        %v1247 = vpack.c.bf16 %v1189, %v1188
        %v1248 = vpack.c.bf16 %v1191, %v1190
        %v1249 = vpack.c.bf16 %v1193, %v1192
        %v1250 = vpack.c.bf16 %v1195, %v1194
        %v1251 = vpack.c.bf16 %v1197, %v1196
        %v1252 = vpack.c.bf16 %v1199, %v1198
        %v1253 = vpack.c.bf16 %v1201, %v1200
        %v1254 = vpack.c.bf16 %v1203, %v1202
        %v1255 = vpack.c.bf16 %v1205, %v1204
        %v1256 = vpack.c.bf16 %v1207, %v1206
        %v1257 = vpack.c.bf16 %v1209, %v1208
        %v1258 = vpack.c.bf16 %v1211, %v1210
        %v1259 = vpack.c.bf16 %v1213, %v1212
        %v1260 = vpack.c.bf16 %v1215, %v1214
        %v1261 = vpack.c.bf16 %v1217, %v1216
        %v1262 = vpack.c.bf16 %v1219, %v1218
        %v1263 = vpack.c.bf16 %v1221, %v1220
        %v1264 = vpack.c.bf16 %v1223, %v1222
        %v1265 = vpack.c.bf16 %v1225, %v1224
        %v1266 = vpack.c.bf16 %v1227, %v1226
        %v1267 = vpack.c.bf16 %v1229, %v1228
        %v1268 = vpack.c.bf16 %v1231, %v1230
        %v1269 = vpack.c.bf16 %v1233, %v1232
        %v1270 = vpack.c.bf16 %v1235, %v1234
        %v1271 = vpack.c.bf16 %v1237, %v1236
        %v1272 = vpack.c.bf16 %v1239, %v1238
        %v1273 = vpack.c.bf16 %v1241, %v1240
        %v1274 = vld [vmem:[%s2] sm:$0xf]
        %v1275 = vld [vmem:[%s2 + $0x4] sm:$0xf]
        %v1276 = vld [vmem:[%s2 + $0x8] sm:$0xf]
        %v1277 = vld [vmem:[%s2 + $0xc] sm:$0xf]
        %v1278 = vld [vmem:[%s2 + $0x10] sm:$0xf]
        %v1279 = vld [vmem:[%s2 + $0x14] sm:$0xf]
        %v1280 = vld [vmem:[%s2 + $0x18] sm:$0xf]
        %v1281 = vld [vmem:[%s2 + $0x1c] sm:$0xf]
        %v1282 = vld [vmem:[%s9 + $0x1] sm:$0x1]
        %v1283 = vperm.slane %v1282, 0
        %v1292 = vunpack.c.l.b16 %v1274
        %v1293 = vunpack.c.l.b16 %v1275
        %v1294 = vunpack.c.l.b16 %v1276
        %v1295 = vunpack.c.l.b16 %v1277
        %v1296 = vunpack.c.l.b16 %v1278
        %v1297 = vunpack.c.l.b16 %v1279
        %v1298 = vunpack.c.l.b16 %v1280
        %v1299 = vunpack.c.l.b16 %v1281
        %v1300 = vpack.c.b16 %v1293, %v1292
        %v1301 = vpack.c.b16 %v1295, %v1294
        %v1302 = vpack.c.b16 %v1297, %v1296
        %v1303 = vpack.c.b16 %v1299, %v1298
        %vm1308 = vcmask 523264
        %v1310 = vsel %vm1308, %v1242, 0
        %v1313 = vsel %vm1308, %v1243, 0
        %v1316 = vsel %vm1308, %v1244, 0
        %v1319 = vsel %vm1308, %v1245, 0
        %v1322 = vsel %vm1308, %v1246, 0
        %v1325 = vsel %vm1308, %v1247, 0
        %v1328 = vsel %vm1308, %v1248, 0
        %v1331 = vsel %vm1308, %v1249, 0
        %v1334 = vsel %vm1308, %v1250, 0
        %v1337 = vsel %vm1308, %v1251, 0
        %v1340 = vsel %vm1308, %v1252, 0
        %v1343 = vsel %vm1308, %v1253, 0
        %v1346 = vsel %vm1308, %v1254, 0
        %v1349 = vsel %vm1308, %v1255, 0
        %v1352 = vsel %vm1308, %v1256, 0
        %v1355 = vsel %vm1308, %v1257, 0
        %v1358 = vsel %vm1308, %v1258, 0
        %v1361 = vsel %vm1308, %v1259, 0
        %v1364 = vsel %vm1308, %v1260, 0
        %v1367 = vsel %vm1308, %v1261, 0
        %v1370 = vsel %vm1308, %v1262, 0
        %v1373 = vsel %vm1308, %v1263, 0
        %v1376 = vsel %vm1308, %v1264, 0
        %v1379 = vsel %vm1308, %v1265, 0
        %v1382 = vsel %vm1308, %v1266, 0
        %v1385 = vsel %vm1308, %v1267, 0
        %v1388 = vsel %vm1308, %v1268, 0
        %v1391 = vsel %vm1308, %v1269, 0
        %v1394 = vsel %vm1308, %v1270, 0
        %v1397 = vsel %vm1308, %v1271, 0
        %v1400 = vsel %vm1308, %v1272, 0
        %v1403 = vsel %vm1308, %v1273, 0
        %1405 = vmatpush.bf16.msra.mxu0 0
        %1406 = vmatpush.bf16.msra.mxu0 0
        %1407 = vmatpush.bf16.msra.mxu0 0
        %1408 = vmatpush.bf16.msra.mxu0 0
        %1409 = vmatpush.bf16.msra.mxu0 %v1303
        %1410 = vmatpush.bf16.msra.mxu0 %v1302
        %1411 = vmatpush.bf16.msra.mxu0 %v1301
        %1412 = vmatpush.bf16.msra.mxu0 %v1300
        %1413 = vmatmul.bf16.gmra.mxu0 %v1310
        %v1414 = vpop.f32.mrf.mxu0
        %v1415 = vadd.f32 %v1283, %v1414
        %v1416 = vpop.f32.mrf.mxu0
        %v1417 = vadd.f32 %v1283, %v1416
        %1418 = vmatmul.bf16.gmra.mxu0 %v1313
        %v1419 = vpop.f32.mrf.mxu0
        %v1420 = vadd.f32 %v1283, %v1419
        %v1421 = vpop.f32.mrf.mxu0
        %v1422 = vadd.f32 %v1283, %v1421
        %1423 = vmatmul.bf16.gmra.mxu0 %v1316
        %v1424 = vpop.f32.mrf.mxu0
        %v1425 = vadd.f32 %v1283, %v1424
        %v1426 = vpop.f32.mrf.mxu0
        %v1427 = vadd.f32 %v1283, %v1426
        %1428 = vmatmul.bf16.gmra.mxu0 %v1319
        %v1429 = vpop.f32.mrf.mxu0
        %v1430 = vadd.f32 %v1283, %v1429
        %v1431 = vpop.f32.mrf.mxu0
        %v1432 = vadd.f32 %v1283, %v1431
        %1433 = vmatmul.bf16.gmra.mxu0 %v1322
        %v1434 = vpop.f32.mrf.mxu0
        %v1435 = vadd.f32 %v1283, %v1434
        %v1436 = vpop.f32.mrf.mxu0
        %v1437 = vadd.f32 %v1283, %v1436
        %1438 = vmatmul.bf16.gmra.mxu0 %v1325
        %v1439 = vpop.f32.mrf.mxu0
        %v1440 = vadd.f32 %v1283, %v1439
        %v1441 = vpop.f32.mrf.mxu0
        %v1442 = vadd.f32 %v1283, %v1441
        %1443 = vmatmul.bf16.gmra.mxu0 %v1328
        %v1444 = vpop.f32.mrf.mxu0
        %v1445 = vadd.f32 %v1283, %v1444
        %v1446 = vpop.f32.mrf.mxu0
        %v1447 = vadd.f32 %v1283, %v1446
        %1448 = vmatmul.bf16.gmra.mxu0 %v1331
        %v1449 = vpop.f32.mrf.mxu0
        %v1450 = vadd.f32 %v1283, %v1449
        %v1451 = vpop.f32.mrf.mxu0
        %v1452 = vadd.f32 %v1283, %v1451
        %1453 = vmatmul.bf16.gmra.mxu0 %v1334
        %v1454 = vpop.f32.mrf.mxu0
        %v1455 = vadd.f32 %v1283, %v1454
        %v1456 = vpop.f32.mrf.mxu0
        %v1457 = vadd.f32 %v1283, %v1456
        %1458 = vmatmul.bf16.gmra.mxu0 %v1337
        %v1459 = vpop.f32.mrf.mxu0
        %v1460 = vadd.f32 %v1283, %v1459
        %v1461 = vpop.f32.mrf.mxu0
        %v1462 = vadd.f32 %v1283, %v1461
        %1463 = vmatmul.bf16.gmra.mxu0 %v1340
        %v1464 = vpop.f32.mrf.mxu0
        %v1465 = vadd.f32 %v1283, %v1464
        %v1466 = vpop.f32.mrf.mxu0
        %v1467 = vadd.f32 %v1283, %v1466
        %1468 = vmatmul.bf16.gmra.mxu0 %v1343
        %v1469 = vpop.f32.mrf.mxu0
        %v1470 = vadd.f32 %v1283, %v1469
        %v1471 = vpop.f32.mrf.mxu0
        %v1472 = vadd.f32 %v1283, %v1471
        %1473 = vmatmul.bf16.gmra.mxu0 %v1346
        %v1474 = vpop.f32.mrf.mxu0
        %v1475 = vadd.f32 %v1283, %v1474
        %v1476 = vpop.f32.mrf.mxu0
        %v1477 = vadd.f32 %v1283, %v1476
        %1478 = vmatmul.bf16.gmra.mxu0 %v1349
        %v1479 = vpop.f32.mrf.mxu0
        %v1480 = vadd.f32 %v1283, %v1479
        %v1481 = vpop.f32.mrf.mxu0
        %v1482 = vadd.f32 %v1283, %v1481
        %1483 = vmatmul.bf16.gmra.mxu0 %v1352
        %v1484 = vpop.f32.mrf.mxu0
        %v1485 = vadd.f32 %v1283, %v1484
        %v1486 = vpop.f32.mrf.mxu0
        %v1487 = vadd.f32 %v1283, %v1486
        %1488 = vmatmul.bf16.gmra.mxu0 %v1355
        %v1489 = vpop.f32.mrf.mxu0
        %v1490 = vadd.f32 %v1283, %v1489
        %v1491 = vpop.f32.mrf.mxu0
        %v1492 = vadd.f32 %v1283, %v1491
        %1493 = vmatmul.bf16.gmra.mxu0 %v1358
        %v1494 = vpop.f32.mrf.mxu0
        %v1495 = vadd.f32 %v1283, %v1494
        %v1496 = vpop.f32.mrf.mxu0
        %v1497 = vadd.f32 %v1283, %v1496
        %1498 = vmatmul.bf16.gmra.mxu0 %v1361
        %v1499 = vpop.f32.mrf.mxu0
        %v1500 = vadd.f32 %v1283, %v1499
        %v1501 = vpop.f32.mrf.mxu0
        %v1502 = vadd.f32 %v1283, %v1501
        %1503 = vmatmul.bf16.gmra.mxu0 %v1364
        %v1504 = vpop.f32.mrf.mxu0
        %v1505 = vadd.f32 %v1283, %v1504
        %v1506 = vpop.f32.mrf.mxu0
        %v1507 = vadd.f32 %v1283, %v1506
        %1508 = vmatmul.bf16.gmra.mxu0 %v1367
        %v1509 = vpop.f32.mrf.mxu0
        %v1510 = vadd.f32 %v1283, %v1509
        %v1511 = vpop.f32.mrf.mxu0
        %v1512 = vadd.f32 %v1283, %v1511
        %1513 = vmatmul.bf16.gmra.mxu0 %v1370
        %v1514 = vpop.f32.mrf.mxu0
        %v1515 = vadd.f32 %v1283, %v1514
        %v1516 = vpop.f32.mrf.mxu0
        %v1517 = vadd.f32 %v1283, %v1516
        %1518 = vmatmul.bf16.gmra.mxu0 %v1373
        %v1519 = vpop.f32.mrf.mxu0
        %v1520 = vadd.f32 %v1283, %v1519
        %v1521 = vpop.f32.mrf.mxu0
        %v1522 = vadd.f32 %v1283, %v1521
        %1523 = vmatmul.bf16.gmra.mxu0 %v1376
        %v1524 = vpop.f32.mrf.mxu0
        %v1525 = vadd.f32 %v1283, %v1524
        %v1526 = vpop.f32.mrf.mxu0
        %v1527 = vadd.f32 %v1283, %v1526
        %1528 = vmatmul.bf16.gmra.mxu0 %v1379
        %v1529 = vpop.f32.mrf.mxu0
        %v1530 = vadd.f32 %v1283, %v1529
        %v1531 = vpop.f32.mrf.mxu0
        %v1532 = vadd.f32 %v1283, %v1531
        %1533 = vmatmul.bf16.gmra.mxu0 %v1382
        %v1534 = vpop.f32.mrf.mxu0
        %v1535 = vadd.f32 %v1283, %v1534
        %v1536 = vpop.f32.mrf.mxu0
        %v1537 = vadd.f32 %v1283, %v1536
        %1538 = vmatmul.bf16.gmra.mxu0 %v1385
        %v1539 = vpop.f32.mrf.mxu0
        %v1540 = vadd.f32 %v1283, %v1539
        %v1541 = vpop.f32.mrf.mxu0
        %v1542 = vadd.f32 %v1283, %v1541
        %1543 = vmatmul.bf16.gmra.mxu0 %v1388
        %v1544 = vpop.f32.mrf.mxu0
        %v1545 = vadd.f32 %v1283, %v1544
        %v1546 = vpop.f32.mrf.mxu0
        %v1547 = vadd.f32 %v1283, %v1546
        %1548 = vmatmul.bf16.gmra.mxu0 %v1391
        %v1549 = vpop.f32.mrf.mxu0
        %v1550 = vadd.f32 %v1283, %v1549
        %v1551 = vpop.f32.mrf.mxu0
        %v1552 = vadd.f32 %v1283, %v1551
        %1553 = vmatmul.bf16.gmra.mxu0 %v1394
        %v1554 = vpop.f32.mrf.mxu0
        %v1555 = vadd.f32 %v1283, %v1554
        %v1556 = vpop.f32.mrf.mxu0
        %v1557 = vadd.f32 %v1283, %v1556
        %1558 = vmatmul.bf16.gmra.mxu0 %v1397
        %v1559 = vpop.f32.mrf.mxu0
        %v1560 = vadd.f32 %v1283, %v1559
        %v1561 = vpop.f32.mrf.mxu0
        %v1562 = vadd.f32 %v1283, %v1561
        %1563 = vmatmul.bf16.gmra.mxu0 %v1400
        %v1564 = vpop.f32.mrf.mxu0
        %v1565 = vadd.f32 %v1283, %v1564
        %v1566 = vpop.f32.mrf.mxu0
        %v1567 = vadd.f32 %v1283, %v1566
        %1568 = vmatmul.bf16.gmra.mxu0 %v1403
        %v1569 = vpop.f32.mrf.mxu0
        %v1570 = vadd.f32 %v1283, %v1569
        %v1571 = vpop.f32.mrf.mxu0
        %v1572 = vadd.f32 %v1283, %v1571
        %1573 = vdwg.mxu0
        %v1574 = vmax.f32 %v1415, 0.0
        %v1575 = vmax.f32 %v1417, 0.0
        %v1576 = vmax.f32 %v1420, 0.0
        %v1577 = vmax.f32 %v1422, 0.0
        %v1578 = vmax.f32 %v1425, 0.0
        %v1579 = vmax.f32 %v1427, 0.0
        %v1580 = vmax.f32 %v1430, 0.0
        %v1581 = vmax.f32 %v1432, 0.0
        %v1582 = vmax.f32 %v1435, 0.0
        %v1583 = vmax.f32 %v1437, 0.0
        %v1584 = vmax.f32 %v1440, 0.0
        %v1585 = vmax.f32 %v1442, 0.0
        %v1586 = vmax.f32 %v1445, 0.0
        %v1587 = vmax.f32 %v1447, 0.0
        %v1588 = vmax.f32 %v1450, 0.0
        %v1589 = vmax.f32 %v1452, 0.0
        %v1590 = vmax.f32 %v1455, 0.0
        %v1591 = vmax.f32 %v1457, 0.0
        %v1592 = vmax.f32 %v1460, 0.0
        %v1593 = vmax.f32 %v1462, 0.0
        %v1594 = vmax.f32 %v1465, 0.0
        %v1595 = vmax.f32 %v1467, 0.0
        %v1596 = vmax.f32 %v1470, 0.0
        %v1597 = vmax.f32 %v1472, 0.0
        %v1598 = vmax.f32 %v1475, 0.0
        %v1599 = vmax.f32 %v1477, 0.0
        %v1600 = vmax.f32 %v1480, 0.0
        %v1601 = vmax.f32 %v1482, 0.0
        %v1602 = vmax.f32 %v1485, 0.0
        %v1603 = vmax.f32 %v1487, 0.0
        %v1604 = vmax.f32 %v1490, 0.0
        %v1605 = vmax.f32 %v1492, 0.0
        %v1606 = vmax.f32 %v1495, 0.0
        %v1607 = vmax.f32 %v1497, 0.0
        %v1608 = vmax.f32 %v1500, 0.0
        %v1609 = vmax.f32 %v1502, 0.0
        %v1610 = vmax.f32 %v1505, 0.0
        %v1611 = vmax.f32 %v1507, 0.0
        %v1612 = vmax.f32 %v1510, 0.0
        %v1613 = vmax.f32 %v1512, 0.0
        %v1614 = vmax.f32 %v1515, 0.0
        %v1615 = vmax.f32 %v1517, 0.0
        %v1616 = vmax.f32 %v1520, 0.0
        %v1617 = vmax.f32 %v1522, 0.0
        %v1618 = vmax.f32 %v1525, 0.0
        %v1619 = vmax.f32 %v1527, 0.0
        %v1620 = vmax.f32 %v1530, 0.0
        %v1621 = vmax.f32 %v1532, 0.0
        %v1622 = vmax.f32 %v1535, 0.0
        %v1623 = vmax.f32 %v1537, 0.0
        %v1624 = vmax.f32 %v1540, 0.0
        %v1625 = vmax.f32 %v1542, 0.0
        %v1626 = vmax.f32 %v1545, 0.0
        %v1627 = vmax.f32 %v1547, 0.0
        %v1628 = vmax.f32 %v1550, 0.0
        %v1629 = vmax.f32 %v1552, 0.0
        %v1630 = vmax.f32 %v1555, 0.0
        %v1631 = vmax.f32 %v1557, 0.0
        %v1632 = vmax.f32 %v1560, 0.0
        %v1633 = vmax.f32 %v1562, 0.0
        %v1634 = vmax.f32 %v1565, 0.0
        %v1635 = vmax.f32 %v1567, 0.0
        %v1636 = vmax.f32 %v1570, 0.0
        %v1637 = vmax.f32 %v1572, 0.0
        %v1638 = vpack.c.bf16 %v1575, %v1574
        %v1639 = vpack.c.bf16 %v1577, %v1576
        %v1640 = vpack.c.bf16 %v1579, %v1578
        %v1641 = vpack.c.bf16 %v1581, %v1580
        %v1642 = vpack.c.bf16 %v1583, %v1582
        %v1643 = vpack.c.bf16 %v1585, %v1584
        %v1644 = vpack.c.bf16 %v1587, %v1586
        %v1645 = vpack.c.bf16 %v1589, %v1588
        %v1646 = vpack.c.bf16 %v1591, %v1590
        %v1647 = vpack.c.bf16 %v1593, %v1592
        %v1648 = vpack.c.bf16 %v1595, %v1594
        %v1649 = vpack.c.bf16 %v1597, %v1596
        %v1650 = vpack.c.bf16 %v1599, %v1598
        %v1651 = vpack.c.bf16 %v1601, %v1600
        %v1652 = vpack.c.bf16 %v1603, %v1602
        %v1653 = vpack.c.bf16 %v1605, %v1604
        %v1654 = vpack.c.bf16 %v1607, %v1606
        %v1655 = vpack.c.bf16 %v1609, %v1608
        %v1656 = vpack.c.bf16 %v1611, %v1610
        %v1657 = vpack.c.bf16 %v1613, %v1612
        %v1658 = vpack.c.bf16 %v1615, %v1614
        %v1659 = vpack.c.bf16 %v1617, %v1616
        %v1660 = vpack.c.bf16 %v1619, %v1618
        %v1661 = vpack.c.bf16 %v1621, %v1620
        %v1662 = vpack.c.bf16 %v1623, %v1622
        %v1663 = vpack.c.bf16 %v1625, %v1624
        %v1664 = vpack.c.bf16 %v1627, %v1626
        %v1665 = vpack.c.bf16 %v1629, %v1628
        %v1666 = vpack.c.bf16 %v1631, %v1630
        %v1667 = vpack.c.bf16 %v1633, %v1632
        %v1668 = vpack.c.bf16 %v1635, %v1634
        %v1669 = vpack.c.bf16 %v1637, %v1636
        %v1670 = vld [vmem:[%s3] sm:$0xf]
        %v1671 = vld [vmem:[%s3 + $0x4] sm:$0xf]
        %v1672 = vld [vmem:[%s3 + $0x8] sm:$0xf]
        %v1673 = vld [vmem:[%s3 + $0xc] sm:$0xf]
        %v1674 = vld [vmem:[%s3 + $0x10] sm:$0xf]
        %v1675 = vld [vmem:[%s3 + $0x14] sm:$0xf]
        %v1676 = vld [vmem:[%s3 + $0x18] sm:$0xf]
        %v1677 = vld [vmem:[%s3 + $0x1c] sm:$0xf]
        %v1678 = vld [vmem:[%s9 + $0x2] sm:$0x1]
        %v1679 = vperm.slane %v1678, 0
        %v1688 = vunpack.c.l.b16 %v1670
        %v1689 = vunpack.c.l.b16 %v1671
        %v1690 = vunpack.c.l.b16 %v1672
        %v1691 = vunpack.c.l.b16 %v1673
        %v1692 = vunpack.c.l.b16 %v1674
        %v1693 = vunpack.c.l.b16 %v1675
        %v1694 = vunpack.c.l.b16 %v1676
        %v1695 = vunpack.c.l.b16 %v1677
        %v1696 = vpack.c.b16 %v1689, %v1688
        %v1697 = vpack.c.b16 %v1691, %v1690
        %v1698 = vpack.c.b16 %v1693, %v1692
        %v1699 = vpack.c.b16 %v1695, %v1694
        %v1705 = vsel %vm1308, %v1638, 0
        %v1708 = vsel %vm1308, %v1639, 0
        %v1711 = vsel %vm1308, %v1640, 0
        %v1714 = vsel %vm1308, %v1641, 0
        %v1717 = vsel %vm1308, %v1642, 0
        %v1720 = vsel %vm1308, %v1643, 0
        %v1723 = vsel %vm1308, %v1644, 0
        %v1726 = vsel %vm1308, %v1645, 0
        %v1729 = vsel %vm1308, %v1646, 0
        %v1732 = vsel %vm1308, %v1647, 0
        %v1735 = vsel %vm1308, %v1648, 0
        %v1738 = vsel %vm1308, %v1649, 0
        %v1741 = vsel %vm1308, %v1650, 0
        %v1744 = vsel %vm1308, %v1651, 0
        %v1747 = vsel %vm1308, %v1652, 0
        %v1750 = vsel %vm1308, %v1653, 0
        %v1753 = vsel %vm1308, %v1654, 0
        %v1756 = vsel %vm1308, %v1655, 0
        %v1759 = vsel %vm1308, %v1656, 0
        %v1762 = vsel %vm1308, %v1657, 0
        %v1765 = vsel %vm1308, %v1658, 0
        %v1768 = vsel %vm1308, %v1659, 0
        %v1771 = vsel %vm1308, %v1660, 0
        %v1774 = vsel %vm1308, %v1661, 0
        %v1777 = vsel %vm1308, %v1662, 0
        %v1780 = vsel %vm1308, %v1663, 0
        %v1783 = vsel %vm1308, %v1664, 0
        %v1786 = vsel %vm1308, %v1665, 0
        %v1789 = vsel %vm1308, %v1666, 0
        %v1792 = vsel %vm1308, %v1667, 0
        %v1795 = vsel %vm1308, %v1668, 0
        %v1798 = vsel %vm1308, %v1669, 0
        %1800 = vmatpush.bf16.msra.mxu0 0
        %1801 = vmatpush.bf16.msra.mxu0 0
        %1802 = vmatpush.bf16.msra.mxu0 0
        %1803 = vmatpush.bf16.msra.mxu0 0
        %1804 = vmatpush.bf16.msra.mxu0 %v1699
        %1805 = vmatpush.bf16.msra.mxu0 %v1698
        %1806 = vmatpush.bf16.msra.mxu0 %v1697
        %1807 = vmatpush.bf16.msra.mxu0 %v1696
        %1808 = vmatmul.bf16.gmra.mxu0 %v1705
        %v1809 = vpop.f32.mrf.mxu0
        %v1810 = vadd.f32 %v1679, %v1809
        %v1811 = vpop.f32.mrf.mxu0
        %v1812 = vadd.f32 %v1679, %v1811
        %1813 = vmatmul.bf16.gmra.mxu0 %v1708
        %v1814 = vpop.f32.mrf.mxu0
        %v1815 = vadd.f32 %v1679, %v1814
        %v1816 = vpop.f32.mrf.mxu0
        %v1817 = vadd.f32 %v1679, %v1816
        %1818 = vmatmul.bf16.gmra.mxu0 %v1711
        %v1819 = vpop.f32.mrf.mxu0
        %v1820 = vadd.f32 %v1679, %v1819
        %v1821 = vpop.f32.mrf.mxu0
        %v1822 = vadd.f32 %v1679, %v1821
        %1823 = vmatmul.bf16.gmra.mxu0 %v1714
        %v1824 = vpop.f32.mrf.mxu0
        %v1825 = vadd.f32 %v1679, %v1824
        %v1826 = vpop.f32.mrf.mxu0
        %v1827 = vadd.f32 %v1679, %v1826
        %1828 = vmatmul.bf16.gmra.mxu0 %v1717
        %v1829 = vpop.f32.mrf.mxu0
        %v1830 = vadd.f32 %v1679, %v1829
        %v1831 = vpop.f32.mrf.mxu0
        %v1832 = vadd.f32 %v1679, %v1831
        %1833 = vmatmul.bf16.gmra.mxu0 %v1720
        %v1834 = vpop.f32.mrf.mxu0
        %v1835 = vadd.f32 %v1679, %v1834
        %v1836 = vpop.f32.mrf.mxu0
        %v1837 = vadd.f32 %v1679, %v1836
        %1838 = vmatmul.bf16.gmra.mxu0 %v1723
        %v1839 = vpop.f32.mrf.mxu0
        %v1840 = vadd.f32 %v1679, %v1839
        %v1841 = vpop.f32.mrf.mxu0
        %v1842 = vadd.f32 %v1679, %v1841
        %1843 = vmatmul.bf16.gmra.mxu0 %v1726
        %v1844 = vpop.f32.mrf.mxu0
        %v1845 = vadd.f32 %v1679, %v1844
        %v1846 = vpop.f32.mrf.mxu0
        %v1847 = vadd.f32 %v1679, %v1846
        %1848 = vmatmul.bf16.gmra.mxu0 %v1729
        %v1849 = vpop.f32.mrf.mxu0
        %v1850 = vadd.f32 %v1679, %v1849
        %v1851 = vpop.f32.mrf.mxu0
        %v1852 = vadd.f32 %v1679, %v1851
        %1853 = vmatmul.bf16.gmra.mxu0 %v1732
        %v1854 = vpop.f32.mrf.mxu0
        %v1855 = vadd.f32 %v1679, %v1854
        %v1856 = vpop.f32.mrf.mxu0
        %v1857 = vadd.f32 %v1679, %v1856
        %1858 = vmatmul.bf16.gmra.mxu0 %v1735
        %v1859 = vpop.f32.mrf.mxu0
        %v1860 = vadd.f32 %v1679, %v1859
        %v1861 = vpop.f32.mrf.mxu0
        %v1862 = vadd.f32 %v1679, %v1861
        %1863 = vmatmul.bf16.gmra.mxu0 %v1738
        %v1864 = vpop.f32.mrf.mxu0
        %v1865 = vadd.f32 %v1679, %v1864
        %v1866 = vpop.f32.mrf.mxu0
        %v1867 = vadd.f32 %v1679, %v1866
        %1868 = vmatmul.bf16.gmra.mxu0 %v1741
        %v1869 = vpop.f32.mrf.mxu0
        %v1870 = vadd.f32 %v1679, %v1869
        %v1871 = vpop.f32.mrf.mxu0
        %v1872 = vadd.f32 %v1679, %v1871
        %1873 = vmatmul.bf16.gmra.mxu0 %v1744
        %v1874 = vpop.f32.mrf.mxu0
        %v1875 = vadd.f32 %v1679, %v1874
        %v1876 = vpop.f32.mrf.mxu0
        %v1877 = vadd.f32 %v1679, %v1876
        %1878 = vmatmul.bf16.gmra.mxu0 %v1747
        %v1879 = vpop.f32.mrf.mxu0
        %v1880 = vadd.f32 %v1679, %v1879
        %v1881 = vpop.f32.mrf.mxu0
        %v1882 = vadd.f32 %v1679, %v1881
        %1883 = vmatmul.bf16.gmra.mxu0 %v1750
        %v1884 = vpop.f32.mrf.mxu0
        %v1885 = vadd.f32 %v1679, %v1884
        %v1886 = vpop.f32.mrf.mxu0
        %v1887 = vadd.f32 %v1679, %v1886
        %1888 = vmatmul.bf16.gmra.mxu0 %v1753
        %v1889 = vpop.f32.mrf.mxu0
        %v1890 = vadd.f32 %v1679, %v1889
        %v1891 = vpop.f32.mrf.mxu0
        %v1892 = vadd.f32 %v1679, %v1891
        %1893 = vmatmul.bf16.gmra.mxu0 %v1756
        %v1894 = vpop.f32.mrf.mxu0
        %v1895 = vadd.f32 %v1679, %v1894
        %v1896 = vpop.f32.mrf.mxu0
        %v1897 = vadd.f32 %v1679, %v1896
        %1898 = vmatmul.bf16.gmra.mxu0 %v1759
        %v1899 = vpop.f32.mrf.mxu0
        %v1900 = vadd.f32 %v1679, %v1899
        %v1901 = vpop.f32.mrf.mxu0
        %v1902 = vadd.f32 %v1679, %v1901
        %1903 = vmatmul.bf16.gmra.mxu0 %v1762
        %v1904 = vpop.f32.mrf.mxu0
        %v1905 = vadd.f32 %v1679, %v1904
        %v1906 = vpop.f32.mrf.mxu0
        %v1907 = vadd.f32 %v1679, %v1906
        %1908 = vmatmul.bf16.gmra.mxu0 %v1765
        %v1909 = vpop.f32.mrf.mxu0
        %v1910 = vadd.f32 %v1679, %v1909
        %v1911 = vpop.f32.mrf.mxu0
        %v1912 = vadd.f32 %v1679, %v1911
        %1913 = vmatmul.bf16.gmra.mxu0 %v1768
        %v1914 = vpop.f32.mrf.mxu0
        %v1915 = vadd.f32 %v1679, %v1914
        %v1916 = vpop.f32.mrf.mxu0
        %v1917 = vadd.f32 %v1679, %v1916
        %1918 = vmatmul.bf16.gmra.mxu0 %v1771
        %v1919 = vpop.f32.mrf.mxu0
        %v1920 = vadd.f32 %v1679, %v1919
        %v1921 = vpop.f32.mrf.mxu0
        %v1922 = vadd.f32 %v1679, %v1921
        %1923 = vmatmul.bf16.gmra.mxu0 %v1774
        %v1924 = vpop.f32.mrf.mxu0
        %v1925 = vadd.f32 %v1679, %v1924
        %v1926 = vpop.f32.mrf.mxu0
        %v1927 = vadd.f32 %v1679, %v1926
        %1928 = vmatmul.bf16.gmra.mxu0 %v1777
        %v1929 = vpop.f32.mrf.mxu0
        %v1930 = vadd.f32 %v1679, %v1929
        %v1931 = vpop.f32.mrf.mxu0
        %v1932 = vadd.f32 %v1679, %v1931
        %1933 = vmatmul.bf16.gmra.mxu0 %v1780
        %v1934 = vpop.f32.mrf.mxu0
        %v1935 = vadd.f32 %v1679, %v1934
        %v1936 = vpop.f32.mrf.mxu0
        %v1937 = vadd.f32 %v1679, %v1936
        %1938 = vmatmul.bf16.gmra.mxu0 %v1783
        %v1939 = vpop.f32.mrf.mxu0
        %v1940 = vadd.f32 %v1679, %v1939
        %v1941 = vpop.f32.mrf.mxu0
        %v1942 = vadd.f32 %v1679, %v1941
        %1943 = vmatmul.bf16.gmra.mxu0 %v1786
        %v1944 = vpop.f32.mrf.mxu0
        %v1945 = vadd.f32 %v1679, %v1944
        %v1946 = vpop.f32.mrf.mxu0
        %v1947 = vadd.f32 %v1679, %v1946
        %1948 = vmatmul.bf16.gmra.mxu0 %v1789
        %v1949 = vpop.f32.mrf.mxu0
        %v1950 = vadd.f32 %v1679, %v1949
        %v1951 = vpop.f32.mrf.mxu0
        %v1952 = vadd.f32 %v1679, %v1951
        %1953 = vmatmul.bf16.gmra.mxu0 %v1792
        %v1954 = vpop.f32.mrf.mxu0
        %v1955 = vadd.f32 %v1679, %v1954
        %v1956 = vpop.f32.mrf.mxu0
        %v1957 = vadd.f32 %v1679, %v1956
        %1958 = vmatmul.bf16.gmra.mxu0 %v1795
        %v1959 = vpop.f32.mrf.mxu0
        %v1960 = vadd.f32 %v1679, %v1959
        %v1961 = vpop.f32.mrf.mxu0
        %v1962 = vadd.f32 %v1679, %v1961
        %1963 = vmatmul.bf16.gmra.mxu0 %v1798
        %v1964 = vpop.f32.mrf.mxu0
        %v1965 = vadd.f32 %v1679, %v1964
        %v1966 = vpop.f32.mrf.mxu0
        %v1967 = vadd.f32 %v1679, %v1966
        %1968 = vdwg.mxu0
        %v1969 = vmax.f32 %v1810, 0.0
        %v1970 = vmax.f32 %v1812, 0.0
        %v1971 = vmax.f32 %v1815, 0.0
        %v1972 = vmax.f32 %v1817, 0.0
        %v1973 = vmax.f32 %v1820, 0.0
        %v1974 = vmax.f32 %v1822, 0.0
        %v1975 = vmax.f32 %v1825, 0.0
        %v1976 = vmax.f32 %v1827, 0.0
        %v1977 = vmax.f32 %v1830, 0.0
        %v1978 = vmax.f32 %v1832, 0.0
        %v1979 = vmax.f32 %v1835, 0.0
        %v1980 = vmax.f32 %v1837, 0.0
        %v1981 = vmax.f32 %v1840, 0.0
        %v1982 = vmax.f32 %v1842, 0.0
        %v1983 = vmax.f32 %v1845, 0.0
        %v1984 = vmax.f32 %v1847, 0.0
        %v1985 = vmax.f32 %v1850, 0.0
        %v1986 = vmax.f32 %v1852, 0.0
        %v1987 = vmax.f32 %v1855, 0.0
        %v1988 = vmax.f32 %v1857, 0.0
        %v1989 = vmax.f32 %v1860, 0.0
        %v1990 = vmax.f32 %v1862, 0.0
        %v1991 = vmax.f32 %v1865, 0.0
        %v1992 = vmax.f32 %v1867, 0.0
        %v1993 = vmax.f32 %v1870, 0.0
        %v1994 = vmax.f32 %v1872, 0.0
        %v1995 = vmax.f32 %v1875, 0.0
        %v1996 = vmax.f32 %v1877, 0.0
        %v1997 = vmax.f32 %v1880, 0.0
        %v1998 = vmax.f32 %v1882, 0.0
        %v1999 = vmax.f32 %v1885, 0.0
        %v2000 = vmax.f32 %v1887, 0.0
        %v2001 = vmax.f32 %v1890, 0.0
        %v2002 = vmax.f32 %v1892, 0.0
        %v2003 = vmax.f32 %v1895, 0.0
        %v2004 = vmax.f32 %v1897, 0.0
        %v2005 = vmax.f32 %v1900, 0.0
        %v2006 = vmax.f32 %v1902, 0.0
        %v2007 = vmax.f32 %v1905, 0.0
        %v2008 = vmax.f32 %v1907, 0.0
        %v2009 = vmax.f32 %v1910, 0.0
        %v2010 = vmax.f32 %v1912, 0.0
        %v2011 = vmax.f32 %v1915, 0.0
        %v2012 = vmax.f32 %v1917, 0.0
        %v2013 = vmax.f32 %v1920, 0.0
        %v2014 = vmax.f32 %v1922, 0.0
        %v2015 = vmax.f32 %v1925, 0.0
        %v2016 = vmax.f32 %v1927, 0.0
        %v2017 = vmax.f32 %v1930, 0.0
        %v2018 = vmax.f32 %v1932, 0.0
        %v2019 = vmax.f32 %v1935, 0.0
        %v2020 = vmax.f32 %v1937, 0.0
        %v2021 = vmax.f32 %v1940, 0.0
        %v2022 = vmax.f32 %v1942, 0.0
        %v2023 = vmax.f32 %v1945, 0.0
        %v2024 = vmax.f32 %v1947, 0.0
        %v2025 = vmax.f32 %v1950, 0.0
        %v2026 = vmax.f32 %v1952, 0.0
        %v2027 = vmax.f32 %v1955, 0.0
        %v2028 = vmax.f32 %v1957, 0.0
        %v2029 = vmax.f32 %v1960, 0.0
        %v2030 = vmax.f32 %v1962, 0.0
        %v2031 = vmax.f32 %v1965, 0.0
        %v2032 = vmax.f32 %v1967, 0.0
        %v2033 = vpack.c.bf16 %v1970, %v1969
        %v2034 = vpack.c.bf16 %v1972, %v1971
        %v2035 = vpack.c.bf16 %v1974, %v1973
        %v2036 = vpack.c.bf16 %v1976, %v1975
        %v2037 = vpack.c.bf16 %v1978, %v1977
        %v2038 = vpack.c.bf16 %v1980, %v1979
        %v2039 = vpack.c.bf16 %v1982, %v1981
        %v2040 = vpack.c.bf16 %v1984, %v1983
        %v2041 = vpack.c.bf16 %v1986, %v1985
        %v2042 = vpack.c.bf16 %v1988, %v1987
        %v2043 = vpack.c.bf16 %v1990, %v1989
        %v2044 = vpack.c.bf16 %v1992, %v1991
        %v2045 = vpack.c.bf16 %v1994, %v1993
        %v2046 = vpack.c.bf16 %v1996, %v1995
        %v2047 = vpack.c.bf16 %v1998, %v1997
        %v2048 = vpack.c.bf16 %v2000, %v1999
        %v2049 = vpack.c.bf16 %v2002, %v2001
        %v2050 = vpack.c.bf16 %v2004, %v2003
        %v2051 = vpack.c.bf16 %v2006, %v2005
        %v2052 = vpack.c.bf16 %v2008, %v2007
        %v2053 = vpack.c.bf16 %v2010, %v2009
        %v2054 = vpack.c.bf16 %v2012, %v2011
        %v2055 = vpack.c.bf16 %v2014, %v2013
        %v2056 = vpack.c.bf16 %v2016, %v2015
        %v2057 = vpack.c.bf16 %v2018, %v2017
        %v2058 = vpack.c.bf16 %v2020, %v2019
        %v2059 = vpack.c.bf16 %v2022, %v2021
        %v2060 = vpack.c.bf16 %v2024, %v2023
        %v2061 = vpack.c.bf16 %v2026, %v2025
        %v2062 = vpack.c.bf16 %v2028, %v2027
        %v2063 = vpack.c.bf16 %v2030, %v2029
        %v2064 = vpack.c.bf16 %v2032, %v2031
        %v2065 = vld [vmem:[%s4] sm:$0xf]
        %v2066 = vld [vmem:[%s4 + $0x4] sm:$0xf]
        %v2067 = vld [vmem:[%s4 + $0x8] sm:$0xf]
        %v2068 = vld [vmem:[%s4 + $0xc] sm:$0xf]
        %v2069 = vld [vmem:[%s4 + $0x10] sm:$0xf]
        %v2070 = vld [vmem:[%s4 + $0x14] sm:$0xf]
        %v2071 = vld [vmem:[%s4 + $0x18] sm:$0xf]
        %v2072 = vld [vmem:[%s4 + $0x1c] sm:$0xf]
        %v2073 = vld [vmem:[%s9 + $0x3] sm:$0x1]
        %v2074 = vperm.slane %v2073, 0
        %v2083 = vunpack.c.l.b16 %v2065
        %v2084 = vunpack.c.l.b16 %v2066
        %v2085 = vunpack.c.l.b16 %v2067
        %v2086 = vunpack.c.l.b16 %v2068
        %v2087 = vunpack.c.l.b16 %v2069
        %v2088 = vunpack.c.l.b16 %v2070
        %v2089 = vunpack.c.l.b16 %v2071
        %v2090 = vunpack.c.l.b16 %v2072
        %v2091 = vpack.c.b16 %v2084, %v2083
        %v2092 = vpack.c.b16 %v2086, %v2085
        %v2093 = vpack.c.b16 %v2088, %v2087
        %v2094 = vpack.c.b16 %v2090, %v2089
        %v2100 = vsel %vm1308, %v2033, 0
        %v2103 = vsel %vm1308, %v2034, 0
        %v2106 = vsel %vm1308, %v2035, 0
        %v2109 = vsel %vm1308, %v2036, 0
        %v2112 = vsel %vm1308, %v2037, 0
        %v2115 = vsel %vm1308, %v2038, 0
        %v2118 = vsel %vm1308, %v2039, 0
        %v2121 = vsel %vm1308, %v2040, 0
        %v2124 = vsel %vm1308, %v2041, 0
        %v2127 = vsel %vm1308, %v2042, 0
        %v2130 = vsel %vm1308, %v2043, 0
        %v2133 = vsel %vm1308, %v2044, 0
        %v2136 = vsel %vm1308, %v2045, 0
        %v2139 = vsel %vm1308, %v2046, 0
        %v2142 = vsel %vm1308, %v2047, 0
        %v2145 = vsel %vm1308, %v2048, 0
        %v2148 = vsel %vm1308, %v2049, 0
        %v2151 = vsel %vm1308, %v2050, 0
        %v2154 = vsel %vm1308, %v2051, 0
        %v2157 = vsel %vm1308, %v2052, 0
        %v2160 = vsel %vm1308, %v2053, 0
        %v2163 = vsel %vm1308, %v2054, 0
        %v2166 = vsel %vm1308, %v2055, 0
        %v2169 = vsel %vm1308, %v2056, 0
        %v2172 = vsel %vm1308, %v2057, 0
        %v2175 = vsel %vm1308, %v2058, 0
        %v2178 = vsel %vm1308, %v2059, 0
        %v2181 = vsel %vm1308, %v2060, 0
        %v2184 = vsel %vm1308, %v2061, 0
        %v2187 = vsel %vm1308, %v2062, 0
        %v2190 = vsel %vm1308, %v2063, 0
        %v2193 = vsel %vm1308, %v2064, 0
        %2195 = vmatpush.bf16.msra.mxu0 0
        %2196 = vmatpush.bf16.msra.mxu0 0
        %2197 = vmatpush.bf16.msra.mxu0 0
        %2198 = vmatpush.bf16.msra.mxu0 0
        %2199 = vmatpush.bf16.msra.mxu0 %v2094
        %2200 = vmatpush.bf16.msra.mxu0 %v2093
        %2201 = vmatpush.bf16.msra.mxu0 %v2092
        %2202 = vmatpush.bf16.msra.mxu0 %v2091
        %2203 = vmatmul.bf16.gmra.mxu0 %v2100
        %v2204 = vpop.f32.mrf.mxu0
        %v2205 = vadd.f32 %v2074, %v2204
        %v2206 = vpop.f32.mrf.mxu0
        %v2207 = vadd.f32 %v2074, %v2206
        %2208 = vmatmul.bf16.gmra.mxu0 %v2103
        %v2209 = vpop.f32.mrf.mxu0
        %v2210 = vadd.f32 %v2074, %v2209
        %v2211 = vpop.f32.mrf.mxu0
        %v2212 = vadd.f32 %v2074, %v2211
        %2213 = vmatmul.bf16.gmra.mxu0 %v2106
        %v2214 = vpop.f32.mrf.mxu0
        %v2215 = vadd.f32 %v2074, %v2214
        %v2216 = vpop.f32.mrf.mxu0
        %v2217 = vadd.f32 %v2074, %v2216
        %2218 = vmatmul.bf16.gmra.mxu0 %v2109
        %v2219 = vpop.f32.mrf.mxu0
        %v2220 = vadd.f32 %v2074, %v2219
        %v2221 = vpop.f32.mrf.mxu0
        %v2222 = vadd.f32 %v2074, %v2221
        %2223 = vmatmul.bf16.gmra.mxu0 %v2112
        %v2224 = vpop.f32.mrf.mxu0
        %v2225 = vadd.f32 %v2074, %v2224
        %v2226 = vpop.f32.mrf.mxu0
        %v2227 = vadd.f32 %v2074, %v2226
        %2228 = vmatmul.bf16.gmra.mxu0 %v2115
        %v2229 = vpop.f32.mrf.mxu0
        %v2230 = vadd.f32 %v2074, %v2229
        %v2231 = vpop.f32.mrf.mxu0
        %v2232 = vadd.f32 %v2074, %v2231
        %2233 = vmatmul.bf16.gmra.mxu0 %v2118
        %v2234 = vpop.f32.mrf.mxu0
        %v2235 = vadd.f32 %v2074, %v2234
        %v2236 = vpop.f32.mrf.mxu0
        %v2237 = vadd.f32 %v2074, %v2236
        %2238 = vmatmul.bf16.gmra.mxu0 %v2121
        %v2239 = vpop.f32.mrf.mxu0
        %v2240 = vadd.f32 %v2074, %v2239
        %v2241 = vpop.f32.mrf.mxu0
        %v2242 = vadd.f32 %v2074, %v2241
        %2243 = vmatmul.bf16.gmra.mxu0 %v2124
        %v2244 = vpop.f32.mrf.mxu0
        %v2245 = vadd.f32 %v2074, %v2244
        %v2246 = vpop.f32.mrf.mxu0
        %v2247 = vadd.f32 %v2074, %v2246
        %2248 = vmatmul.bf16.gmra.mxu0 %v2127
        %v2249 = vpop.f32.mrf.mxu0
        %v2250 = vadd.f32 %v2074, %v2249
        %v2251 = vpop.f32.mrf.mxu0
        %v2252 = vadd.f32 %v2074, %v2251
        %2253 = vmatmul.bf16.gmra.mxu0 %v2130
        %v2254 = vpop.f32.mrf.mxu0
        %v2255 = vadd.f32 %v2074, %v2254
        %v2256 = vpop.f32.mrf.mxu0
        %v2257 = vadd.f32 %v2074, %v2256
        %2258 = vmatmul.bf16.gmra.mxu0 %v2133
        %v2259 = vpop.f32.mrf.mxu0
        %v2260 = vadd.f32 %v2074, %v2259
        %v2261 = vpop.f32.mrf.mxu0
        %v2262 = vadd.f32 %v2074, %v2261
        %2263 = vmatmul.bf16.gmra.mxu0 %v2136
        %v2264 = vpop.f32.mrf.mxu0
        %v2265 = vadd.f32 %v2074, %v2264
        %v2266 = vpop.f32.mrf.mxu0
        %v2267 = vadd.f32 %v2074, %v2266
        %2268 = vmatmul.bf16.gmra.mxu0 %v2139
        %v2269 = vpop.f32.mrf.mxu0
        %v2270 = vadd.f32 %v2074, %v2269
        %v2271 = vpop.f32.mrf.mxu0
        %v2272 = vadd.f32 %v2074, %v2271
        %2273 = vmatmul.bf16.gmra.mxu0 %v2142
        %v2274 = vpop.f32.mrf.mxu0
        %v2275 = vadd.f32 %v2074, %v2274
        %v2276 = vpop.f32.mrf.mxu0
        %v2277 = vadd.f32 %v2074, %v2276
        %2278 = vmatmul.bf16.gmra.mxu0 %v2145
        %v2279 = vpop.f32.mrf.mxu0
        %v2280 = vadd.f32 %v2074, %v2279
        %v2281 = vpop.f32.mrf.mxu0
        %v2282 = vadd.f32 %v2074, %v2281
        %2283 = vmatmul.bf16.gmra.mxu0 %v2148
        %v2284 = vpop.f32.mrf.mxu0
        %v2285 = vadd.f32 %v2074, %v2284
        %v2286 = vpop.f32.mrf.mxu0
        %v2287 = vadd.f32 %v2074, %v2286
        %2288 = vmatmul.bf16.gmra.mxu0 %v2151
        %v2289 = vpop.f32.mrf.mxu0
        %v2290 = vadd.f32 %v2074, %v2289
        %v2291 = vpop.f32.mrf.mxu0
        %v2292 = vadd.f32 %v2074, %v2291
        %2293 = vmatmul.bf16.gmra.mxu0 %v2154
        %v2294 = vpop.f32.mrf.mxu0
        %v2295 = vadd.f32 %v2074, %v2294
        %v2296 = vpop.f32.mrf.mxu0
        %v2297 = vadd.f32 %v2074, %v2296
        %2298 = vmatmul.bf16.gmra.mxu0 %v2157
        %v2299 = vpop.f32.mrf.mxu0
        %v2300 = vadd.f32 %v2074, %v2299
        %v2301 = vpop.f32.mrf.mxu0
        %v2302 = vadd.f32 %v2074, %v2301
        %2303 = vmatmul.bf16.gmra.mxu0 %v2160
        %v2304 = vpop.f32.mrf.mxu0
        %v2305 = vadd.f32 %v2074, %v2304
        %v2306 = vpop.f32.mrf.mxu0
        %v2307 = vadd.f32 %v2074, %v2306
        %2308 = vmatmul.bf16.gmra.mxu0 %v2163
        %v2309 = vpop.f32.mrf.mxu0
        %v2310 = vadd.f32 %v2074, %v2309
        %v2311 = vpop.f32.mrf.mxu0
        %v2312 = vadd.f32 %v2074, %v2311
        %2313 = vmatmul.bf16.gmra.mxu0 %v2166
        %v2314 = vpop.f32.mrf.mxu0
        %v2315 = vadd.f32 %v2074, %v2314
        %v2316 = vpop.f32.mrf.mxu0
        %v2317 = vadd.f32 %v2074, %v2316
        %2318 = vmatmul.bf16.gmra.mxu0 %v2169
        %v2319 = vpop.f32.mrf.mxu0
        %v2320 = vadd.f32 %v2074, %v2319
        %v2321 = vpop.f32.mrf.mxu0
        %v2322 = vadd.f32 %v2074, %v2321
        %2323 = vmatmul.bf16.gmra.mxu0 %v2172
        %v2324 = vpop.f32.mrf.mxu0
        %v2325 = vadd.f32 %v2074, %v2324
        %v2326 = vpop.f32.mrf.mxu0
        %v2327 = vadd.f32 %v2074, %v2326
        %2328 = vmatmul.bf16.gmra.mxu0 %v2175
        %v2329 = vpop.f32.mrf.mxu0
        %v2330 = vadd.f32 %v2074, %v2329
        %v2331 = vpop.f32.mrf.mxu0
        %v2332 = vadd.f32 %v2074, %v2331
        %2333 = vmatmul.bf16.gmra.mxu0 %v2178
        %v2334 = vpop.f32.mrf.mxu0
        %v2335 = vadd.f32 %v2074, %v2334
        %v2336 = vpop.f32.mrf.mxu0
        %v2337 = vadd.f32 %v2074, %v2336
        %2338 = vmatmul.bf16.gmra.mxu0 %v2181
        %v2339 = vpop.f32.mrf.mxu0
        %v2340 = vadd.f32 %v2074, %v2339
        %v2341 = vpop.f32.mrf.mxu0
        %v2342 = vadd.f32 %v2074, %v2341
        %2343 = vmatmul.bf16.gmra.mxu0 %v2184
        %v2344 = vpop.f32.mrf.mxu0
        %v2345 = vadd.f32 %v2074, %v2344
        %v2346 = vpop.f32.mrf.mxu0
        %v2347 = vadd.f32 %v2074, %v2346
        %2348 = vmatmul.bf16.gmra.mxu0 %v2187
        %v2349 = vpop.f32.mrf.mxu0
        %v2350 = vadd.f32 %v2074, %v2349
        %v2351 = vpop.f32.mrf.mxu0
        %v2352 = vadd.f32 %v2074, %v2351
        %2353 = vmatmul.bf16.gmra.mxu0 %v2190
        %v2354 = vpop.f32.mrf.mxu0
        %v2355 = vadd.f32 %v2074, %v2354
        %v2356 = vpop.f32.mrf.mxu0
        %v2357 = vadd.f32 %v2074, %v2356
        %2358 = vmatmul.bf16.gmra.mxu0 %v2193
        %v2359 = vpop.f32.mrf.mxu0
        %v2360 = vadd.f32 %v2074, %v2359
        %v2361 = vpop.f32.mrf.mxu0
        %v2362 = vadd.f32 %v2074, %v2361
        %2363 = vdwg.mxu0
        %v2364 = vmax.f32 %v2205, 0.0
        %v2365 = vmax.f32 %v2207, 0.0
        %v2366 = vmax.f32 %v2210, 0.0
        %v2367 = vmax.f32 %v2212, 0.0
        %v2368 = vmax.f32 %v2215, 0.0
        %v2369 = vmax.f32 %v2217, 0.0
        %v2370 = vmax.f32 %v2220, 0.0
        %v2371 = vmax.f32 %v2222, 0.0
        %v2372 = vmax.f32 %v2225, 0.0
        %v2373 = vmax.f32 %v2227, 0.0
        %v2374 = vmax.f32 %v2230, 0.0
        %v2375 = vmax.f32 %v2232, 0.0
        %v2376 = vmax.f32 %v2235, 0.0
        %v2377 = vmax.f32 %v2237, 0.0
        %v2378 = vmax.f32 %v2240, 0.0
        %v2379 = vmax.f32 %v2242, 0.0
        %v2380 = vmax.f32 %v2245, 0.0
        %v2381 = vmax.f32 %v2247, 0.0
        %v2382 = vmax.f32 %v2250, 0.0
        %v2383 = vmax.f32 %v2252, 0.0
        %v2384 = vmax.f32 %v2255, 0.0
        %v2385 = vmax.f32 %v2257, 0.0
        %v2386 = vmax.f32 %v2260, 0.0
        %v2387 = vmax.f32 %v2262, 0.0
        %v2388 = vmax.f32 %v2265, 0.0
        %v2389 = vmax.f32 %v2267, 0.0
        %v2390 = vmax.f32 %v2270, 0.0
        %v2391 = vmax.f32 %v2272, 0.0
        %v2392 = vmax.f32 %v2275, 0.0
        %v2393 = vmax.f32 %v2277, 0.0
        %v2394 = vmax.f32 %v2280, 0.0
        %v2395 = vmax.f32 %v2282, 0.0
        %v2396 = vmax.f32 %v2285, 0.0
        %v2397 = vmax.f32 %v2287, 0.0
        %v2398 = vmax.f32 %v2290, 0.0
        %v2399 = vmax.f32 %v2292, 0.0
        %v2400 = vmax.f32 %v2295, 0.0
        %v2401 = vmax.f32 %v2297, 0.0
        %v2402 = vmax.f32 %v2300, 0.0
        %v2403 = vmax.f32 %v2302, 0.0
        %v2404 = vmax.f32 %v2305, 0.0
        %v2405 = vmax.f32 %v2307, 0.0
        %v2406 = vmax.f32 %v2310, 0.0
        %v2407 = vmax.f32 %v2312, 0.0
        %v2408 = vmax.f32 %v2315, 0.0
        %v2409 = vmax.f32 %v2317, 0.0
        %v2410 = vmax.f32 %v2320, 0.0
        %v2411 = vmax.f32 %v2322, 0.0
        %v2412 = vmax.f32 %v2325, 0.0
        %v2413 = vmax.f32 %v2327, 0.0
        %v2414 = vmax.f32 %v2330, 0.0
        %v2415 = vmax.f32 %v2332, 0.0
        %v2416 = vmax.f32 %v2335, 0.0
        %v2417 = vmax.f32 %v2337, 0.0
        %v2418 = vmax.f32 %v2340, 0.0
        %v2419 = vmax.f32 %v2342, 0.0
        %v2420 = vmax.f32 %v2345, 0.0
        %v2421 = vmax.f32 %v2347, 0.0
        %v2422 = vmax.f32 %v2350, 0.0
        %v2423 = vmax.f32 %v2352, 0.0
        %v2424 = vmax.f32 %v2355, 0.0
        %v2425 = vmax.f32 %v2357, 0.0
        %v2426 = vmax.f32 %v2360, 0.0
        %v2427 = vmax.f32 %v2362, 0.0
        %v2428 = vpack.c.bf16 %v2365, %v2364
        %v2429 = vpack.c.bf16 %v2367, %v2366
        %v2430 = vpack.c.bf16 %v2369, %v2368
        %v2431 = vpack.c.bf16 %v2371, %v2370
        %v2432 = vpack.c.bf16 %v2373, %v2372
        %v2433 = vpack.c.bf16 %v2375, %v2374
        %v2434 = vpack.c.bf16 %v2377, %v2376
        %v2435 = vpack.c.bf16 %v2379, %v2378
        %v2436 = vpack.c.bf16 %v2381, %v2380
        %v2437 = vpack.c.bf16 %v2383, %v2382
        %v2438 = vpack.c.bf16 %v2385, %v2384
        %v2439 = vpack.c.bf16 %v2387, %v2386
        %v2440 = vpack.c.bf16 %v2389, %v2388
        %v2441 = vpack.c.bf16 %v2391, %v2390
        %v2442 = vpack.c.bf16 %v2393, %v2392
        %v2443 = vpack.c.bf16 %v2395, %v2394
        %v2444 = vpack.c.bf16 %v2397, %v2396
        %v2445 = vpack.c.bf16 %v2399, %v2398
        %v2446 = vpack.c.bf16 %v2401, %v2400
        %v2447 = vpack.c.bf16 %v2403, %v2402
        %v2448 = vpack.c.bf16 %v2405, %v2404
        %v2449 = vpack.c.bf16 %v2407, %v2406
        %v2450 = vpack.c.bf16 %v2409, %v2408
        %v2451 = vpack.c.bf16 %v2411, %v2410
        %v2452 = vpack.c.bf16 %v2413, %v2412
        %v2453 = vpack.c.bf16 %v2415, %v2414
        %v2454 = vpack.c.bf16 %v2417, %v2416
        %v2455 = vpack.c.bf16 %v2419, %v2418
        %v2456 = vpack.c.bf16 %v2421, %v2420
        %v2457 = vpack.c.bf16 %v2423, %v2422
        %v2458 = vpack.c.bf16 %v2425, %v2424
        %v2459 = vpack.c.bf16 %v2427, %v2426
        %v2460 = vld [vmem:[%s5] sm:$0xf]
        %v2461 = vld [vmem:[%s5 + $0x4] sm:$0xf]
        %v2462 = vld [vmem:[%s5 + $0x8] sm:$0xf]
        %v2463 = vld [vmem:[%s5 + $0xc] sm:$0xf]
        %v2464 = vld [vmem:[%s5 + $0x10] sm:$0xf]
        %v2465 = vld [vmem:[%s5 + $0x14] sm:$0xf]
        %v2466 = vld [vmem:[%s5 + $0x18] sm:$0xf]
        %v2467 = vld [vmem:[%s5 + $0x1c] sm:$0xf]
        %v2468 = vld [vmem:[%s5 + $0x20] sm:$0xf]
        %v2469 = vld [vmem:[%s5 + $0x24] sm:$0xf]
        %v2470 = vld [vmem:[%s5 + $0x28] sm:$0xf]
        %v2471 = vld [vmem:[%s5 + $0x2c] sm:$0xf]
        %v2472 = vld [vmem:[%s5 + $0x30] sm:$0xf]
        %v2473 = vld [vmem:[%s5 + $0x34] sm:$0xf]
        %v2474 = vld [vmem:[%s5 + $0x38] sm:$0xf]
        %v2475 = vld [vmem:[%s5 + $0x3c] sm:$0xf]
        %v2476 = vld [vmem:[%s9 + $0x4] sm:$0x1]
        %v2477 = vperm.slane %v2476, 0
        %v2494 = vunpack.c.l.b16 %v2460
        %v2495 = vunpack.c.l.b16 %v2461
        %v2496 = vunpack.c.l.b16 %v2462
        %v2497 = vunpack.c.l.b16 %v2463
        %v2498 = vunpack.c.l.b16 %v2464
        %v2499 = vunpack.c.l.b16 %v2465
        %v2500 = vunpack.c.l.b16 %v2466
        %v2501 = vunpack.c.l.b16 %v2467
        %v2502 = vunpack.c.l.b16 %v2468
        %v2503 = vunpack.c.l.b16 %v2469
        %v2504 = vunpack.c.l.b16 %v2470
        %v2505 = vunpack.c.l.b16 %v2471
        %v2506 = vunpack.c.l.b16 %v2472
        %v2507 = vunpack.c.l.b16 %v2473
        %v2508 = vunpack.c.l.b16 %v2474
        %v2509 = vunpack.c.l.b16 %v2475
        %v2510 = vpack.c.b16 %v2495, %v2494
        %v2511 = vpack.c.b16 %v2497, %v2496
        %v2512 = vpack.c.b16 %v2499, %v2498
        %v2513 = vpack.c.b16 %v2501, %v2500
        %v2514 = vpack.c.b16 %v2503, %v2502
        %v2515 = vpack.c.b16 %v2505, %v2504
        %v2516 = vpack.c.b16 %v2507, %v2506
        %v2517 = vpack.c.b16 %v2509, %v2508
        %2526 = vmatpush.bf16.msra.mxu0 %v2517
        %2527 = vmatpush.bf16.msra.mxu0 %v2516
        %2528 = vmatpush.bf16.msra.mxu0 %v2515
        %2529 = vmatpush.bf16.msra.mxu0 %v2514
        %2530 = vmatpush.bf16.msra.mxu0 %v2513
        %2531 = vmatpush.bf16.msra.mxu0 %v2512
        %2532 = vmatpush.bf16.msra.mxu0 %v2511
        %2533 = vmatpush.bf16.msra.mxu0 %v2510
        %2534 = vmatmul.bf16.gmra.mxu0 %v2428
        %v2535 = vpop.f32.mrf.mxu0
        %v2536 = vadd.f32 %v2477, %v2535
        %v2537 = vpop.f32.mrf.mxu0
        %v2538 = vadd.f32 %v2477, %v2537
        %2539 = vmatmul.bf16.gmra.mxu0 %v2429
        %v2540 = vpop.f32.mrf.mxu0
        %v2541 = vadd.f32 %v2477, %v2540
        %v2542 = vpop.f32.mrf.mxu0
        %v2543 = vadd.f32 %v2477, %v2542
        %2544 = vmatmul.bf16.gmra.mxu0 %v2430
        %v2545 = vpop.f32.mrf.mxu0
        %v2546 = vadd.f32 %v2477, %v2545
        %v2547 = vpop.f32.mrf.mxu0
        %v2548 = vadd.f32 %v2477, %v2547
        %2549 = vmatmul.bf16.gmra.mxu0 %v2431
        %v2550 = vpop.f32.mrf.mxu0
        %v2551 = vadd.f32 %v2477, %v2550
        %v2552 = vpop.f32.mrf.mxu0
        %v2553 = vadd.f32 %v2477, %v2552
        %2554 = vmatmul.bf16.gmra.mxu0 %v2432
        %v2555 = vpop.f32.mrf.mxu0
        %v2556 = vadd.f32 %v2477, %v2555
        %v2557 = vpop.f32.mrf.mxu0
        %v2558 = vadd.f32 %v2477, %v2557
        %2559 = vmatmul.bf16.gmra.mxu0 %v2433
        %v2560 = vpop.f32.mrf.mxu0
        %v2561 = vadd.f32 %v2477, %v2560
        %v2562 = vpop.f32.mrf.mxu0
        %v2563 = vadd.f32 %v2477, %v2562
        %2564 = vmatmul.bf16.gmra.mxu0 %v2434
        %v2565 = vpop.f32.mrf.mxu0
        %v2566 = vadd.f32 %v2477, %v2565
        %v2567 = vpop.f32.mrf.mxu0
        %v2568 = vadd.f32 %v2477, %v2567
        %2569 = vmatmul.bf16.gmra.mxu0 %v2435
        %v2570 = vpop.f32.mrf.mxu0
        %v2571 = vadd.f32 %v2477, %v2570
        %v2572 = vpop.f32.mrf.mxu0
        %v2573 = vadd.f32 %v2477, %v2572
        %2574 = vmatmul.bf16.gmra.mxu0 %v2436
        %v2575 = vpop.f32.mrf.mxu0
        %v2576 = vadd.f32 %v2477, %v2575
        %v2577 = vpop.f32.mrf.mxu0
        %v2578 = vadd.f32 %v2477, %v2577
        %2579 = vmatmul.bf16.gmra.mxu0 %v2437
        %v2580 = vpop.f32.mrf.mxu0
        %v2581 = vadd.f32 %v2477, %v2580
        %v2582 = vpop.f32.mrf.mxu0
        %v2583 = vadd.f32 %v2477, %v2582
        %2584 = vmatmul.bf16.gmra.mxu0 %v2438
        %v2585 = vpop.f32.mrf.mxu0
        %v2586 = vadd.f32 %v2477, %v2585
        %v2587 = vpop.f32.mrf.mxu0
        %v2588 = vadd.f32 %v2477, %v2587
        %2589 = vmatmul.bf16.gmra.mxu0 %v2439
        %v2590 = vpop.f32.mrf.mxu0
        %v2591 = vadd.f32 %v2477, %v2590
        %v2592 = vpop.f32.mrf.mxu0
        %v2593 = vadd.f32 %v2477, %v2592
        %2594 = vmatmul.bf16.gmra.mxu0 %v2440
        %v2595 = vpop.f32.mrf.mxu0
        %v2596 = vadd.f32 %v2477, %v2595
        %v2597 = vpop.f32.mrf.mxu0
        %v2598 = vadd.f32 %v2477, %v2597
        %2599 = vmatmul.bf16.gmra.mxu0 %v2441
        %v2600 = vpop.f32.mrf.mxu0
        %v2601 = vadd.f32 %v2477, %v2600
        %v2602 = vpop.f32.mrf.mxu0
        %v2603 = vadd.f32 %v2477, %v2602
        %2604 = vmatmul.bf16.gmra.mxu0 %v2442
        %v2605 = vpop.f32.mrf.mxu0
        %v2606 = vadd.f32 %v2477, %v2605
        %v2607 = vpop.f32.mrf.mxu0
        %v2608 = vadd.f32 %v2477, %v2607
        %2609 = vmatmul.bf16.gmra.mxu0 %v2443
        %v2610 = vpop.f32.mrf.mxu0
        %v2611 = vadd.f32 %v2477, %v2610
        %v2612 = vpop.f32.mrf.mxu0
        %v2613 = vadd.f32 %v2477, %v2612
        %2614 = vmatmul.bf16.gmra.mxu0 %v2444
        %v2615 = vpop.f32.mrf.mxu0
        %v2616 = vadd.f32 %v2477, %v2615
        %v2617 = vpop.f32.mrf.mxu0
        %v2618 = vadd.f32 %v2477, %v2617
        %2619 = vmatmul.bf16.gmra.mxu0 %v2445
        %v2620 = vpop.f32.mrf.mxu0
        %v2621 = vadd.f32 %v2477, %v2620
        %v2622 = vpop.f32.mrf.mxu0
        %v2623 = vadd.f32 %v2477, %v2622
        %2624 = vmatmul.bf16.gmra.mxu0 %v2446
        %v2625 = vpop.f32.mrf.mxu0
        %v2626 = vadd.f32 %v2477, %v2625
        %v2627 = vpop.f32.mrf.mxu0
        %v2628 = vadd.f32 %v2477, %v2627
        %2629 = vmatmul.bf16.gmra.mxu0 %v2447
        %v2630 = vpop.f32.mrf.mxu0
        %v2631 = vadd.f32 %v2477, %v2630
        %v2632 = vpop.f32.mrf.mxu0
        %v2633 = vadd.f32 %v2477, %v2632
        %2634 = vmatmul.bf16.gmra.mxu0 %v2448
        %v2635 = vpop.f32.mrf.mxu0
        %v2636 = vadd.f32 %v2477, %v2635
        %v2637 = vpop.f32.mrf.mxu0
        %v2638 = vadd.f32 %v2477, %v2637
        %2639 = vmatmul.bf16.gmra.mxu0 %v2449
        %v2640 = vpop.f32.mrf.mxu0
        %v2641 = vadd.f32 %v2477, %v2640
        %v2642 = vpop.f32.mrf.mxu0
        %v2643 = vadd.f32 %v2477, %v2642
        %2644 = vmatmul.bf16.gmra.mxu0 %v2450
        %v2645 = vpop.f32.mrf.mxu0
        %v2646 = vadd.f32 %v2477, %v2645
        %v2647 = vpop.f32.mrf.mxu0
        %v2648 = vadd.f32 %v2477, %v2647
        %2649 = vmatmul.bf16.gmra.mxu0 %v2451
        %v2650 = vpop.f32.mrf.mxu0
        %v2651 = vadd.f32 %v2477, %v2650
        %v2652 = vpop.f32.mrf.mxu0
        %v2653 = vadd.f32 %v2477, %v2652
        %2654 = vmatmul.bf16.gmra.mxu0 %v2452
        %v2655 = vpop.f32.mrf.mxu0
        %v2656 = vadd.f32 %v2477, %v2655
        %v2657 = vpop.f32.mrf.mxu0
        %v2658 = vadd.f32 %v2477, %v2657
        %2659 = vmatmul.bf16.gmra.mxu0 %v2453
        %v2660 = vpop.f32.mrf.mxu0
        %v2661 = vadd.f32 %v2477, %v2660
        %v2662 = vpop.f32.mrf.mxu0
        %v2663 = vadd.f32 %v2477, %v2662
        %2664 = vmatmul.bf16.gmra.mxu0 %v2454
        %v2665 = vpop.f32.mrf.mxu0
        %v2666 = vadd.f32 %v2477, %v2665
        %v2667 = vpop.f32.mrf.mxu0
        %v2668 = vadd.f32 %v2477, %v2667
        %2669 = vmatmul.bf16.gmra.mxu0 %v2455
        %v2670 = vpop.f32.mrf.mxu0
        %v2671 = vadd.f32 %v2477, %v2670
        %v2672 = vpop.f32.mrf.mxu0
        %v2673 = vadd.f32 %v2477, %v2672
        %2674 = vmatmul.bf16.gmra.mxu0 %v2456
        %v2675 = vpop.f32.mrf.mxu0
        %v2676 = vadd.f32 %v2477, %v2675
        %v2677 = vpop.f32.mrf.mxu0
        %v2678 = vadd.f32 %v2477, %v2677
        %2679 = vmatmul.bf16.gmra.mxu0 %v2457
        %v2680 = vpop.f32.mrf.mxu0
        %v2681 = vadd.f32 %v2477, %v2680
        %v2682 = vpop.f32.mrf.mxu0
        %v2683 = vadd.f32 %v2477, %v2682
        %2684 = vmatmul.bf16.gmra.mxu0 %v2458
        %v2685 = vpop.f32.mrf.mxu0
        %v2686 = vadd.f32 %v2477, %v2685
        %v2687 = vpop.f32.mrf.mxu0
        %v2688 = vadd.f32 %v2477, %v2687
        %2689 = vmatmul.bf16.gmra.mxu0 %v2459
        %v2690 = vpop.f32.mrf.mxu0
        %v2691 = vadd.f32 %v2477, %v2690
        %v2692 = vpop.f32.mrf.mxu0
        %v2693 = vadd.f32 %v2477, %v2692
        %2694 = vdwg.mxu0
        %v2695 = vmax.f32 %v2536, 0.0
        %v2696 = vmax.f32 %v2538, 0.0
        %v2697 = vmax.f32 %v2541, 0.0
        %v2698 = vmax.f32 %v2543, 0.0
        %v2699 = vmax.f32 %v2546, 0.0
        %v2700 = vmax.f32 %v2548, 0.0
        %v2701 = vmax.f32 %v2551, 0.0
        %v2702 = vmax.f32 %v2553, 0.0
        %v2703 = vmax.f32 %v2556, 0.0
        %v2704 = vmax.f32 %v2558, 0.0
        %v2705 = vmax.f32 %v2561, 0.0
        %v2706 = vmax.f32 %v2563, 0.0
        %v2707 = vmax.f32 %v2566, 0.0
        %v2708 = vmax.f32 %v2568, 0.0
        %v2709 = vmax.f32 %v2571, 0.0
        %v2710 = vmax.f32 %v2573, 0.0
        %v2711 = vmax.f32 %v2576, 0.0
        %v2712 = vmax.f32 %v2578, 0.0
        %v2713 = vmax.f32 %v2581, 0.0
        %v2714 = vmax.f32 %v2583, 0.0
        %v2715 = vmax.f32 %v2586, 0.0
        %v2716 = vmax.f32 %v2588, 0.0
        %v2717 = vmax.f32 %v2591, 0.0
        %v2718 = vmax.f32 %v2593, 0.0
        %v2719 = vmax.f32 %v2596, 0.0
        %v2720 = vmax.f32 %v2598, 0.0
        %v2721 = vmax.f32 %v2601, 0.0
        %v2722 = vmax.f32 %v2603, 0.0
        %v2723 = vmax.f32 %v2606, 0.0
        %v2724 = vmax.f32 %v2608, 0.0
        %v2725 = vmax.f32 %v2611, 0.0
        %v2726 = vmax.f32 %v2613, 0.0
        %v2727 = vmax.f32 %v2616, 0.0
        %v2728 = vmax.f32 %v2618, 0.0
        %v2729 = vmax.f32 %v2621, 0.0
        %v2730 = vmax.f32 %v2623, 0.0
        %v2731 = vmax.f32 %v2626, 0.0
        %v2732 = vmax.f32 %v2628, 0.0
        %v2733 = vmax.f32 %v2631, 0.0
        %v2734 = vmax.f32 %v2633, 0.0
        %v2735 = vmax.f32 %v2636, 0.0
        %v2736 = vmax.f32 %v2638, 0.0
        %v2737 = vmax.f32 %v2641, 0.0
        %v2738 = vmax.f32 %v2643, 0.0
        %v2739 = vmax.f32 %v2646, 0.0
        %v2740 = vmax.f32 %v2648, 0.0
        %v2741 = vmax.f32 %v2651, 0.0
        %v2742 = vmax.f32 %v2653, 0.0
        %v2743 = vmax.f32 %v2656, 0.0
        %v2744 = vmax.f32 %v2658, 0.0
        %v2745 = vmax.f32 %v2661, 0.0
        %v2746 = vmax.f32 %v2663, 0.0
        %v2747 = vmax.f32 %v2666, 0.0
        %v2748 = vmax.f32 %v2668, 0.0
        %v2749 = vmax.f32 %v2671, 0.0
        %v2750 = vmax.f32 %v2673, 0.0
        %v2751 = vmax.f32 %v2676, 0.0
        %v2752 = vmax.f32 %v2678, 0.0
        %v2753 = vmax.f32 %v2681, 0.0
        %v2754 = vmax.f32 %v2683, 0.0
        %v2755 = vmax.f32 %v2686, 0.0
        %v2756 = vmax.f32 %v2688, 0.0
        %v2757 = vmax.f32 %v2691, 0.0
        %v2758 = vmax.f32 %v2693, 0.0
        %v2759 = vmax.f32 %v2695, %v2696
        %v2760 = vmax.f32 %v2759, %v2697
        %v2761 = vmax.f32 %v2760, %v2698
        %v2762 = vrot.slane %v2761, 4
        %v2763 = vmax.f32 %v2761, %v2762
        %v2764 = vrot.slane %v2763, 2
        %v2765 = vmax.f32 %v2763, %v2764
        %v2766 = vrot.slane %v2765, 1
        %v2767 = vmax.f32 %v2765, %v2766
        %v2768 = vmax.f32 %v2699, %v2700
        %v2769 = vmax.f32 %v2768, %v2701
        %v2770 = vmax.f32 %v2769, %v2702
        %v2771 = vrot.slane %v2770, 4
        %v2772 = vmax.f32 %v2770, %v2771
        %v2773 = vrot.slane %v2772, 2
        %v2774 = vmax.f32 %v2772, %v2773
        %v2775 = vrot.slane %v2774, 1
        %v2776 = vmax.f32 %v2774, %v2775
        %v2777 = vmax.f32 %v2703, %v2704
        %v2778 = vmax.f32 %v2777, %v2705
        %v2779 = vmax.f32 %v2778, %v2706
        %v2780 = vrot.slane %v2779, 4
        %v2781 = vmax.f32 %v2779, %v2780
        %v2782 = vrot.slane %v2781, 2
        %v2783 = vmax.f32 %v2781, %v2782
        %v2784 = vrot.slane %v2783, 1
        %v2785 = vmax.f32 %v2783, %v2784
        %v2786 = vmax.f32 %v2707, %v2708
        %v2787 = vmax.f32 %v2786, %v2709
        %v2788 = vmax.f32 %v2787, %v2710
        %v2789 = vrot.slane %v2788, 4
        %v2790 = vmax.f32 %v2788, %v2789
        %v2791 = vrot.slane %v2790, 2
        %v2792 = vmax.f32 %v2790, %v2791
        %v2793 = vrot.slane %v2792, 1
        %v2794 = vmax.f32 %v2792, %v2793
        %v2795 = vmax.f32 %v2711, %v2712
        %v2796 = vmax.f32 %v2795, %v2713
        %v2797 = vmax.f32 %v2796, %v2714
        %v2798 = vrot.slane %v2797, 4
        %v2799 = vmax.f32 %v2797, %v2798
        %v2800 = vrot.slane %v2799, 2
        %v2801 = vmax.f32 %v2799, %v2800
        %v2802 = vrot.slane %v2801, 1
        %v2803 = vmax.f32 %v2801, %v2802
        %v2804 = vmax.f32 %v2715, %v2716
        %v2805 = vmax.f32 %v2804, %v2717
        %v2806 = vmax.f32 %v2805, %v2718
        %v2807 = vrot.slane %v2806, 4
        %v2808 = vmax.f32 %v2806, %v2807
        %v2809 = vrot.slane %v2808, 2
        %v2810 = vmax.f32 %v2808, %v2809
        %v2811 = vrot.slane %v2810, 1
        %v2812 = vmax.f32 %v2810, %v2811
        %v2813 = vmax.f32 %v2719, %v2720
        %v2814 = vmax.f32 %v2813, %v2721
        %v2815 = vmax.f32 %v2814, %v2722
        %v2816 = vrot.slane %v2815, 4
        %v2817 = vmax.f32 %v2815, %v2816
        %v2818 = vrot.slane %v2817, 2
        %v2819 = vmax.f32 %v2817, %v2818
        %v2820 = vrot.slane %v2819, 1
        %v2821 = vmax.f32 %v2819, %v2820
        %v2822 = vmax.f32 %v2723, %v2724
        %v2823 = vmax.f32 %v2822, %v2725
        %v2824 = vmax.f32 %v2823, %v2726
        %v2825 = vrot.slane %v2824, 4
        %v2826 = vmax.f32 %v2824, %v2825
        %v2827 = vrot.slane %v2826, 2
        %v2828 = vmax.f32 %v2826, %v2827
        %v2829 = vrot.slane %v2828, 1
        %v2830 = vmax.f32 %v2828, %v2829
        %v2831 = vmax.f32 %v2727, %v2728
        %v2832 = vmax.f32 %v2831, %v2729
        %v2833 = vmax.f32 %v2832, %v2730
        %v2834 = vrot.slane %v2833, 4
        %v2835 = vmax.f32 %v2833, %v2834
        %v2836 = vrot.slane %v2835, 2
        %v2837 = vmax.f32 %v2835, %v2836
        %v2838 = vrot.slane %v2837, 1
        %v2839 = vmax.f32 %v2837, %v2838
        %v2840 = vmax.f32 %v2731, %v2732
        %v2841 = vmax.f32 %v2840, %v2733
        %v2842 = vmax.f32 %v2841, %v2734
        %v2843 = vrot.slane %v2842, 4
        %v2844 = vmax.f32 %v2842, %v2843
        %v2845 = vrot.slane %v2844, 2
        %v2846 = vmax.f32 %v2844, %v2845
        %v2847 = vrot.slane %v2846, 1
        %v2848 = vmax.f32 %v2846, %v2847
        %v2849 = vmax.f32 %v2735, %v2736
        %v2850 = vmax.f32 %v2849, %v2737
        %v2851 = vmax.f32 %v2850, %v2738
        %v2852 = vrot.slane %v2851, 4
        %v2853 = vmax.f32 %v2851, %v2852
        %v2854 = vrot.slane %v2853, 2
        %v2855 = vmax.f32 %v2853, %v2854
        %v2856 = vrot.slane %v2855, 1
        %v2857 = vmax.f32 %v2855, %v2856
        %v2858 = vmax.f32 %v2739, %v2740
        %v2859 = vmax.f32 %v2858, %v2741
        %v2860 = vmax.f32 %v2859, %v2742
        %v2861 = vrot.slane %v2860, 4
        %v2862 = vmax.f32 %v2860, %v2861
        %v2863 = vrot.slane %v2862, 2
        %v2864 = vmax.f32 %v2862, %v2863
        %v2865 = vrot.slane %v2864, 1
        %v2866 = vmax.f32 %v2864, %v2865
        %v2867 = vmax.f32 %v2743, %v2744
        %v2868 = vmax.f32 %v2867, %v2745
        %v2869 = vmax.f32 %v2868, %v2746
        %v2870 = vrot.slane %v2869, 4
        %v2871 = vmax.f32 %v2869, %v2870
        %v2872 = vrot.slane %v2871, 2
        %v2873 = vmax.f32 %v2871, %v2872
        %v2874 = vrot.slane %v2873, 1
        %v2875 = vmax.f32 %v2873, %v2874
        %v2876 = vmax.f32 %v2747, %v2748
        %v2877 = vmax.f32 %v2876, %v2749
        %v2878 = vmax.f32 %v2877, %v2750
        %v2879 = vrot.slane %v2878, 4
        %v2880 = vmax.f32 %v2878, %v2879
        %v2881 = vrot.slane %v2880, 2
        %v2882 = vmax.f32 %v2880, %v2881
        %v2883 = vrot.slane %v2882, 1
        %v2884 = vmax.f32 %v2882, %v2883
        %v2885 = vmax.f32 %v2751, %v2752
        %v2886 = vmax.f32 %v2885, %v2753
        %v2887 = vmax.f32 %v2886, %v2754
        %v2888 = vrot.slane %v2887, 4
        %v2889 = vmax.f32 %v2887, %v2888
        %v2890 = vrot.slane %v2889, 2
        %v2891 = vmax.f32 %v2889, %v2890
        %v2892 = vrot.slane %v2891, 1
        %v2893 = vmax.f32 %v2891, %v2892
        %v2894 = vmax.f32 %v2755, %v2756
        %v2895 = vmax.f32 %v2894, %v2757
        %v2896 = vmax.f32 %v2895, %v2758
        %v2897 = vrot.slane %v2896, 4
        %v2898 = vmax.f32 %v2896, %v2897
        %v2899 = vrot.slane %v2898, 2
        %v2900 = vmax.f32 %v2898, %v2899
        %v2901 = vrot.slane %v2900, 1
        %v2902 = vmax.f32 %v2900, %v2901
        %v2903 = vld [vmem:[#allocation2] sm:$0xff]
        %v2904 = vld [vmem:[#allocation2 + $0x8] sm:$0xff]
        %vm2921 = vcmask 1041409
        %v2922 = vsel %vm2921, %v2776, %v2767
        %vm2923 = vcmask 1042434
        %v2924 = vsel %vm2923, %v2785, %v2922
        %vm2925 = vcmask 1043459
        %v2926 = vsel %vm2925, %v2794, %v2924
        %vm2927 = vcmask 1044484
        %v2928 = vsel %vm2927, %v2803, %v2926
        %vm2929 = vcmask 1045509
        %v2930 = vsel %vm2929, %v2812, %v2928
        %vm2931 = vcmask 1046534
        %v2932 = vsel %vm2931, %v2821, %v2930
        %vm2933 = vcmask 1047559
        %v2934 = vsel %vm2933, %v2830, %v2932
        %v2935 = vsel %vm2921, %v2848, %v2839
        %v2936 = vsel %vm2923, %v2857, %v2935
        %v2937 = vsel %vm2925, %v2866, %v2936
        %v2938 = vsel %vm2927, %v2875, %v2937
        %v2939 = vsel %vm2929, %v2884, %v2938
        %v2940 = vsel %vm2931, %v2893, %v2939
        %v2941 = vsel %vm2933, %v2902, %v2940
        %v2944 = vmax.f32 %v2903, %v2934
        %v2945 = vmax.f32 %v2904, %v2941
        %2946 = vst [vmem:[#allocation2] sm:$0xff] %v2944
        %2947 = vst [vmem:[#allocation2 + $0x8] sm:$0xff] %v2945
        %p2948 = scmp.eq.s32.totalorder %s29, 1
        // Predicated region
        $region106: #{tpu_custom_call.1} parent=96 // pred_check
          %p2949 = pneg %p2948
        $region107: #{tpu_custom_call.1} parent=96 // pred_check_branch
          %2951 = sbr.rel (%p2949) target = $region109
        $region108: #{tpu_custom_call.1} parent=96 // pred_region
          %v2952 = vld [vmem:[#allocation2] sm:$0xff]
          %v2953 = vld [vmem:[#allocation2 + $0x8] sm:$0xff]
          %v2954 = vpack.c.bf16 %v2953, %v2952
          %v2955 = vld [vmem:[%s6] sm:$0xf]
          %v2956 = vld [vmem:[%s6 + $0x4] sm:$0xf]
          %v2957 = vld [vmem:[%s6 + $0x8] sm:$0xf]
          %v2958 = vld [vmem:[%s6 + $0xc] sm:$0xf]
          %v2959 = vld [vmem:[%s6 + $0x10] sm:$0xf]
          %v2960 = vld [vmem:[%s6 + $0x14] sm:$0xf]
          %v2961 = vld [vmem:[%s6 + $0x18] sm:$0xf]
          %v2962 = vld [vmem:[%s6 + $0x1c] sm:$0xf]
          %v2963 = vld [vmem:[%s6 + $0x20] sm:$0xf]
          %v2964 = vld [vmem:[%s6 + $0x24] sm:$0xf]
          %v2965 = vld [vmem:[%s6 + $0x28] sm:$0xf]
          %v2966 = vld [vmem:[%s6 + $0x2c] sm:$0xf]
          %v2967 = vld [vmem:[%s6 + $0x30] sm:$0xf]
          %v2968 = vld [vmem:[%s6 + $0x34] sm:$0xf]
          %v2969 = vld [vmem:[%s6 + $0x38] sm:$0xf]
          %v2970 = vld [vmem:[%s6 + $0x3c] sm:$0xf]
          %v2971 = vld [vmem:[%s9 + $0x5] sm:$0x1]
          %v2972 = vperm.slane %v2971, 0
          %v2989 = vunpack.c.l.b16 %v2955
          %v2990 = vunpack.c.l.b16 %v2956
          %v2991 = vunpack.c.l.b16 %v2957
          %v2992 = vunpack.c.l.b16 %v2958
          %v2993 = vunpack.c.l.b16 %v2959
          %v2994 = vunpack.c.l.b16 %v2960
          %v2995 = vunpack.c.l.b16 %v2961
          %v2996 = vunpack.c.l.b16 %v2962
          %v2997 = vunpack.c.l.b16 %v2963
          %v2998 = vunpack.c.l.b16 %v2964
          %v2999 = vunpack.c.l.b16 %v2965
          %v3000 = vunpack.c.l.b16 %v2966
          %v3001 = vunpack.c.l.b16 %v2967
          %v3002 = vunpack.c.l.b16 %v2968
          %v3003 = vunpack.c.l.b16 %v2969
          %v3004 = vunpack.c.l.b16 %v2970
          %v3005 = vpack.c.b16 %v2990, %v2989
          %v3006 = vpack.c.b16 %v2992, %v2991
          %v3007 = vpack.c.b16 %v2994, %v2993
          %v3008 = vpack.c.b16 %v2996, %v2995
          %v3009 = vpack.c.b16 %v2998, %v2997
          %v3010 = vpack.c.b16 %v3000, %v2999
          %v3011 = vpack.c.b16 %v3002, %v3001
          %v3012 = vpack.c.b16 %v3004, %v3003
          %3021 = vmatpush.bf16.msra.mxu0 %v3012
          %3022 = vmatpush.bf16.msra.mxu0 %v3011
          %3023 = vmatpush.bf16.msra.mxu0 %v3010
          %3024 = vmatpush.bf16.msra.mxu0 %v3009
          %3025 = vmatpush.bf16.msra.mxu0 %v3008
          %3026 = vmatpush.bf16.msra.mxu0 %v3007
          %3027 = vmatpush.bf16.msra.mxu0 %v3006
          %3028 = vmatpush.bf16.msra.mxu0 %v3005
          %3029 = vmatmul.bf16.gmra.mxu0 %v2954
          %v3030 = vpop.f32.mrf.mxu0
          %v3031 = vadd.f32 %v2972, %v3030
          %v3032 = vpop.f32.mrf.mxu0
          %v3033 = vadd.f32 %v2972, %v3032
          %3034 = vdwg.mxu0
          %v3035 = vmax.f32 %v3031, 0.0
          %v3036 = vmax.f32 %v3033, 0.0
          %v3037 = vpack.c.bf16 %v3036, %v3035
          %v3038 = vld [vmem:[%s7] sm:$0xf]
          %v3039 = vld [vmem:[%s7 + $0x4] sm:$0xf]
          %v3040 = vld [vmem:[%s7 + $0x8] sm:$0xf]
          %v3041 = vld [vmem:[%s7 + $0xc] sm:$0xf]
          %v3042 = vld [vmem:[%s7 + $0x10] sm:$0xf]
          %v3043 = vld [vmem:[%s7 + $0x14] sm:$0xf]
          %v3044 = vld [vmem:[%s7 + $0x18] sm:$0xf]
          %v3045 = vld [vmem:[%s7 + $0x1c] sm:$0xf]
          %v3046 = vld [vmem:[%s9 + $0x6] sm:$0x1]
          %v3047 = vperm.slane %v3046, 0
          %v3056 = vunpack.c.l.b16 %v3038
          %v3057 = vunpack.c.l.b16 %v3039
          %v3058 = vunpack.c.l.b16 %v3040
          %v3059 = vunpack.c.l.b16 %v3041
          %v3060 = vunpack.c.l.b16 %v3042
          %v3061 = vunpack.c.l.b16 %v3043
          %v3062 = vunpack.c.l.b16 %v3044
          %v3063 = vunpack.c.l.b16 %v3045
          %v3064 = vpack.c.b16 %v3057, %v3056
          %v3065 = vpack.c.b16 %v3059, %v3058
          %v3066 = vpack.c.b16 %v3061, %v3060
          %v3067 = vpack.c.b16 %v3063, %v3062
          %v3073 = vsel %vm1308, %v3037, 0
          %3075 = vmatpush.bf16.msra.mxu0 0
          %3076 = vmatpush.bf16.msra.mxu0 0
          %3077 = vmatpush.bf16.msra.mxu0 0
          %3078 = vmatpush.bf16.msra.mxu0 0
          %3079 = vmatpush.bf16.msra.mxu0 %v3067
          %3080 = vmatpush.bf16.msra.mxu0 %v3066
          %3081 = vmatpush.bf16.msra.mxu0 %v3065
          %3082 = vmatpush.bf16.msra.mxu0 %v3064
          %3083 = vmatmul.bf16.gmra.mxu0 %v3073
          %v3084 = vpop.f32.mrf.mxu0
          %v3085 = vadd.f32 %v3047, %v3084
          %v3086 = vpop.f32.mrf.mxu0
          %v3087 = vadd.f32 %v3047, %v3086
          %3088 = vdwg.mxu0
          %v3089 = vmax.f32 %v3085, 0.0
          %v3090 = vmax.f32 %v3087, 0.0
          %v3091 = vpack.c.bf16 %v3090, %v3089
          %v3092 = vld [vmem:[%s8] sm:$0xf]
          %v3093 = vld [vmem:[%s8 + $0x4] sm:$0xf]
          %v3094 = vld [vmem:[%s8 + $0x8] sm:$0xf]
          %v3095 = vld [vmem:[%s8 + $0xc] sm:$0xf]
          %v3096 = vld [vmem:[%s9 + $0x7] sm:$0x1]
          %v3097 = vperm.slane %v3096, 0
          %v3102 = vunpack.c.l.b16 %v3092
          %v3103 = vunpack.c.l.b16 %v3093
          %v3104 = vunpack.c.l.b16 %v3094
          %v3105 = vunpack.c.l.b16 %v3095
          %v3106 = vpack.c.b16 %v3103, %v3102
          %v3107 = vpack.c.b16 %v3105, %v3104
          %vm3110 = vcmask 261120
          %v3112 = vsel %vm3110, %v3091, 0
          %3114 = vmatpush.bf16.msra.mxu0 0
          %3115 = vmatpush.bf16.msra.mxu0 0
          %3116 = vmatpush.bf16.msra.mxu0 0
          %3117 = vmatpush.bf16.msra.mxu0 0
          %3118 = vmatpush.bf16.msra.mxu0 0
          %3119 = vmatpush.bf16.msra.mxu0 0
          %3120 = vmatpush.bf16.msra.mxu0 %v3107
          %3121 = vmatpush.bf16.msra.mxu0 %v3106
          %3122 = vmatmul.bf16.gmra.mxu0 %v3112
          %v3123 = vpop.f32.mrf.mxu0
          %v3124 = vadd.f32 %v3097, %v3123
          %v3125 = vpop.f32.mrf.mxu0
          %v3126 = vadd.f32 %v3097, %v3125
          %3127 = vdwg.mxu0
          %3128 = vst [vmem:[%s670] sm:$0xff] %v3124
          %3129 = vst [vmem:[%s670 + $0x8] sm:$0xff] %v3126
        $region109: #{tpu_custom_call.1} parent=96 // pred_fallthru
          _
        %s3130 = sand.u32 %s261, 1
        %s3131 = scalar_lea.sflag [#allocation5], %s3130
        %s3132 = sand.u32 %s261, 1
        %s3133 = smul.addr %s3132, 16
        %s3134 = scalar_lea.vmem [#allocation4], %s3133
        // Predicated region
        $region110: #{tpu_custom_call.1} parent=96 // pred_check
          %p3135 = pneg %p271
        $region111: #{tpu_custom_call.1} parent=96 // pred_check_branch
          %3137 = sbr.rel (%p3135) target = $region113
        $region112: #{tpu_custom_call.1} parent=96 // pred_region
          %s3138 = smul.u32 2, %s28
          %3140 = vsyncadd %s3131, 0
          %s3141 = smul.addr %s3138, 8
          %s3142 = scalar_lea.hbm %s10, %s3141
          %s3143 = sshll.u32 %s3134, 4
          %s3144 = int_to_ptr.vmem [resolvable:$true] %s3143
          %s3145 = sshll.u32 %s3142, 4
          %s3146 = int_to_ptr.hbm [resolvable:$true] %s3145
          %3151 = dma.vmem_to_hbm [thread:$0]  %s3144, 256, %s3146, %s3131, 128, 128, 8
        $region113: #{tpu_custom_call.1} parent=96 // pred_fallthru
          _
      $region97: #{tpu_custom_call.1} parent=5 // pred_fallthru
        _
      %p3152 = scmp.le.s32.totalorder 2, %s19
      // Predicated region
      $region114: #{tpu_custom_call.1} parent=5 // pred_check
        %p3153 = pneg %p3152
      $region115: #{tpu_custom_call.1} parent=5 // pred_check_branch
        %3155 = sbr.rel (%p3153) target = $region117
      $region116: #{tpu_custom_call.1} parent=5 // pred_region
        %s3156 = ssub.s32 %s19, 2
        // Predicated region
        $region118: #{tpu_custom_call.1} parent=116 // pred_check
          %p3157 = pneg %p277
        $region119: #{tpu_custom_call.1} parent=116 // pred_check_branch
          %3159 = sbr.rel (%p3157) target = $region121
        $region120: #{tpu_custom_call.1} parent=116 // pred_region
          %s3160 = sand.u32 %s262, 1
          %s3161 = scalar_lea.sflag [#allocation5], %s3160
          %s3162 = sand.u32 %s262, 1
          %s3163 = smul.addr %s3162, 16
          %s3164 = scalar_lea.vmem [#allocation4], %s3163
          %3166 = dma.done %s3161, 256
        $region121: #{tpu_custom_call.1} parent=116 // pred_fallthru
          _
      $region117: #{tpu_custom_call.1} parent=5 // pred_fallthru
        _
    $region6: #{tpu_custom_call.1} parent=1 // loop_footer
      %s23 = sadd.s32 1, %s19
    $region7: #{tpu_custom_call.1} parent=1 // loop_footer_branch
      %18 = sbr.rel target = $region3
    $region8: #{tpu_custom_call.1} parent=1 // loop_exit
      _
    %3167 = vsyncpa [#allocation5], 1
    %s3168 = scalar_lea.sflag [#allocation5], 1
    %3169 = vsyncpa %s3168, 1

</llo_original>
